<compile_context>
chip_gen: v6e
topology: v6e:2x2x1
jax: 0.10.0
libtpu: 0.0.40
codegen_flags: <defaults>
</compile_context>

<pallas_src>
import functools

import jax
import jax.numpy as jnp
import numpy as np
from jax.experimental import pallas as pl
from jax.experimental.pallas import tpu as pltpu


# ----------------------------- Pallas kernel ---------------------------------
def _lstm_chunk_kernel(maxlen_ref, len_ref, x_ref, h0_ref, c0_ref,
                       wi_ref, ws_ref, b_ref, wp_ref,
                       out_ref, hf_ref, cf_ref,
                       h_sc, c_sc,
                       *, chunk, cell_size, go_forward,
                       memory_cell_clip_value, state_projection_clip_value,
                       compute_dtype):
    g = pl.program_id(0)
    n_chunks = pl.num_programs(0)
    # Which time-chunk of the original sequence this grid step covers.
    block = g if go_forward else n_chunks - 1 - g
    base = block * chunk                      # first global timestep in this chunk

    # Initialize the carried (hidden, memory) state on the first grid step.
    @pl.when(g == 0)
    def _():
        h_sc[...] = h0_ref[...]
        c_sc[...] = c0_ref[...]

    C = cell_size
    TB = chunk
    B = h_sc.shape[0]
    lengths = len_ref[...]                    # (B, 1) int32, per-row sequence lengths

    # Scalar-path skip: if even the longest sequence ends before this chunk starts,
    # no row is active for any timestep in the chunk.
    active = maxlen_ref[0] > base

    @pl.when(active)
    def _compute():
        # --- All input projections of the chunk in one MXU pass (off the serial path). ---
        x_all = x_ref[...].reshape(TB * B, x_ref.shape[-1]).astype(compute_dtype)
        xg = jnp.dot(x_all, wi_ref[...], preferred_element_type=jnp.float32)  # (TB*B, 4C)
        xg = (xg + b_ref[...]).reshape(TB, B, 4 * C)                          # bias added once

        h = h_sc[...]                         # (B, H) f32 carried state
        c = c_sc[...]                         # (B, C) f32 carried memory

        # Statically unrolled recurrence over the chunk.
        for s in range(TB):
            local = s if go_forward else TB - 1 - s
            idx = base + local                # global timestep for masking

            gates = xg[local] + jnp.dot(h.astype(compute_dtype), ws_ref[...],
                                        preferred_element_type=jnp.float32)   # (B, 4C)

            # Gate order (wrapper-side reorder): [input, forget, output, memory_init]
            sig = jax.nn.sigmoid(gates[:, :3 * C])        # one sigmoid slab for i/f/o
            input_gate = sig[:, 0 * C:1 * C]
            forget_gate = sig[:, 1 * C:2 * C]
            output_gate = sig[:, 2 * C:3 * C]
            memory_init = jnp.tanh(gates[:, 3 * C:4 * C])

            memory = input_gate * memory_init + forget_gate * c
            if memory_cell_clip_value is not None:
                memory = jnp.clip(memory, -memory_cell_clip_value,
                                  memory_cell_clip_value)

            pre_projection = (output_gate * jnp.tanh(memory)).astype(compute_dtype)
            timestep_output = jnp.dot(pre_projection, wp_ref[...],
                                      preferred_element_type=jnp.float32)      # (B, H)
            if state_projection_clip_value is not None:
                timestep_output = jnp.clip(timestep_output,
                                           -state_projection_clip_value,
                                           state_projection_clip_value)

            mask = lengths > idx              # (B, 1) rows still active at this timestep
            c = jnp.where(mask, memory, c)
            h = jnp.where(mask, timestep_output, h)
            out_ref[local] = jnp.where(mask, timestep_output,
                                       jnp.zeros_like(timestep_output))

        h_sc[...] = h
        c_sc[...] = c

    @pl.when(jnp.logical_not(active))
    def _skip():
        # Every row is past its length for this whole chunk: zero outputs, keep h/c.
        out_ref[...] = jnp.zeros_like(out_ref)

    # Final (state, memory) written on the last grid step.
    @pl.when(g == n_chunks - 1)
    def _finalize():
        hf_ref[...] = h_sc[...]
        cf_ref[...] = c_sc[...]


# ------------------------------- Wrapper --------------------------------------
def lstm_cell_with_projection(inputs, batch_lengths, params, *,
                              go_forward=True,
                              memory_cell_clip_value=None,
                              state_projection_clip_value=None,
                              initial_state=None,
                              time_block=8,
                              compute_dtype=jnp.float32):
    """inputs: (B, T, I) float32; batch_lengths: (B,) int; returns
    (outputs (B, T, H), (h_final (1, B, H), c_final (1, B, C)))."""
    B, T, I = inputs.shape
    C, H = params["w_proj"].shape

    # --- fused, gate-reordered weights (free wrapper-side layout plumbing) ---
    # torch gate order is [input, forget, memory_init, output]; reorder to
    # [input, forget, output, memory_init] so the three sigmoid gates are contiguous.
    order = (0, 1, 3, 2)
    wi_f = jnp.concatenate([params["wi"][k] for k in order], axis=-1).astype(compute_dtype)  # (I, 4C)
    ws_f = jnp.concatenate([params["ws"][k] for k in order], axis=-1).astype(compute_dtype)  # (H, 4C)
    b_f = jnp.concatenate([params["b"][k] for k in order], axis=-1).astype(jnp.float32)      # (1, 4C)
    wp_c = params["w_proj"].astype(compute_dtype)                                            # (C, H)

    # --- time-major input, padded to a multiple of the time block ---
    TB = max(1, min(time_block, T))
    n_chunks = -(-T // TB)
    T_pad = n_chunks * TB
    x_t = jnp.transpose(inputs, (1, 0, 2)).astype(compute_dtype)   # (T, B, I)
    if T_pad != T:
        x_t = jnp.pad(x_t, ((0, T_pad - T), (0, 0), (0, 0)))

    lengths = batch_lengths.astype(jnp.int32).reshape(B, 1)
    max_len = jnp.max(batch_lengths.astype(jnp.int32)).reshape(1)  # scalar-prefetched

    if initial_state is None:
        h0 = jnp.zeros((B, H), jnp.float32)
        c0 = jnp.zeros((B, C), jnp.float32)
    else:
        h0 = initial_state[0][0].astype(jnp.float32)
        c0 = initial_state[1][0].astype(jnp.float32)

    if go_forward:
        time_map = lambda g, m: (g, 0, 0)
    else:
        time_map = lambda g, m: (n_chunks - 1 - g, 0, 0)

    kernel = functools.partial(
        _lstm_chunk_kernel,
        chunk=TB,
        cell_size=C,
        go_forward=go_forward,
        memory_cell_clip_value=memory_cell_clip_value,
        state_projection_clip_value=state_projection_clip_value,
        compute_dtype=compute_dtype)

    out_t, h_final, c_final = pl.pallas_call(
        kernel,
        out_shape=(jax.ShapeDtypeStruct((T_pad, B, H), jnp.float32),
                   jax.ShapeDtypeStruct((B, H), jnp.float32),
                   jax.ShapeDtypeStruct((B, C), jnp.float32)),
        grid_spec=pltpu.PrefetchScalarGridSpec(
            num_scalar_prefetch=1,                                # max_len -> SMEM
            grid=(n_chunks,),
            in_specs=[
                pl.BlockSpec((B, 1), lambda g, m: (0, 0)),        # per-row lengths
                pl.BlockSpec((TB, B, I), time_map),               # input chunk (time-major)
                pl.BlockSpec((B, H), lambda g, m: (0, 0)),        # h0
                pl.BlockSpec((B, C), lambda g, m: (0, 0)),        # c0
                pl.BlockSpec((I, 4 * C), lambda g, m: (0, 0)),    # fused input weights
                pl.BlockSpec((H, 4 * C), lambda g, m: (0, 0)),    # fused state weights
                pl.BlockSpec((1, 4 * C), lambda g, m: (0, 0)),    # fused biases
                pl.BlockSpec((C, H), lambda g, m: (0, 0)),        # projection weight
            ],
            out_specs=(
                pl.BlockSpec((TB, B, H), time_map),               # output chunk
                pl.BlockSpec((B, H), lambda g, m: (0, 0)),        # final hidden state
                pl.BlockSpec((B, C), lambda g, m: (0, 0)),        # final memory cell
            ),
            scratch_shapes=[pltpu.VMEM((B, H), jnp.float32),      # carried hidden state
                            pltpu.VMEM((B, C), jnp.float32)],     # carried memory cell
        ),
        compiler_params=pltpu.CompilerParams(
            dimension_semantics=("arbitrary",),                   # sequential recurrence
            vmem_limit_bytes=64 * 1024 * 1024),
    )(max_len, lengths, x_t, h0, c0, wi_f, ws_f, b_f, wp_c)

    outputs = jnp.transpose(out_t[:T], (1, 0, 2))                 # back to (B, T, H)
    return outputs, (h_final[None], c_final[None])


# --------------------------- Pure-JAX reference --------------------------------
def lstm_ref(inputs, batch_lengths, params, *, go_forward=True,
             memory_cell_clip_value=None, state_projection_clip_value=None):
    B, T, I = inputs.shape
    C, H = params["w_proj"].shape
    wi, ws, b, wp = params["wi"], params["ws"], params["b"], params["w_proj"]
    h = jnp.zeros((B, H), jnp.float32)
    c = jnp.zeros((B, C), jnp.float32)
    out = jnp.zeros((B, T, H), jnp.float32)
    order = range(T) if go_forward else range(T - 1, -1, -1)
    for idx in order:
        x = inputs[:, idx]
        gates = [jnp.dot(x, wi[k], preferred_element_type=jnp.float32)
                 + jnp.dot(h, ws[k], preferred_element_type=jnp.float32) + b[k]
                 for k in range(4)]
        i_g, f_g = jax.nn.sigmoid(gates[0]), jax.nn.sigmoid(gates[1])
        g_g, o_g = jnp.tanh(gates[2]), jax.nn.sigmoid(gates[3])
        mem = i_g * g_g + f_g * c
        if memory_cell_clip_value is not None:
            mem = jnp.clip(mem, -memory_cell_clip_value, memory_cell_clip_value)
        o = jnp.dot(o_g * jnp.tanh(mem), wp, preferred_element_type=jnp.float32)
        if state_projection_clip_value is not None:
            o = jnp.clip(o, -state_projection_clip_value, state_projection_clip_value)
        mask = (batch_lengths > idx)[:, None]
        c = jnp.where(mask, mem, c)
        h = jnp.where(mask, o, h)
        out = out.at[:, idx].set(jnp.where(mask, o, 0.0))
    return out, (h[None], c[None])


# --------------------------------- Main ----------------------------------------
if __name__ == "__main__":
    # Module config (small synthetic sizes).
    input_size, hidden_size, cell_size = 32, 16, 32
    batch_size, total_timesteps = 8, 12       # T not a multiple of the time block -> padding path
    memory_cell_clip_value = 3.0
    state_projection_clip_value = 3.0

    key = jax.random.PRNGKey(0)
    k_x, k_wi, k_ws, k_wp = jax.random.split(key, 4)

    # Deterministic parameter init (same shapes as the torch module, gate-split,
    # pre-transposed for x @ W; forget-gate bias = 1.0 as in reset_parameters()).
    wi = 0.1 * jax.random.normal(k_wi, (4, input_size, cell_size), jnp.float32)
    ws = 0.1 * jax.random.normal(k_ws, (4, hidden_size, cell_size), jnp.float32)
    bias = jnp.zeros((4, 1, cell_size), jnp.float32).at[1].set(1.0)
    w_proj = 0.1 * jax.random.normal(k_wp, (cell_size, hidden_size), jnp.float32)
    params = {"wi": wi, "ws": ws, "b": bias, "w_proj": w_proj}

    inputs = jax.random.normal(k_x, (batch_size, total_timesteps, input_size),
                               jnp.float32)
    batch_lengths = jnp.array([12, 10, 9, 7, 5, 3, 2, 1], jnp.int32)  # sorted descending

    ref_fwd = None
    for go_forward in (True, False):
        outputs, (h_f, c_f) = lstm_cell_with_projection(
            inputs, batch_lengths, params,
            go_forward=go_forward,
            memory_cell_clip_value=memory_cell_clip_value,
            state_projection_clip_value=state_projection_clip_value,
            time_block=8, compute_dtype=jnp.float32)
        jax.block_until_ready((outputs, h_f, c_f))

        ref_out, (ref_h, ref_c) = lstm_ref(
            inputs, batch_lengths, params,
            go_forward=go_forward,
            memory_cell_clip_value=memory_cell_clip_value,
            state_projection_clip_value=state_projection_clip_value)
        if go_forward:
            ref_fwd = ref_out

        np.testing.assert_allclose(np.asarray(outputs), np.asarray(ref_out),
                                   rtol=1e-3, atol=1e-2)
        np.testing.assert_allclose(np.asarray(h_f), np.asarray(ref_h),
                                   rtol=1e-3, atol=1e-2)
        np.testing.assert_allclose(np.asarray(c_f), np.asarray(ref_c),
                                   rtol=1e-3, atol=1e-2)
        assert outputs.shape == (batch_size, total_timesteps, hidden_size)
        assert h_f.shape == (1, batch_size, hidden_size)
        assert c_f.shape == (1, batch_size, cell_size)

    # Production-style bf16 compute path (f32 accumulation / f32 carried state): loose tol.
    out_bf, (h_bf, c_bf) = lstm_cell_with_projection(
        inputs, batch_lengths, params,
        go_forward=True,
        memory_cell_clip_value=memory_cell_clip_value,
        state_projection_clip_value=state_projection_clip_value,
        time_block=8, compute_dtype=jnp.bfloat16)
    jax.block_until_ready((out_bf, h_bf, c_bf))
    np.testing.assert_allclose(np.asarray(out_bf), np.asarray(ref_fwd),
                               rtol=5e-2, atol=5e-2)

    print("KERNEL_OK")
</pallas_src>

<mosaic_0001>
module attributes {stable_mosaic.version = 11 : i64} {
  func.func @_lstm_chunk_kernel(%arg0: i32, %arg1: memref<1xi32, #tpu.memory_space<smem>>, %arg2: memref<8x1xi32, #tpu.memory_space<vmem>>, %arg3: memref<8x8x32xf32, #tpu.memory_space<vmem>>, %arg4: memref<8x16xf32, #tpu.memory_space<vmem>>, %arg5: memref<8x32xf32, #tpu.memory_space<vmem>>, %arg6: memref<32x128xf32, #tpu.memory_space<vmem>>, %arg7: memref<16x128xf32, #tpu.memory_space<vmem>>, %arg8: memref<1x128xf32, #tpu.memory_space<vmem>>, %arg9: memref<32x16xf32, #tpu.memory_space<vmem>>, %arg10: memref<8x8x16xf32, #tpu.memory_space<vmem>>, %arg11: memref<8x16xf32, #tpu.memory_space<vmem>>, %arg12: memref<8x32xf32, #tpu.memory_space<vmem>>, %arg13: memref<8x16xf32, #tpu.memory_space<vmem>>, %arg14: memref<8x32xf32, #tpu.memory_space<vmem>>) attributes {dimension_semantics = [#tpu.dimension_semantics<arbitrary>], iteration_bounds = array<i64: 2>, scalar_prefetch = 1 : i64, scratch_operands = 2 : i64, tpu.core_type = #tpu.core_type<tc>, window_params = [{pipeline_mode = #tpu.pipeline_mode<synchronous>, transform_indices = @transform_0, window_bounds = array<i64: 8, 1>}, {transform_indices = @transform_1, window_bounds = array<i64: 8, 8, 32>}, {pipeline_mode = #tpu.pipeline_mode<synchronous>, transform_indices = @transform_2, window_bounds = array<i64: 8, 16>}, {pipeline_mode = #tpu.pipeline_mode<synchronous>, transform_indices = @transform_3, window_bounds = array<i64: 8, 32>}, {pipeline_mode = #tpu.pipeline_mode<synchronous>, transform_indices = @transform_4, window_bounds = array<i64: 32, 128>}, {pipeline_mode = #tpu.pipeline_mode<synchronous>, transform_indices = @transform_5, window_bounds = array<i64: 16, 128>}, {pipeline_mode = #tpu.pipeline_mode<synchronous>, transform_indices = @transform_6, window_bounds = array<i64: 1, 128>}, {pipeline_mode = #tpu.pipeline_mode<synchronous>, transform_indices = @transform_7, window_bounds = array<i64: 32, 16>}, {transform_indices = @transform_8, window_bounds = array<i64: 8, 8, 16>}, {pipeline_mode = #tpu.pipeline_mode<synchronous>, transform_indices = @transform_9, window_bounds = array<i64: 8, 16>}, {pipeline_mode = #tpu.pipeline_mode<synchronous>, transform_indices = @transform_10, window_bounds = array<i64: 8, 32>}]} {
    %c8_i32 = arith.constant 8 : i32
    %0 = arith.muli %arg0, %c8_i32 : i32
    %c0_i32 = arith.constant 0 : i32
    %1 = arith.cmpi eq, %arg0, %c0_i32 : i32
    %2 = arith.extui %1 : i1 to i32
    %c0_i32_0 = arith.constant 0 : i32
    %3 = arith.cmpi ne, %2, %c0_i32_0 : i32
    scf.if %3 {
      %c0_6 = arith.constant 0 : index
      %c0_7 = arith.constant 0 : index
      %15 = vector.load %arg4[%c0_6, %c0_7] : memref<8x16xf32, #tpu.memory_space<vmem>>, vector<8x16xf32>
      %c0_8 = arith.constant 0 : index
      %c0_9 = arith.constant 0 : index
      %16 = vector.load %arg13[%c0_8, %c0_9] : memref<8x16xf32, #tpu.memory_space<vmem>>, vector<8x16xf32>
      tpu.vector_store %arg13[%c0_8, %c0_9], %15 {strides = array<i32>} : memref<8x16xf32, #tpu.memory_space<vmem>>, vector<8x16xf32>,
      %c0_10 = arith.constant 0 : index
      %c0_11 = arith.constant 0 : index
      %17 = vector.load %arg5[%c0_10, %c0_11] : memref<8x32xf32, #tpu.memory_space<vmem>>, vector<8x32xf32>
      %c0_12 = arith.constant 0 : index
      %c0_13 = arith.constant 0 : index
      %18 = vector.load %arg14[%c0_12, %c0_13] : memref<8x32xf32, #tpu.memory_space<vmem>>, vector<8x32xf32>
      tpu.vector_store %arg14[%c0_12, %c0_13], %17 {strides = array<i32>} : memref<8x32xf32, #tpu.memory_space<vmem>>, vector<8x32xf32>,
    } else {
    }
    %c0 = arith.constant 0 : index
    %c0_1 = arith.constant 0 : index
    %4 = vector.load %arg2[%c0, %c0_1] : memref<8x1xi32, #tpu.memory_space<vmem>>, vector<8x1xi32>
    %c0_2 = arith.constant 0 : index
    %5 = memref.load %arg1[%c0_2] : memref<1xi32, #tpu.memory_space<smem>>
    %6 = arith.cmpi sgt, %5, %0 : i32
    %7 = arith.extui %6 : i1 to i32
    %c0_i32_3 = arith.constant 0 : i32
    %8 = arith.cmpi ne, %7, %c0_i32_3 : i32
    scf.if %8 {
      %c0_6 = arith.constant 0 : index
      %c0_7 = arith.constant 0 : index
      %c0_8 = arith.constant 0 : index
      %15 = vector.load %arg3[%c0_6, %c0_7, %c0_8] : memref<8x8x32xf32, #tpu.memory_space<vmem>>, vector<8x8x32xf32>
      %16 = vector.shape_cast %15 : vector<8x8x32xf32> to vector<64x32xf32>
      %c0_9 = arith.constant 0 : index
      %c0_10 = arith.constant 0 : index
      %17 = vector.load %arg6[%c0_9, %c0_10] : memref<32x128xf32, #tpu.memory_space<vmem>>, vector<32x128xf32>
      %cst = arith.constant dense<0.000000e+00> : vector<64x128xf32>
      %18 = tpu.matmul %16, %17, %cst {dimension_numbers = #tpu.dot_dimension_numbers<[1], [0], [0], [1], [0, 0, 1, 1], [], []>} : vector<64x32xf32>, vector<32x128xf32>, vector<64x128xf32> -> vector<64x128xf32>
      %c0_11 = arith.constant 0 : index
      %c0_12 = arith.constant 0 : index
      %19 = vector.load %arg8[%c0_11, %c0_12] : memref<1x128xf32, #tpu.memory_space<vmem>>, vector<1x128xf32>
      %20 = vector.broadcast %19 : vector<1x128xf32> to vector<64x128xf32>
      %21 = arith.addf %18, %20 : vector<64x128xf32>
      %22 = vector.shape_cast %21 : vector<64x128xf32> to vector<8x8x128xf32>
      %c0_13 = arith.constant 0 : index
      %c0_14 = arith.constant 0 : index
      %23 = vector.load %arg13[%c0_13, %c0_14] : memref<8x16xf32, #tpu.memory_space<vmem>>, vector<8x16xf32>
      %c0_15 = arith.constant 0 : index
      %c0_16 = arith.constant 0 : index
      %24 = vector.load %arg14[%c0_15, %c0_16] : memref<8x32xf32, #tpu.memory_space<vmem>>, vector<8x32xf32>
      %c0_i32_17 = arith.constant 0 : i32
      %25 = arith.addi %0, %c0_i32_17 : i32
      %26 = vector.extract_strided_slice %22 {offsets = [0, 0, 0], sizes = [1, 8, 128], strides = [1, 1, 1]} : vector<8x8x128xf32> to vector<1x8x128xf32>
      %27 = vector.shape_cast %26 : vector<1x8x128xf32> to vector<8x128xf32>
      %c0_18 = arith.constant 0 : index
      %c0_19 = arith.constant 0 : index
      %28 = vector.load %arg7[%c0_18, %c0_19] : memref<16x128xf32, #tpu.memory_space<vmem>>, vector<16x128xf32>
      %cst_20 = arith.constant dense<0.000000e+00> : vector<8x128xf32>
      %29 = tpu.matmul %23, %28, %cst_20 {dimension_numbers = #tpu.dot_dimension_numbers<[1], [0], [0], [1], [0, 0, 1, 1], [], []>} : vector<8x16xf32>, vector<16x128xf32>, vector<8x128xf32> -> vector<8x128xf32>
      %30 = arith.addf %27, %29 : vector<8x128xf32>
      %31 = vector.extract_strided_slice %30 {offsets = [0, 0], sizes = [8, 96], strides = [1, 1]} : vector<8x128xf32> to vector<8x96xf32>
      %32 = arith.negf %31 : vector<8x96xf32>
      %33 = math.exp %32 : vector<8x96xf32>
      %cst_21 = arith.constant 1.000000e+00 : f32
      %34 = vector.broadcast %cst_21 : f32 to vector<8x96xf32>
      %35 = arith.addf %34, %33 : vector<8x96xf32>
      %36 = arith.divf %34, %35 : vector<8x96xf32>
      %37 = vector.extract_strided_slice %36 {offsets = [0, 0], sizes = [8, 32], strides = [1, 1]} : vector<8x96xf32> to vector<8x32xf32>
      %38 = vector.extract_strided_slice %36 {offsets = [0, 32], sizes = [8, 32], strides = [1, 1]} : vector<8x96xf32> to vector<8x32xf32>
      %39 = vector.extract_strided_slice %36 {offsets = [0, 64], sizes = [8, 32], strides = [1, 1]} : vector<8x96xf32> to vector<8x32xf32>
      %40 = vector.extract_strided_slice %30 {offsets = [0, 96], sizes = [8, 32], strides = [1, 1]} : vector<8x128xf32> to vector<8x32xf32>
      %41 = math.tanh %40 : vector<8x32xf32>
      %42 = arith.mulf %37, %41 : vector<8x32xf32>
      %43 = arith.mulf %38, %24 : vector<8x32xf32>
      %44 = arith.addf %42, %43 : vector<8x32xf32>
      %cst_22 = arith.constant -3.000000e+00 : f32
      %cst_23 = arith.constant 3.000000e+00 : f32
      %45 = vector.broadcast %cst_22 : f32 to vector<8x32xf32>
      %46 = arith.maximumf %45, %44 : vector<8x32xf32>
      %47 = vector.broadcast %cst_23 : f32 to vector<8x32xf32>
      %48 = arith.minimumf %47, %46 : vector<8x32xf32>
      %49 = math.tanh %48 : vector<8x32xf32>
      %50 = arith.mulf %39, %49 : vector<8x32xf32>
      %c0_24 = arith.constant 0 : index
      %c0_25 = arith.constant 0 : index
      %51 = vector.load %arg9[%c0_24, %c0_25] : memref<32x16xf32, #tpu.memory_space<vmem>>, vector<32x16xf32>
      %cst_26 = arith.constant dense<0.000000e+00> : vector<8x16xf32>
      %52 = tpu.matmul %50, %51, %cst_26 {dimension_numbers = #tpu.dot_dimension_numbers<[1], [0], [0], [1], [0, 0, 1, 1], [], []>} : vector<8x32xf32>, vector<32x16xf32>, vector<8x16xf32> -> vector<8x16xf32>
      %cst_27 = arith.constant -3.000000e+00 : f32
      %cst_28 = arith.constant 3.000000e+00 : f32
      %53 = vector.broadcast %cst_27 : f32 to vector<8x16xf32>
      %54 = arith.maximumf %53, %52 : vector<8x16xf32>
      %55 = vector.broadcast %cst_28 : f32 to vector<8x16xf32>
      %56 = arith.minimumf %55, %54 : vector<8x16xf32>
      %57 = vector.broadcast %25 : i32 to vector<8x1xi32>
      %58 = arith.cmpi sgt, %4, %57 : vector<8x1xi32>
      %59 = vector.shape_cast %58 : vector<8x1xi1> to vector<8x1xi1>
      %60 = vector.broadcast %59 : vector<8x1xi1> to vector<8x32xi1>
      %61 = arith.select %60, %48, %24 : vector<8x32xi1>, vector<8x32xf32>
      %62 = vector.shape_cast %58 : vector<8x1xi1> to vector<8x1xi1>
      %63 = vector.broadcast %62 : vector<8x1xi1> to vector<8x16xi1>
      %64 = arith.select %63, %56, %23 : vector<8x16xi1>, vector<8x16xf32>
      %cst_29 = arith.constant 0.000000e+00 : f32
      %65 = vector.broadcast %cst_29 : f32 to vector<8x16xf32>
      %66 = vector.shape_cast %58 : vector<8x1xi1> to vector<8x1xi1>
      %67 = vector.broadcast %66 : vector<8x1xi1> to vector<8x16xi1>
      %68 = arith.select %67, %56, %65 : vector<8x16xi1>, vector<8x16xf32>
      %c0_30 = arith.constant 0 : index
      %c0_31 = arith.constant 0 : index
      %c0_32 = arith.constant 0 : index
      %69 = vector.load %arg10[%c0_30, %c0_31, %c0_32] : memref<8x8x16xf32, #tpu.memory_space<vmem>>, vector<1x8x16xf32>
      %70 = vector.shape_cast %69 : vector<1x8x16xf32> to vector<8x16xf32>
      %71 = vector.shape_cast %68 : vector<8x16xf32> to vector<1x8x16xf32>
      tpu.vector_store %arg10[%c0_30, %c0_31, %c0_32], %71 {strides = array<i32>} : memref<8x8x16xf32, #tpu.memory_space<vmem>>, vector<1x8x16xf32>,
      %c1_i32_33 = arith.constant 1 : i32
      %72 = arith.addi %0, %c1_i32_33 : i32
      %73 = vector.extract_strided_slice %22 {offsets = [1, 0, 0], sizes = [1, 8, 128], strides = [1, 1, 1]} : vector<8x8x128xf32> to vector<1x8x128xf32>
      %74 = vector.shape_cast %73 : vector<1x8x128xf32> to vector<8x128xf32>
      %c0_34 = arith.constant 0 : index
      %c0_35 = arith.constant 0 : index
      %75 = vector.load %arg7[%c0_34, %c0_35] : memref<16x128xf32, #tpu.memory_space<vmem>>, vector<16x128xf32>
      %cst_36 = arith.constant dense<0.000000e+00> : vector<8x128xf32>
      %76 = tpu.matmul %64, %75, %cst_36 {dimension_numbers = #tpu.dot_dimension_numbers<[1], [0], [0], [1], [0, 0, 1, 1], [], []>} : vector<8x16xf32>, vector<16x128xf32>, vector<8x128xf32> -> vector<8x128xf32>
      %77 = arith.addf %74, %76 : vector<8x128xf32>
      %78 = vector.extract_strided_slice %77 {offsets = [0, 0], sizes = [8, 96], strides = [1, 1]} : vector<8x128xf32> to vector<8x96xf32>
      %79 = arith.negf %78 : vector<8x96xf32>
      %80 = math.exp %79 : vector<8x96xf32>
      %cst_37 = arith.constant 1.000000e+00 : f32
      %81 = vector.broadcast %cst_37 : f32 to vector<8x96xf32>
      %82 = arith.addf %81, %80 : vector<8x96xf32>
      %83 = arith.divf %81, %82 : vector<8x96xf32>
      %84 = vector.extract_strided_slice %83 {offsets = [0, 0], sizes = [8, 32], strides = [1, 1]} : vector<8x96xf32> to vector<8x32xf32>
      %85 = vector.extract_strided_slice %83 {offsets = [0, 32], sizes = [8, 32], strides = [1, 1]} : vector<8x96xf32> to vector<8x32xf32>
      %86 = vector.extract_strided_slice %83 {offsets = [0, 64], sizes = [8, 32], strides = [1, 1]} : vector<8x96xf32> to vector<8x32xf32>
      %87 = vector.extract_strided_slice %77 {offsets = [0, 96], sizes = [8, 32], strides = [1, 1]} : vector<8x128xf32> to vector<8x32xf32>
      %88 = math.tanh %87 : vector<8x32xf32>
      %89 = arith.mulf %84, %88 : vector<8x32xf32>
      %90 = arith.mulf %85, %61 : vector<8x32xf32>
      %91 = arith.addf %89, %90 : vector<8x32xf32>
      %cst_38 = arith.constant -3.000000e+00 : f32
      %cst_39 = arith.constant 3.000000e+00 : f32
      %92 = vector.broadcast %cst_38 : f32 to vector<8x32xf32>
      %93 = arith.maximumf %92, %91 : vector<8x32xf32>
      %94 = vector.broadcast %cst_39 : f32 to vector<8x32xf32>
      %95 = arith.minimumf %94, %93 : vector<8x32xf32>
      %96 = math.tanh %95 : vector<8x32xf32>
      %97 = arith.mulf %86, %96 : vector<8x32xf32>
      %c0_40 = arith.constant 0 : index
      %c0_41 = arith.constant 0 : index
      %98 = vector.load %arg9[%c0_40, %c0_41] : memref<32x16xf32, #tpu.memory_space<vmem>>, vector<32x16xf32>
      %cst_42 = arith.constant dense<0.000000e+00> : vector<8x16xf32>
      %99 = tpu.matmul %97, %98, %cst_42 {dimension_numbers = #tpu.dot_dimension_numbers<[1], [0], [0], [1], [0, 0, 1, 1], [], []>} : vector<8x32xf32>, vector<32x16xf32>, vector<8x16xf32> -> vector<8x16xf32>
      %cst_43 = arith.constant -3.000000e+00 : f32
      %cst_44 = arith.constant 3.000000e+00 : f32
      %100 = vector.broadcast %cst_43 : f32 to vector<8x16xf32>
      %101 = arith.maximumf %100, %99 : vector<8x16xf32>
      %102 = vector.broadcast %cst_44 : f32 to vector<8x16xf32>
      %103 = arith.minimumf %102, %101 : vector<8x16xf32>
      %104 = vector.broadcast %72 : i32 to vector<8x1xi32>
      %105 = arith.cmpi sgt, %4, %104 : vector<8x1xi32>
      %106 = vector.shape_cast %105 : vector<8x1xi1> to vector<8x1xi1>
      %107 = vector.broadcast %106 : vector<8x1xi1> to vector<8x32xi1>
      %108 = arith.select %107, %95, %61 : vector<8x32xi1>, vector<8x32xf32>
      %109 = vector.shape_cast %105 : vector<8x1xi1> to vector<8x1xi1>
      %110 = vector.broadcast %109 : vector<8x1xi1> to vector<8x16xi1>
      %111 = arith.select %110, %103, %64 : vector<8x16xi1>, vector<8x16xf32>
      %cst_45 = arith.constant 0.000000e+00 : f32
      %112 = vector.broadcast %cst_45 : f32 to vector<8x16xf32>
      %113 = vector.shape_cast %105 : vector<8x1xi1> to vector<8x1xi1>
      %114 = vector.broadcast %113 : vector<8x1xi1> to vector<8x16xi1>
      %115 = arith.select %114, %103, %112 : vector<8x16xi1>, vector<8x16xf32>
      %c1 = arith.constant 1 : index
      %c0_46 = arith.constant 0 : index
      %c0_47 = arith.constant 0 : index
      %116 = vector.load %arg10[%c1, %c0_46, %c0_47] : memref<8x8x16xf32, #tpu.memory_space<vmem>>, vector<1x8x16xf32>
      %117 = vector.shape_cast %116 : vector<1x8x16xf32> to vector<8x16xf32>
      %118 = vector.shape_cast %115 : vector<8x16xf32> to vector<1x8x16xf32>
      tpu.vector_store %arg10[%c1, %c0_46, %c0_47], %118 {strides = array<i32>} : memref<8x8x16xf32, #tpu.memory_space<vmem>>, vector<1x8x16xf32>,
      %c2_i32 = arith.constant 2 : i32
      %119 = arith.addi %0, %c2_i32 : i32
      %120 = vector.extract_strided_slice %22 {offsets = [2, 0, 0], sizes = [1, 8, 128], strides = [1, 1, 1]} : vector<8x8x128xf32> to vector<1x8x128xf32>
      %121 = vector.shape_cast %120 : vector<1x8x128xf32> to vector<8x128xf32>
      %c0_48 = arith.constant 0 : index
      %c0_49 = arith.constant 0 : index
      %122 = vector.load %arg7[%c0_48, %c0_49] : memref<16x128xf32, #tpu.memory_space<vmem>>, vector<16x128xf32>
      %cst_50 = arith.constant dense<0.000000e+00> : vector<8x128xf32>
      %123 = tpu.matmul %111, %122, %cst_50 {dimension_numbers = #tpu.dot_dimension_numbers<[1], [0], [0], [1], [0, 0, 1, 1], [], []>} : vector<8x16xf32>, vector<16x128xf32>, vector<8x128xf32> -> vector<8x128xf32>
      %124 = arith.addf %121, %123 : vector<8x128xf32>
      %125 = vector.extract_strided_slice %124 {offsets = [0, 0], sizes = [8, 96], strides = [1, 1]} : vector<8x128xf32> to vector<8x96xf32>
      %126 = arith.negf %125 : vector<8x96xf32>
      %127 = math.exp %126 : vector<8x96xf32>
      %cst_51 = arith.constant 1.000000e+00 : f32
      %128 = vector.broadcast %cst_51 : f32 to vector<8x96xf32>
      %129 = arith.addf %128, %127 : vector<8x96xf32>
      %130 = arith.divf %128, %129 : vector<8x96xf32>
      %131 = vector.extract_strided_slice %130 {offsets = [0, 0], sizes = [8, 32], strides = [1, 1]} : vector<8x96xf32> to vector<8x32xf32>
      %132 = vector.extract_strided_slice %130 {offsets = [0, 32], sizes = [8, 32], strides = [1, 1]} : vector<8x96xf32> to vector<8x32xf32>
      %133 = vector.extract_strided_slice %130 {offsets = [0, 64], sizes = [8, 32], strides = [1, 1]} : vector<8x96xf32> to vector<8x32xf32>
      %134 = vector.extract_strided_slice %124 {offsets = [0, 96], sizes = [8, 32], strides = [1, 1]} : vector<8x128xf32> to vector<8x32xf32>
      %135 = math.tanh %134 : vector<8x32xf32>
      %136 = arith.mulf %131, %135 : vector<8x32xf32>
      %137 = arith.mulf %132, %108 : vector<8x32xf32>
      %138 = arith.addf %136, %137 : vector<8x32xf32>
      %cst_52 = arith.constant -3.000000e+00 : f32
      %cst_53 = arith.constant 3.000000e+00 : f32
      %139 = vector.broadcast %cst_52 : f32 to vector<8x32xf32>
      %140 = arith.maximumf %139, %138 : vector<8x32xf32>
      %141 = vector.broadcast %cst_53 : f32 to vector<8x32xf32>
      %142 = arith.minimumf %141, %140 : vector<8x32xf32>
      %143 = math.tanh %142 : vector<8x32xf32>
      %144 = arith.mulf %133, %143 : vector<8x32xf32>
      %c0_54 = arith.constant 0 : index
      %c0_55 = arith.constant 0 : index
      %145 = vector.load %arg9[%c0_54, %c0_55] : memref<32x16xf32, #tpu.memory_space<vmem>>, vector<32x16xf32>
      %cst_56 = arith.constant dense<0.000000e+00> : vector<8x16xf32>
      %146 = tpu.matmul %144, %145, %cst_56 {dimension_numbers = #tpu.dot_dimension_numbers<[1], [0], [0], [1], [0, 0, 1, 1], [], []>} : vector<8x32xf32>, vector<32x16xf32>, vector<8x16xf32> -> vector<8x16xf32>
      %cst_57 = arith.constant -3.000000e+00 : f32
      %cst_58 = arith.constant 3.000000e+00 : f32
      %147 = vector.broadcast %cst_57 : f32 to vector<8x16xf32>
      %148 = arith.maximumf %147, %146 : vector<8x16xf32>
      %149 = vector.broadcast %cst_58 : f32 to vector<8x16xf32>
      %150 = arith.minimumf %149, %148 : vector<8x16xf32>
      %151 = vector.broadcast %119 : i32 to vector<8x1xi32>
      %152 = arith.cmpi sgt, %4, %151 : vector<8x1xi32>
      %153 = vector.shape_cast %152 : vector<8x1xi1> to vector<8x1xi1>
      %154 = vector.broadcast %153 : vector<8x1xi1> to vector<8x32xi1>
      %155 = arith.select %154, %142, %108 : vector<8x32xi1>, vector<8x32xf32>
      %156 = vector.shape_cast %152 : vector<8x1xi1> to vector<8x1xi1>
      %157 = vector.broadcast %156 : vector<8x1xi1> to vector<8x16xi1>
      %158 = arith.select %157, %150, %111 : vector<8x16xi1>, vector<8x16xf32>
      %cst_59 = arith.constant 0.000000e+00 : f32
      %159 = vector.broadcast %cst_59 : f32 to vector<8x16xf32>
      %160 = vector.shape_cast %152 : vector<8x1xi1> to vector<8x1xi1>
      %161 = vector.broadcast %160 : vector<8x1xi1> to vector<8x16xi1>
      %162 = arith.select %161, %150, %159 : vector<8x16xi1>, vector<8x16xf32>
      %c2 = arith.constant 2 : index
      %c0_60 = arith.constant 0 : index
      %c0_61 = arith.constant 0 : index
      %163 = vector.load %arg10[%c2, %c0_60, %c0_61] : memref<8x8x16xf32, #tpu.memory_space<vmem>>, vector<1x8x16xf32>
      %164 = vector.shape_cast %163 : vector<1x8x16xf32> to vector<8x16xf32>
      %165 = vector.shape_cast %162 : vector<8x16xf32> to vector<1x8x16xf32>
      tpu.vector_store %arg10[%c2, %c0_60, %c0_61], %165 {strides = array<i32>} : memref<8x8x16xf32, #tpu.memory_space<vmem>>, vector<1x8x16xf32>,
      %c3_i32 = arith.constant 3 : i32
      %166 = arith.addi %0, %c3_i32 : i32
      %167 = vector.extract_strided_slice %22 {offsets = [3, 0, 0], sizes = [1, 8, 128], strides = [1, 1, 1]} : vector<8x8x128xf32> to vector<1x8x128xf32>
      %168 = vector.shape_cast %167 : vector<1x8x128xf32> to vector<8x128xf32>
      %c0_62 = arith.constant 0 : index
      %c0_63 = arith.constant 0 : index
      %169 = vector.load %arg7[%c0_62, %c0_63] : memref<16x128xf32, #tpu.memory_space<vmem>>, vector<16x128xf32>
      %cst_64 = arith.constant dense<0.000000e+00> : vector<8x128xf32>
      %170 = tpu.matmul %158, %169, %cst_64 {dimension_numbers = #tpu.dot_dimension_numbers<[1], [0], [0], [1], [0, 0, 1, 1], [], []>} : vector<8x16xf32>, vector<16x128xf32>, vector<8x128xf32> -> vector<8x128xf32>
      %171 = arith.addf %168, %170 : vector<8x128xf32>
      %172 = vector.extract_strided_slice %171 {offsets = [0, 0], sizes = [8, 96], strides = [1, 1]} : vector<8x128xf32> to vector<8x96xf32>
      %173 = arith.negf %172 : vector<8x96xf32>
      %174 = math.exp %173 : vector<8x96xf32>
      %cst_65 = arith.constant 1.000000e+00 : f32
      %175 = vector.broadcast %cst_65 : f32 to vector<8x96xf32>
      %176 = arith.addf %175, %174 : vector<8x96xf32>
      %177 = arith.divf %175, %176 : vector<8x96xf32>
      %178 = vector.extract_strided_slice %177 {offsets = [0, 0], sizes = [8, 32], strides = [1, 1]} : vector<8x96xf32> to vector<8x32xf32>
      %179 = vector.extract_strided_slice %177 {offsets = [0, 32], sizes = [8, 32], strides = [1, 1]} : vector<8x96xf32> to vector<8x32xf32>
      %180 = vector.extract_strided_slice %177 {offsets = [0, 64], sizes = [8, 32], strides = [1, 1]} : vector<8x96xf32> to vector<8x32xf32>
      %181 = vector.extract_strided_slice %171 {offsets = [0, 96], sizes = [8, 32], strides = [1, 1]} : vector<8x128xf32> to vector<8x32xf32>
      %182 = math.tanh %181 : vector<8x32xf32>
      %183 = arith.mulf %178, %182 : vector<8x32xf32>
      %184 = arith.mulf %179, %155 : vector<8x32xf32>
      %185 = arith.addf %183, %184 : vector<8x32xf32>
      %cst_66 = arith.constant -3.000000e+00 : f32
      %cst_67 = arith.constant 3.000000e+00 : f32
      %186 = vector.broadcast %cst_66 : f32 to vector<8x32xf32>
      %187 = arith.maximumf %186, %185 : vector<8x32xf32>
      %188 = vector.broadcast %cst_67 : f32 to vector<8x32xf32>
      %189 = arith.minimumf %188, %187 : vector<8x32xf32>
      %190 = math.tanh %189 : vector<8x32xf32>
      %191 = arith.mulf %180, %190 : vector<8x32xf32>
      %c0_68 = arith.constant 0 : index
      %c0_69 = arith.constant 0 : index
      %192 = vector.load %arg9[%c0_68, %c0_69] : memref<32x16xf32, #tpu.memory_space<vmem>>, vector<32x16xf32>
      %cst_70 = arith.constant dense<0.000000e+00> : vector<8x16xf32>
      %193 = tpu.matmul %191, %192, %cst_70 {dimension_numbers = #tpu.dot_dimension_numbers<[1], [0], [0], [1], [0, 0, 1, 1], [], []>} : vector<8x32xf32>, vector<32x16xf32>, vector<8x16xf32> -> vector<8x16xf32>
      %cst_71 = arith.constant -3.000000e+00 : f32
      %cst_72 = arith.constant 3.000000e+00 : f32
      %194 = vector.broadcast %cst_71 : f32 to vector<8x16xf32>
      %195 = arith.maximumf %194, %193 : vector<8x16xf32>
      %196 = vector.broadcast %cst_72 : f32 to vector<8x16xf32>
      %197 = arith.minimumf %196, %195 : vector<8x16xf32>
      %198 = vector.broadcast %166 : i32 to vector<8x1xi32>
      %199 = arith.cmpi sgt, %4, %198 : vector<8x1xi32>
      %200 = vector.shape_cast %199 : vector<8x1xi1> to vector<8x1xi1>
      %201 = vector.broadcast %200 : vector<8x1xi1> to vector<8x32xi1>
      %202 = arith.select %201, %189, %155 : vector<8x32xi1>, vector<8x32xf32>
      %203 = vector.shape_cast %199 : vector<8x1xi1> to vector<8x1xi1>
      %204 = vector.broadcast %203 : vector<8x1xi1> to vector<8x16xi1>
      %205 = arith.select %204, %197, %158 : vector<8x16xi1>, vector<8x16xf32>
      %cst_73 = arith.constant 0.000000e+00 : f32
      %206 = vector.broadcast %cst_73 : f32 to vector<8x16xf32>
      %207 = vector.shape_cast %199 : vector<8x1xi1> to vector<8x1xi1>
      %208 = vector.broadcast %207 : vector<8x1xi1> to vector<8x16xi1>
      %209 = arith.select %208, %197, %206 : vector<8x16xi1>, vector<8x16xf32>
      %c3 = arith.constant 3 : index
      %c0_74 = arith.constant 0 : index
      %c0_75 = arith.constant 0 : index
      %210 = vector.load %arg10[%c3, %c0_74, %c0_75] : memref<8x8x16xf32, #tpu.memory_space<vmem>>, vector<1x8x16xf32>
      %211 = vector.shape_cast %210 : vector<1x8x16xf32> to vector<8x16xf32>
      %212 = vector.shape_cast %209 : vector<8x16xf32> to vector<1x8x16xf32>
      tpu.vector_store %arg10[%c3, %c0_74, %c0_75], %212 {strides = array<i32>} : memref<8x8x16xf32, #tpu.memory_space<vmem>>, vector<1x8x16xf32>,
      %c4_i32 = arith.constant 4 : i32
      %213 = arith.addi %0, %c4_i32 : i32
      %214 = vector.extract_strided_slice %22 {offsets = [4, 0, 0], sizes = [1, 8, 128], strides = [1, 1, 1]} : vector<8x8x128xf32> to vector<1x8x128xf32>
      %215 = vector.shape_cast %214 : vector<1x8x128xf32> to vector<8x128xf32>
      %c0_76 = arith.constant 0 : index
      %c0_77 = arith.constant 0 : index
      %216 = vector.load %arg7[%c0_76, %c0_77] : memref<16x128xf32, #tpu.memory_space<vmem>>, vector<16x128xf32>
      %cst_78 = arith.constant dense<0.000000e+00> : vector<8x128xf32>
      %217 = tpu.matmul %205, %216, %cst_78 {dimension_numbers = #tpu.dot_dimension_numbers<[1], [0], [0], [1], [0, 0, 1, 1], [], []>} : vector<8x16xf32>, vector<16x128xf32>, vector<8x128xf32> -> vector<8x128xf32>
      %218 = arith.addf %215, %217 : vector<8x128xf32>
      %219 = vector.extract_strided_slice %218 {offsets = [0, 0], sizes = [8, 96], strides = [1, 1]} : vector<8x128xf32> to vector<8x96xf32>
      %220 = arith.negf %219 : vector<8x96xf32>
      %221 = math.exp %220 : vector<8x96xf32>
      %cst_79 = arith.constant 1.000000e+00 : f32
      %222 = vector.broadcast %cst_79 : f32 to vector<8x96xf32>
      %223 = arith.addf %222, %221 : vector<8x96xf32>
      %224 = arith.divf %222, %223 : vector<8x96xf32>
      %225 = vector.extract_strided_slice %224 {offsets = [0, 0], sizes = [8, 32], strides = [1, 1]} : vector<8x96xf32> to vector<8x32xf32>
      %226 = vector.extract_strided_slice %224 {offsets = [0, 32], sizes = [8, 32], strides = [1, 1]} : vector<8x96xf32> to vector<8x32xf32>
      %227 = vector.extract_strided_slice %224 {offsets = [0, 64], sizes = [8, 32], strides = [1, 1]} : vector<8x96xf32> to vector<8x32xf32>
      %228 = vector.extract_strided_slice %218 {offsets = [0, 96], sizes = [8, 32], strides = [1, 1]} : vector<8x128xf32> to vector<8x32xf32>
      %229 = math.tanh %228 : vector<8x32xf32>
      %230 = arith.mulf %225, %229 : vector<8x32xf32>
      %231 = arith.mulf %226, %202 : vector<8x32xf32>
      %232 = arith.addf %230, %231 : vector<8x32xf32>
      %cst_80 = arith.constant -3.000000e+00 : f32
      %cst_81 = arith.constant 3.000000e+00 : f32
      %233 = vector.broadcast %cst_80 : f32 to vector<8x32xf32>
      %234 = arith.maximumf %233, %232 : vector<8x32xf32>
      %235 = vector.broadcast %cst_81 : f32 to vector<8x32xf32>
      %236 = arith.minimumf %235, %234 : vector<8x32xf32>
      %237 = math.tanh %236 : vector<8x32xf32>
      %238 = arith.mulf %227, %237 : vector<8x32xf32>
      %c0_82 = arith.constant 0 : index
      %c0_83 = arith.constant 0 : index
      %239 = vector.load %arg9[%c0_82, %c0_83] : memref<32x16xf32, #tpu.memory_space<vmem>>, vector<32x16xf32>
      %cst_84 = arith.constant dense<0.000000e+00> : vector<8x16xf32>
      %240 = tpu.matmul %238, %239, %cst_84 {dimension_numbers = #tpu.dot_dimension_numbers<[1], [0], [0], [1], [0, 0, 1, 1], [], []>} : vector<8x32xf32>, vector<32x16xf32>, vector<8x16xf32> -> vector<8x16xf32>
      %cst_85 = arith.constant -3.000000e+00 : f32
      %cst_86 = arith.constant 3.000000e+00 : f32
      %241 = vector.broadcast %cst_85 : f32 to vector<8x16xf32>
      %242 = arith.maximumf %241, %240 : vector<8x16xf32>
      %243 = vector.broadcast %cst_86 : f32 to vector<8x16xf32>
      %244 = arith.minimumf %243, %242 : vector<8x16xf32>
      %245 = vector.broadcast %213 : i32 to vector<8x1xi32>
      %246 = arith.cmpi sgt, %4, %245 : vector<8x1xi32>
      %247 = vector.shape_cast %246 : vector<8x1xi1> to vector<8x1xi1>
      %248 = vector.broadcast %247 : vector<8x1xi1> to vector<8x32xi1>
      %249 = arith.select %248, %236, %202 : vector<8x32xi1>, vector<8x32xf32>
      %250 = vector.shape_cast %246 : vector<8x1xi1> to vector<8x1xi1>
      %251 = vector.broadcast %250 : vector<8x1xi1> to vector<8x16xi1>
      %252 = arith.select %251, %244, %205 : vector<8x16xi1>, vector<8x16xf32>
      %cst_87 = arith.constant 0.000000e+00 : f32
      %253 = vector.broadcast %cst_87 : f32 to vector<8x16xf32>
      %254 = vector.shape_cast %246 : vector<8x1xi1> to vector<8x1xi1>
      %255 = vector.broadcast %254 : vector<8x1xi1> to vector<8x16xi1>
      %256 = arith.select %255, %244, %253 : vector<8x16xi1>, vector<8x16xf32>
      %c4 = arith.constant 4 : index
      %c0_88 = arith.constant 0 : index
      %c0_89 = arith.constant 0 : index
      %257 = vector.load %arg10[%c4, %c0_88, %c0_89] : memref<8x8x16xf32, #tpu.memory_space<vmem>>, vector<1x8x16xf32>
      %258 = vector.shape_cast %257 : vector<1x8x16xf32> to vector<8x16xf32>
      %259 = vector.shape_cast %256 : vector<8x16xf32> to vector<1x8x16xf32>
      tpu.vector_store %arg10[%c4, %c0_88, %c0_89], %259 {strides = array<i32>} : memref<8x8x16xf32, #tpu.memory_space<vmem>>, vector<1x8x16xf32>,
      %c5_i32 = arith.constant 5 : i32
      %260 = arith.addi %0, %c5_i32 : i32
      %261 = vector.extract_strided_slice %22 {offsets = [5, 0, 0], sizes = [1, 8, 128], strides = [1, 1, 1]} : vector<8x8x128xf32> to vector<1x8x128xf32>
      %262 = vector.shape_cast %261 : vector<1x8x128xf32> to vector<8x128xf32>
      %c0_90 = arith.constant 0 : index
      %c0_91 = arith.constant 0 : index
      %263 = vector.load %arg7[%c0_90, %c0_91] : memref<16x128xf32, #tpu.memory_space<vmem>>, vector<16x128xf32>
      %cst_92 = arith.constant dense<0.000000e+00> : vector<8x128xf32>
      %264 = tpu.matmul %252, %263, %cst_92 {dimension_numbers = #tpu.dot_dimension_numbers<[1], [0], [0], [1], [0, 0, 1, 1], [], []>} : vector<8x16xf32>, vector<16x128xf32>, vector<8x128xf32> -> vector<8x128xf32>
      %265 = arith.addf %262, %264 : vector<8x128xf32>
      %266 = vector.extract_strided_slice %265 {offsets = [0, 0], sizes = [8, 96], strides = [1, 1]} : vector<8x128xf32> to vector<8x96xf32>
      %267 = arith.negf %266 : vector<8x96xf32>
      %268 = math.exp %267 : vector<8x96xf32>
      %cst_93 = arith.constant 1.000000e+00 : f32
      %269 = vector.broadcast %cst_93 : f32 to vector<8x96xf32>
      %270 = arith.addf %269, %268 : vector<8x96xf32>
      %271 = arith.divf %269, %270 : vector<8x96xf32>
      %272 = vector.extract_strided_slice %271 {offsets = [0, 0], sizes = [8, 32], strides = [1, 1]} : vector<8x96xf32> to vector<8x32xf32>
      %273 = vector.extract_strided_slice %271 {offsets = [0, 32], sizes = [8, 32], strides = [1, 1]} : vector<8x96xf32> to vector<8x32xf32>
      %274 = vector.extract_strided_slice %271 {offsets = [0, 64], sizes = [8, 32], strides = [1, 1]} : vector<8x96xf32> to vector<8x32xf32>
      %275 = vector.extract_strided_slice %265 {offsets = [0, 96], sizes = [8, 32], strides = [1, 1]} : vector<8x128xf32> to vector<8x32xf32>
      %276 = math.tanh %275 : vector<8x32xf32>
      %277 = arith.mulf %272, %276 : vector<8x32xf32>
      %278 = arith.mulf %273, %249 : vector<8x32xf32>
      %279 = arith.addf %277, %278 : vector<8x32xf32>
      %cst_94 = arith.constant -3.000000e+00 : f32
      %cst_95 = arith.constant 3.000000e+00 : f32
      %280 = vector.broadcast %cst_94 : f32 to vector<8x32xf32>
      %281 = arith.maximumf %280, %279 : vector<8x32xf32>
      %282 = vector.broadcast %cst_95 : f32 to vector<8x32xf32>
      %283 = arith.minimumf %282, %281 : vector<8x32xf32>
      %284 = math.tanh %283 : vector<8x32xf32>
      %285 = arith.mulf %274, %284 : vector<8x32xf32>
      %c0_96 = arith.constant 0 : index
      %c0_97 = arith.constant 0 : index
      %286 = vector.load %arg9[%c0_96, %c0_97] : memref<32x16xf32, #tpu.memory_space<vmem>>, vector<32x16xf32>
      %cst_98 = arith.constant dense<0.000000e+00> : vector<8x16xf32>
      %287 = tpu.matmul %285, %286, %cst_98 {dimension_numbers = #tpu.dot_dimension_numbers<[1], [0], [0], [1], [0, 0, 1, 1], [], []>} : vector<8x32xf32>, vector<32x16xf32>, vector<8x16xf32> -> vector<8x16xf32>
      %cst_99 = arith.constant -3.000000e+00 : f32
      %cst_100 = arith.constant 3.000000e+00 : f32
      %288 = vector.broadcast %cst_99 : f32 to vector<8x16xf32>
      %289 = arith.maximumf %288, %287 : vector<8x16xf32>
      %290 = vector.broadcast %cst_100 : f32 to vector<8x16xf32>
      %291 = arith.minimumf %290, %289 : vector<8x16xf32>
      %292 = vector.broadcast %260 : i32 to vector<8x1xi32>
      %293 = arith.cmpi sgt, %4, %292 : vector<8x1xi32>
      %294 = vector.shape_cast %293 : vector<8x1xi1> to vector<8x1xi1>
      %295 = vector.broadcast %294 : vector<8x1xi1> to vector<8x32xi1>
      %296 = arith.select %295, %283, %249 : vector<8x32xi1>, vector<8x32xf32>
      %297 = vector.shape_cast %293 : vector<8x1xi1> to vector<8x1xi1>
      %298 = vector.broadcast %297 : vector<8x1xi1> to vector<8x16xi1>
      %299 = arith.select %298, %291, %252 : vector<8x16xi1>, vector<8x16xf32>
      %cst_101 = arith.constant 0.000000e+00 : f32
      %300 = vector.broadcast %cst_101 : f32 to vector<8x16xf32>
      %301 = vector.shape_cast %293 : vector<8x1xi1> to vector<8x1xi1>
      %302 = vector.broadcast %301 : vector<8x1xi1> to vector<8x16xi1>
      %303 = arith.select %302, %291, %300 : vector<8x16xi1>, vector<8x16xf32>
      %c5 = arith.constant 5 : index
      %c0_102 = arith.constant 0 : index
      %c0_103 = arith.constant 0 : index
      %304 = vector.load %arg10[%c5, %c0_102, %c0_103] : memref<8x8x16xf32, #tpu.memory_space<vmem>>, vector<1x8x16xf32>
      %305 = vector.shape_cast %304 : vector<1x8x16xf32> to vector<8x16xf32>
      %306 = vector.shape_cast %303 : vector<8x16xf32> to vector<1x8x16xf32>
      tpu.vector_store %arg10[%c5, %c0_102, %c0_103], %306 {strides = array<i32>} : memref<8x8x16xf32, #tpu.memory_space<vmem>>, vector<1x8x16xf32>,
      %c6_i32 = arith.constant 6 : i32
      %307 = arith.addi %0, %c6_i32 : i32
      %308 = vector.extract_strided_slice %22 {offsets = [6, 0, 0], sizes = [1, 8, 128], strides = [1, 1, 1]} : vector<8x8x128xf32> to vector<1x8x128xf32>
      %309 = vector.shape_cast %308 : vector<1x8x128xf32> to vector<8x128xf32>
      %c0_104 = arith.constant 0 : index
      %c0_105 = arith.constant 0 : index
      %310 = vector.load %arg7[%c0_104, %c0_105] : memref<16x128xf32, #tpu.memory_space<vmem>>, vector<16x128xf32>
      %cst_106 = arith.constant dense<0.000000e+00> : vector<8x128xf32>
      %311 = tpu.matmul %299, %310, %cst_106 {dimension_numbers = #tpu.dot_dimension_numbers<[1], [0], [0], [1], [0, 0, 1, 1], [], []>} : vector<8x16xf32>, vector<16x128xf32>, vector<8x128xf32> -> vector<8x128xf32>
      %312 = arith.addf %309, %311 : vector<8x128xf32>
      %313 = vector.extract_strided_slice %312 {offsets = [0, 0], sizes = [8, 96], strides = [1, 1]} : vector<8x128xf32> to vector<8x96xf32>
      %314 = arith.negf %313 : vector<8x96xf32>
      %315 = math.exp %314 : vector<8x96xf32>
      %cst_107 = arith.constant 1.000000e+00 : f32
      %316 = vector.broadcast %cst_107 : f32 to vector<8x96xf32>
      %317 = arith.addf %316, %315 : vector<8x96xf32>
      %318 = arith.divf %316, %317 : vector<8x96xf32>
      %319 = vector.extract_strided_slice %318 {offsets = [0, 0], sizes = [8, 32], strides = [1, 1]} : vector<8x96xf32> to vector<8x32xf32>
      %320 = vector.extract_strided_slice %318 {offsets = [0, 32], sizes = [8, 32], strides = [1, 1]} : vector<8x96xf32> to vector<8x32xf32>
      %321 = vector.extract_strided_slice %318 {offsets = [0, 64], sizes = [8, 32], strides = [1, 1]} : vector<8x96xf32> to vector<8x32xf32>
      %322 = vector.extract_strided_slice %312 {offsets = [0, 96], sizes = [8, 32], strides = [1, 1]} : vector<8x128xf32> to vector<8x32xf32>
      %323 = math.tanh %322 : vector<8x32xf32>
      %324 = arith.mulf %319, %323 : vector<8x32xf32>
      %325 = arith.mulf %320, %296 : vector<8x32xf32>
      %326 = arith.addf %324, %325 : vector<8x32xf32>
      %cst_108 = arith.constant -3.000000e+00 : f32
      %cst_109 = arith.constant 3.000000e+00 : f32
      %327 = vector.broadcast %cst_108 : f32 to vector<8x32xf32>
      %328 = arith.maximumf %327, %326 : vector<8x32xf32>
      %329 = vector.broadcast %cst_109 : f32 to vector<8x32xf32>
      %330 = arith.minimumf %329, %328 : vector<8x32xf32>
      %331 = math.tanh %330 : vector<8x32xf32>
      %332 = arith.mulf %321, %331 : vector<8x32xf32>
      %c0_110 = arith.constant 0 : index
      %c0_111 = arith.constant 0 : index
      %333 = vector.load %arg9[%c0_110, %c0_111] : memref<32x16xf32, #tpu.memory_space<vmem>>, vector<32x16xf32>
      %cst_112 = arith.constant dense<0.000000e+00> : vector<8x16xf32>
      %334 = tpu.matmul %332, %333, %cst_112 {dimension_numbers = #tpu.dot_dimension_numbers<[1], [0], [0], [1], [0, 0, 1, 1], [], []>} : vector<8x32xf32>, vector<32x16xf32>, vector<8x16xf32> -> vector<8x16xf32>
      %cst_113 = arith.constant -3.000000e+00 : f32
      %cst_114 = arith.constant 3.000000e+00 : f32
      %335 = vector.broadcast %cst_113 : f32 to vector<8x16xf32>
      %336 = arith.maximumf %335, %334 : vector<8x16xf32>
      %337 = vector.broadcast %cst_114 : f32 to vector<8x16xf32>
      %338 = arith.minimumf %337, %336 : vector<8x16xf32>
      %339 = vector.broadcast %307 : i32 to vector<8x1xi32>
      %340 = arith.cmpi sgt, %4, %339 : vector<8x1xi32>
      %341 = vector.shape_cast %340 : vector<8x1xi1> to vector<8x1xi1>
      %342 = vector.broadcast %341 : vector<8x1xi1> to vector<8x32xi1>
      %343 = arith.select %342, %330, %296 : vector<8x32xi1>, vector<8x32xf32>
      %344 = vector.shape_cast %340 : vector<8x1xi1> to vector<8x1xi1>
      %345 = vector.broadcast %344 : vector<8x1xi1> to vector<8x16xi1>
      %346 = arith.select %345, %338, %299 : vector<8x16xi1>, vector<8x16xf32>
      %cst_115 = arith.constant 0.000000e+00 : f32
      %347 = vector.broadcast %cst_115 : f32 to vector<8x16xf32>
      %348 = vector.shape_cast %340 : vector<8x1xi1> to vector<8x1xi1>
      %349 = vector.broadcast %348 : vector<8x1xi1> to vector<8x16xi1>
      %350 = arith.select %349, %338, %347 : vector<8x16xi1>, vector<8x16xf32>
      %c6 = arith.constant 6 : index
      %c0_116 = arith.constant 0 : index
      %c0_117 = arith.constant 0 : index
      %351 = vector.load %arg10[%c6, %c0_116, %c0_117] : memref<8x8x16xf32, #tpu.memory_space<vmem>>, vector<1x8x16xf32>
      %352 = vector.shape_cast %351 : vector<1x8x16xf32> to vector<8x16xf32>
      %353 = vector.shape_cast %350 : vector<8x16xf32> to vector<1x8x16xf32>
      tpu.vector_store %arg10[%c6, %c0_116, %c0_117], %353 {strides = array<i32>} : memref<8x8x16xf32, #tpu.memory_space<vmem>>, vector<1x8x16xf32>,
      %c7_i32 = arith.constant 7 : i32
      %354 = arith.addi %0, %c7_i32 : i32
      %355 = vector.extract_strided_slice %22 {offsets = [7, 0, 0], sizes = [1, 8, 128], strides = [1, 1, 1]} : vector<8x8x128xf32> to vector<1x8x128xf32>
      %356 = vector.shape_cast %355 : vector<1x8x128xf32> to vector<8x128xf32>
      %c0_118 = arith.constant 0 : index
      %c0_119 = arith.constant 0 : index
      %357 = vector.load %arg7[%c0_118, %c0_119] : memref<16x128xf32, #tpu.memory_space<vmem>>, vector<16x128xf32>
      %cst_120 = arith.constant dense<0.000000e+00> : vector<8x128xf32>
      %358 = tpu.matmul %346, %357, %cst_120 {dimension_numbers = #tpu.dot_dimension_numbers<[1], [0], [0], [1], [0, 0, 1, 1], [], []>} : vector<8x16xf32>, vector<16x128xf32>, vector<8x128xf32> -> vector<8x128xf32>
      %359 = arith.addf %356, %358 : vector<8x128xf32>
      %360 = vector.extract_strided_slice %359 {offsets = [0, 0], sizes = [8, 96], strides = [1, 1]} : vector<8x128xf32> to vector<8x96xf32>
      %361 = arith.negf %360 : vector<8x96xf32>
      %362 = math.exp %361 : vector<8x96xf32>
      %cst_121 = arith.constant 1.000000e+00 : f32
      %363 = vector.broadcast %cst_121 : f32 to vector<8x96xf32>
      %364 = arith.addf %363, %362 : vector<8x96xf32>
      %365 = arith.divf %363, %364 : vector<8x96xf32>
      %366 = vector.extract_strided_slice %365 {offsets = [0, 0], sizes = [8, 32], strides = [1, 1]} : vector<8x96xf32> to vector<8x32xf32>
      %367 = vector.extract_strided_slice %365 {offsets = [0, 32], sizes = [8, 32], strides = [1, 1]} : vector<8x96xf32> to vector<8x32xf32>
      %368 = vector.extract_strided_slice %365 {offsets = [0, 64], sizes = [8, 32], strides = [1, 1]} : vector<8x96xf32> to vector<8x32xf32>
      %369 = vector.extract_strided_slice %359 {offsets = [0, 96], sizes = [8, 32], strides = [1, 1]} : vector<8x128xf32> to vector<8x32xf32>
      %370 = math.tanh %369 : vector<8x32xf32>
      %371 = arith.mulf %366, %370 : vector<8x32xf32>
      %372 = arith.mulf %367, %343 : vector<8x32xf32>
      %373 = arith.addf %371, %372 : vector<8x32xf32>
      %cst_122 = arith.constant -3.000000e+00 : f32
      %cst_123 = arith.constant 3.000000e+00 : f32
      %374 = vector.broadcast %cst_122 : f32 to vector<8x32xf32>
      %375 = arith.maximumf %374, %373 : vector<8x32xf32>
      %376 = vector.broadcast %cst_123 : f32 to vector<8x32xf32>
      %377 = arith.minimumf %376, %375 : vector<8x32xf32>
      %378 = math.tanh %377 : vector<8x32xf32>
      %379 = arith.mulf %368, %378 : vector<8x32xf32>
      %c0_124 = arith.constant 0 : index
      %c0_125 = arith.constant 0 : index
      %380 = vector.load %arg9[%c0_124, %c0_125] : memref<32x16xf32, #tpu.memory_space<vmem>>, vector<32x16xf32>
      %cst_126 = arith.constant dense<0.000000e+00> : vector<8x16xf32>
      %381 = tpu.matmul %379, %380, %cst_126 {dimension_numbers = #tpu.dot_dimension_numbers<[1], [0], [0], [1], [0, 0, 1, 1], [], []>} : vector<8x32xf32>, vector<32x16xf32>, vector<8x16xf32> -> vector<8x16xf32>
      %cst_127 = arith.constant -3.000000e+00 : f32
      %cst_128 = arith.constant 3.000000e+00 : f32
      %382 = vector.broadcast %cst_127 : f32 to vector<8x16xf32>
      %383 = arith.maximumf %382, %381 : vector<8x16xf32>
      %384 = vector.broadcast %cst_128 : f32 to vector<8x16xf32>
      %385 = arith.minimumf %384, %383 : vector<8x16xf32>
      %386 = vector.broadcast %354 : i32 to vector<8x1xi32>
      %387 = arith.cmpi sgt, %4, %386 : vector<8x1xi32>
      %388 = vector.shape_cast %387 : vector<8x1xi1> to vector<8x1xi1>
      %389 = vector.broadcast %388 : vector<8x1xi1> to vector<8x32xi1>
      %390 = arith.select %389, %377, %343 : vector<8x32xi1>, vector<8x32xf32>
      %391 = vector.shape_cast %387 : vector<8x1xi1> to vector<8x1xi1>
      %392 = vector.broadcast %391 : vector<8x1xi1> to vector<8x16xi1>
      %393 = arith.select %392, %385, %346 : vector<8x16xi1>, vector<8x16xf32>
      %cst_129 = arith.constant 0.000000e+00 : f32
      %394 = vector.broadcast %cst_129 : f32 to vector<8x16xf32>
      %395 = vector.shape_cast %387 : vector<8x1xi1> to vector<8x1xi1>
      %396 = vector.broadcast %395 : vector<8x1xi1> to vector<8x16xi1>
      %397 = arith.select %396, %385, %394 : vector<8x16xi1>, vector<8x16xf32>
      %c7 = arith.constant 7 : index
      %c0_130 = arith.constant 0 : index
      %c0_131 = arith.constant 0 : index
      %398 = vector.load %arg10[%c7, %c0_130, %c0_131] : memref<8x8x16xf32, #tpu.memory_space<vmem>>, vector<1x8x16xf32>
      %399 = vector.shape_cast %398 : vector<1x8x16xf32> to vector<8x16xf32>
      %400 = vector.shape_cast %397 : vector<8x16xf32> to vector<1x8x16xf32>
      tpu.vector_store %arg10[%c7, %c0_130, %c0_131], %400 {strides = array<i32>} : memref<8x8x16xf32, #tpu.memory_space<vmem>>, vector<1x8x16xf32>,
      %c0_132 = arith.constant 0 : index
      %c0_133 = arith.constant 0 : index
      %401 = vector.load %arg13[%c0_132, %c0_133] : memref<8x16xf32, #tpu.memory_space<vmem>>, vector<8x16xf32>
      tpu.vector_store %arg13[%c0_132, %c0_133], %393 {strides = array<i32>} : memref<8x16xf32, #tpu.memory_space<vmem>>, vector<8x16xf32>,
      %c0_134 = arith.constant 0 : index
      %c0_135 = arith.constant 0 : index
      %402 = vector.load %arg14[%c0_134, %c0_135] : memref<8x32xf32, #tpu.memory_space<vmem>>, vector<8x32xf32>
      tpu.vector_store %arg14[%c0_134, %c0_135], %390 {strides = array<i32>} : memref<8x32xf32, #tpu.memory_space<vmem>>, vector<8x32xf32>,
    } else {
    }
    %true = arith.constant true
    %9 = arith.xori %6, %true : i1
    %10 = arith.extui %9 : i1 to i32
    %c0_i32_4 = arith.constant 0 : i32
    %11 = arith.cmpi ne, %10, %c0_i32_4 : i32
    scf.if %11 {
      %cst = arith.constant 0.000000e+00 : f32
      %15 = vector.broadcast %cst : f32 to vector<8x8x16xf32>
      %c0_6 = arith.constant 0 : index
      %c0_7 = arith.constant 0 : index
      %c0_8 = arith.constant 0 : index
      %16 = vector.load %arg10[%c0_6, %c0_7, %c0_8] : memref<8x8x16xf32, #tpu.memory_space<vmem>>, vector<8x8x16xf32>
      tpu.vector_store %arg10[%c0_6, %c0_7, %c0_8], %15 {strides = array<i32>} : memref<8x8x16xf32, #tpu.memory_space<vmem>>, vector<8x8x16xf32>,
    } else {
    }
    %c1_i32 = arith.constant 1 : i32
    %12 = arith.cmpi eq, %arg0, %c1_i32 : i32
    %13 = arith.extui %12 : i1 to i32
    %c0_i32_5 = arith.constant 0 : i32
    %14 = arith.cmpi ne, %13, %c0_i32_5 : i32
    scf.if %14 {
      %c0_6 = arith.constant 0 : index
      %c0_7 = arith.constant 0 : index
      %15 = vector.load %arg13[%c0_6, %c0_7] : memref<8x16xf32, #tpu.memory_space<vmem>>, vector<8x16xf32>
      %c0_8 = arith.constant 0 : index
      %c0_9 = arith.constant 0 : index
      %16 = vector.load %arg11[%c0_8, %c0_9] : memref<8x16xf32, #tpu.memory_space<vmem>>, vector<8x16xf32>
      tpu.vector_store %arg11[%c0_8, %c0_9], %15 {strides = array<i32>} : memref<8x16xf32, #tpu.memory_space<vmem>>, vector<8x16xf32>,
      %c0_10 = arith.constant 0 : index
      %c0_11 = arith.constant 0 : index
      %17 = vector.load %arg14[%c0_10, %c0_11] : memref<8x32xf32, #tpu.memory_space<vmem>>, vector<8x32xf32>
      %c0_12 = arith.constant 0 : index
      %c0_13 = arith.constant 0 : index
      %18 = vector.load %arg12[%c0_12, %c0_13] : memref<8x32xf32, #tpu.memory_space<vmem>>, vector<8x32xf32>
      tpu.vector_store %arg12[%c0_12, %c0_13], %17 {strides = array<i32>} : memref<8x32xf32, #tpu.memory_space<vmem>>, vector<8x32xf32>,
    } else {
    }
    return
  }
  func.func @transform_0(%arg0: i32, %arg1: memref<1xi32, #tpu.memory_space<smem>>) -> (i32, i32) {
    %c0_i32 = arith.constant 0 : i32
    %c0_i32_0 = arith.constant 0 : i32
    %c0_i32_1 = arith.constant 0 : i32
    return %c0_i32, %c0_i32_0 : i32, i32
  }
  func.func @transform_1(%arg0: i32, %arg1: memref<1xi32, #tpu.memory_space<smem>>) -> (i32, i32, i32) {
    %c0_i32 = arith.constant 0 : i32
    %c0_i32_0 = arith.constant 0 : i32
    %c0_i32_1 = arith.constant 0 : i32
    return %arg0, %c0_i32, %c0_i32_0 : i32, i32, i32
  }
  func.func @transform_2(%arg0: i32, %arg1: memref<1xi32, #tpu.memory_space<smem>>) -> (i32, i32) {
    %c0_i32 = arith.constant 0 : i32
    %c0_i32_0 = arith.constant 0 : i32
    %c0_i32_1 = arith.constant 0 : i32
    return %c0_i32, %c0_i32_0 : i32, i32
  }
  func.func @transform_3(%arg0: i32, %arg1: memref<1xi32, #tpu.memory_space<smem>>) -> (i32, i32) {
    %c0_i32 = arith.constant 0 : i32
    %c0_i32_0 = arith.constant 0 : i32
    %c0_i32_1 = arith.constant 0 : i32
    return %c0_i32, %c0_i32_0 : i32, i32
  }
  func.func @transform_4(%arg0: i32, %arg1: memref<1xi32, #tpu.memory_space<smem>>) -> (i32, i32) {
    %c0_i32 = arith.constant 0 : i32
    %c0_i32_0 = arith.constant 0 : i32
    %c0_i32_1 = arith.constant 0 : i32
    return %c0_i32, %c0_i32_0 : i32, i32
  }
  func.func @transform_5(%arg0: i32, %arg1: memref<1xi32, #tpu.memory_space<smem>>) -> (i32, i32) {
    %c0_i32 = arith.constant 0 : i32
    %c0_i32_0 = arith.constant 0 : i32
    %c0_i32_1 = arith.constant 0 : i32
    return %c0_i32, %c0_i32_0 : i32, i32
  }
  func.func @transform_6(%arg0: i32, %arg1: memref<1xi32, #tpu.memory_space<smem>>) -> (i32, i32) {
    %c0_i32 = arith.constant 0 : i32
    %c0_i32_0 = arith.constant 0 : i32
    %c0_i32_1 = arith.constant 0 : i32
    return %c0_i32, %c0_i32_0 : i32, i32
  }
  func.func @transform_7(%arg0: i32, %arg1: memref<1xi32, #tpu.memory_space<smem>>) -> (i32, i32) {
    %c0_i32 = arith.constant 0 : i32
    %c0_i32_0 = arith.constant 0 : i32
    %c0_i32_1 = arith.constant 0 : i32
    return %c0_i32, %c0_i32_0 : i32, i32
  }
  func.func @transform_8(%arg0: i32, %arg1: memref<1xi32, #tpu.memory_space<smem>>) -> (i32, i32, i32) {
    %c0_i32 = arith.constant 0 : i32
    %c0_i32_0 = arith.constant 0 : i32
    %c0_i32_1 = arith.constant 0 : i32
    return %arg0, %c0_i32, %c0_i32_0 : i32, i32, i32
  }
  func.func @transform_9(%arg0: i32, %arg1: memref<1xi32, #tpu.memory_space<smem>>) -> (i32, i32) {
    %c0_i32 = arith.constant 0 : i32
    %c0_i32_0 = arith.constant 0 : i32
    %c0_i32_1 = arith.constant 0 : i32
    return %c0_i32, %c0_i32_0 : i32, i32
  }
  func.func @transform_10(%arg0: i32, %arg1: memref<1xi32, #tpu.memory_space<smem>>) -> (i32, i32) {
    %c0_i32 = arith.constant 0 : i32
    %c0_i32_0 = arith.constant 0 : i32
    %c0_i32_1 = arith.constant 0 : i32
    return %c0_i32, %c0_i32_0 : i32, i32
  }
}

</mosaic_0001>

<llo_original>
// kernel: tpu_custom_call.1
$region0: #{tpu_custom_call.1}
  #allocation0 [shape = 'u32[]', space=smem, size = 0x4, offset = 0x4, fixed_abs, tag = 'smem constant byte address 0x4 - core index']
  #allocation1 [shape = 'u32[144,128]{1,0:T(1,128)}', space=vmem, size = 0x12000, scoped, tag = 'internal scratch']
  #allocation2 [shape = 'f32[8,16]{1,0:T(8,128)}', space=vmem, size = 0x1000, scoped, tag = 'scratch operand']
  #allocation3 [shape = 'f32[8,32]{1,0:T(8,128)}', space=vmem, size = 0x1000, scoped, tag = 'scratch operand']
  #allocation4 [shape = 's32[1]{0}', space=sflag, size = 0x4, scoped, tag = 'scoped memory for tpu_custom_call.1']
  #allocation5 [shape = 's32[1]{0:T(128)S(6)}', space=smem, size = 0x200, scoped, tag = 'prefetched SMEM operand 0']
  %s0 = inlined_call_operand.<no memory space> [shape: s32[1], index: 0, kind: input, shape index: {}]
  %s1 = inlined_call_operand.vmem [shape: s32[8,1], index: 1, kind: input, shape index: {}]
  %s2 = inlined_call_operand.hbm [shape: f32[16,8,32], index: 2, kind: input, shape index: {}]
  %s3 = inlined_call_operand.hbm [shape: f32[8,16], index: 3, kind: input, shape index: {}]
  %s4 = inlined_call_operand.hbm [shape: f32[8,32], index: 4, kind: input, shape index: {}]
  %s5 = inlined_call_operand.vmem [shape: f32[32,128], index: 5, kind: input, shape index: {}]
  %s6 = inlined_call_operand.vmem [shape: f32[16,128], index: 6, kind: input, shape index: {}]
  %s7 = inlined_call_operand.vmem [shape: f32[1,128], index: 7, kind: input, shape index: {}]
  %s8 = inlined_call_operand.vmem [shape: f32[32,16], index: 8, kind: input, shape index: {}]
  %s9 = inlined_call_operand.hbm [shape: f32[16,8,16], index: 9, kind: output, shape index: {0}]
  %s10 = inlined_call_operand.hbm [shape: f32[8,16], index: 10, kind: output, shape index: {1}]
  %s11 = inlined_call_operand.hbm [shape: f32[8,32], index: 11, kind: output, shape index: {2}]
  %12 = xla_tuple %s9, %s10, %s11
  %s13 = sld [smem:[#allocation0]]
  $region109: #{tpu_custom_call.1} parent=0
    _
  %s15 = ssub.s32 1, %s13
  %s16 = scalar_select 0, %s15, %s13
  %17 = sst [smem:[#allocation5]] %s0
  $region1: #{tpu_custom_call.1} parent=0
    #allocation6 [shape = 'u8[65536]{0}', space=vmem, size = 0x10000, scoped, tag = 'input window, operand 2']
    #allocation7 [shape = 's32[2]{0}', space=sflag, size = 0x8, scoped, tag = 'scoped memory for tpu_custom_call.1']
    #allocation8 [shape = 's32[2]{0}', space=sflag, size = 0x8, scoped, tag = 'scoped memory for tpu_custom_call.1']
    #allocation9 [shape = 'u8[4096]{0}', space=vmem, size = 0x1000, scoped, tag = 'input window, operand 3, single buffered']
    #allocation10 [shape = 's32[1]{0}', space=sflag, size = 0x4, scoped, tag = 'scoped memory for tpu_custom_call.1']
    #allocation11 [shape = 'u8[4096]{0}', space=vmem, size = 0x1000, scoped, tag = 'input window, operand 4, single buffered']
    #allocation12 [shape = 'u8[65536]{0}', space=vmem, size = 0x10000, scoped, tag = 'output window, operand 0']
    #allocation13 [shape = 'u8[4096]{0}', space=vmem, size = 0x1000, scoped, tag = 'output window, operand 1, single buffered']
    #allocation14 [shape = 's32[1]{0}', space=sflag, size = 0x4, scoped, tag = 'scoped memory for tpu_custom_call.1']
    #allocation15 [shape = 'u8[4096]{0}', space=vmem, size = 0x1000, scoped, tag = 'output window, operand 2, single buffered']
    %18 = vsyncpa [#allocation7], 0
    %s19 = scalar_lea.sflag [#allocation7], 1
    %20 = vsyncpa %s19, 0
    %21 = vsyncpa [#allocation10], 0
    %22 = vsyncpa [#allocation8], 0
    %s23 = scalar_lea.sflag [#allocation8], 1
    %24 = vsyncpa %s23, 0
    %25 = vsyncpa [#allocation14], 0
    loop: start=0, step=1, limit=4
    $region2: #{tpu_custom_call.1} parent=1 // loop_pre_header
      _
    $region3: #{tpu_custom_call.1} parent=1 // loop_header
      %s27 = sphi 0, %s31
      %p28 = scmp.ge.s32.totalorder %s27, 4
      %s35 = sphi 0, %s35
      %s37 = sphi 0, %s35
      %s38 = sphi 0, %s37
      %s52 = sphi 0, %s38
      %s58 = sphi 0, %s60
      %s61 = sphi 0, %s58
      %s62 = sphi 0, %s61
      %s78 = sphi 0, %s62
      %s82 = sphi 0, %s82
      %s84 = sphi 0, %s82
      %s85 = sphi 0, %s84
      %s99 = sphi 0, %s85
      %s103 = sphi 0, %s103
      %s105 = sphi 0, %s103
      %s106 = sphi 0, %s105
      %s120 = sphi 0, %s106
      %s124 = sphi 0, %s124
      %s126 = sphi 0, %s124
      %s127 = sphi 0, %s126
      %s141 = sphi 0, %s127
      %s145 = sphi 0, %s145
      %s147 = sphi 0, %s145
      %s148 = sphi 0, %s147
      %s162 = sphi 0, %s148
      %s166 = sphi 0, %s166
      %s168 = sphi 0, %s166
      %s169 = sphi 0, %s168
      %s183 = sphi 0, %s169
      %s187 = sphi 0, %s187
      %s189 = sphi 0, %s187
      %s190 = sphi 0, %s189
      %s204 = sphi 0, %s190
      %s210 = sphi 0, %s212
      %s213 = sphi 0, %s210
      %s214 = sphi 0, %s213
      %s230 = sphi 0, %s214
      %s234 = sphi 0, %s234
      %s236 = sphi 0, %s234
      %s237 = sphi 0, %s236
      %s251 = sphi 0, %s237
      %s255 = sphi 0, %s255
      %s257 = sphi 0, %s255
      %s258 = sphi 0, %s257
      %s272 = sphi 0, %s258
    $region4: #{tpu_custom_call.1} parent=1 // loop_header_branch
      %30 = sbr.rel (%p28) target = $region8
    $region5: #{tpu_custom_call.1} parent=1 // loop_body
      %s32 = ssub.s32 %s27, 1
      %s33 = ssub.s32 %s27, 2
      %s34 = sadd.s32 %s27, 1
      %s36 = sadd.s32 %s35, 1
      %p39 = scmp.eq.s32.totalorder %s27, 1
      %p40 = scmp.ne.s32.totalorder %s35, %s37
      %p41 = scmp.eq.s32.totalorder %s27, 0
      %p42 = por %p40, %p41
      %p43 = scmp.ne.s32.totalorder %s35, %s37
      %p44 = scmp.eq.s32.totalorder %s32, 1
      %p45 = por %p43, %p44
      %p46 = scmp.ne.s32.totalorder %s37, %s38
      %p47 = scmp.eq.s32.totalorder %s32, 0
      %p48 = por %p46, %p47
      %p49 = scmp.ne.s32.totalorder %s37, %s38
      %p50 = scmp.eq.s32.totalorder %s33, 1
      %p51 = por %p49, %p50
      %p53 = scmp.ne.s32.totalorder %s38, %s52
      %p54 = scmp.eq.s32.totalorder %s33, 0
      %p55 = por %p53, %p54
      %s56 = ssub.s32 %s27, %s34
      %p57 = scmp.eq.s32.totalorder %s56, 0
      %s59 = sadd.s32 %s58, 1
      %s60 = scalar_select %p57, %s58, %s59
      %p63 = pneg %p57
      %p64 = scmp.eq.s32.totalorder %s27, 1
      %p65 = por %p63, %p64
      %p66 = scmp.ne.s32.totalorder %s58, %s61
      %p67 = scmp.eq.s32.totalorder %s27, 0
      %p68 = por %p66, %p67
      %p69 = scmp.ne.s32.totalorder %s58, %s61
      %p70 = scmp.eq.s32.totalorder %s32, 1
      %p71 = por %p69, %p70
      %p72 = scmp.ne.s32.totalorder %s61, %s62
      %p73 = scmp.eq.s32.totalorder %s32, 0
      %p74 = por %p72, %p73
      %p75 = scmp.ne.s32.totalorder %s61, %s62
      %p76 = scmp.eq.s32.totalorder %s33, 1
      %p77 = por %p75, %p76
      %p79 = scmp.ne.s32.totalorder %s62, %s78
      %p80 = scmp.eq.s32.totalorder %s33, 0
      %p81 = por %p79, %p80
      %s83 = sadd.s32 %s82, 1
      %p86 = scmp.eq.s32.totalorder %s27, 1
      %p87 = scmp.ne.s32.totalorder %s82, %s84
      %p88 = scmp.eq.s32.totalorder %s27, 0
      %p89 = por %p87, %p88
      %p90 = scmp.ne.s32.totalorder %s82, %s84
      %p91 = scmp.eq.s32.totalorder %s32, 1
      %p92 = por %p90, %p91
      %p93 = scmp.ne.s32.totalorder %s84, %s85
      %p94 = scmp.eq.s32.totalorder %s32, 0
      %p95 = por %p93, %p94
      %p96 = scmp.ne.s32.totalorder %s84, %s85
      %p97 = scmp.eq.s32.totalorder %s33, 1
      %p98 = por %p96, %p97
      %p100 = scmp.ne.s32.totalorder %s85, %s99
      %p101 = scmp.eq.s32.totalorder %s33, 0
      %p102 = por %p100, %p101
      %s104 = sadd.s32 %s103, 1
      %p107 = scmp.eq.s32.totalorder %s27, 1
      %p108 = scmp.ne.s32.totalorder %s103, %s105
      %p109 = scmp.eq.s32.totalorder %s27, 0
      %p110 = por %p108, %p109
      %p111 = scmp.ne.s32.totalorder %s103, %s105
      %p112 = scmp.eq.s32.totalorder %s32, 1
      %p113 = por %p111, %p112
      %p114 = scmp.ne.s32.totalorder %s105, %s106
      %p115 = scmp.eq.s32.totalorder %s32, 0
      %p116 = por %p114, %p115
      %p117 = scmp.ne.s32.totalorder %s105, %s106
      %p118 = scmp.eq.s32.totalorder %s33, 1
      %p119 = por %p117, %p118
      %p121 = scmp.ne.s32.totalorder %s106, %s120
      %p122 = scmp.eq.s32.totalorder %s33, 0
      %p123 = por %p121, %p122
      %s125 = sadd.s32 %s124, 1
      %p128 = scmp.eq.s32.totalorder %s27, 1
      %p129 = scmp.ne.s32.totalorder %s124, %s126
      %p130 = scmp.eq.s32.totalorder %s27, 0
      %p131 = por %p129, %p130
      %p132 = scmp.ne.s32.totalorder %s124, %s126
      %p133 = scmp.eq.s32.totalorder %s32, 1
      %p134 = por %p132, %p133
      %p135 = scmp.ne.s32.totalorder %s126, %s127
      %p136 = scmp.eq.s32.totalorder %s32, 0
      %p137 = por %p135, %p136
      %p138 = scmp.ne.s32.totalorder %s126, %s127
      %p139 = scmp.eq.s32.totalorder %s33, 1
      %p140 = por %p138, %p139
      %p142 = scmp.ne.s32.totalorder %s127, %s141
      %p143 = scmp.eq.s32.totalorder %s33, 0
      %p144 = por %p142, %p143
      %s146 = sadd.s32 %s145, 1
      %p149 = scmp.eq.s32.totalorder %s27, 1
      %p150 = scmp.ne.s32.totalorder %s145, %s147
      %p151 = scmp.eq.s32.totalorder %s27, 0
      %p152 = por %p150, %p151
      %p153 = scmp.ne.s32.totalorder %s145, %s147
      %p154 = scmp.eq.s32.totalorder %s32, 1
      %p155 = por %p153, %p154
      %p156 = scmp.ne.s32.totalorder %s147, %s148
      %p157 = scmp.eq.s32.totalorder %s32, 0
      %p158 = por %p156, %p157
      %p159 = scmp.ne.s32.totalorder %s147, %s148
      %p160 = scmp.eq.s32.totalorder %s33, 1
      %p161 = por %p159, %p160
      %p163 = scmp.ne.s32.totalorder %s148, %s162
      %p164 = scmp.eq.s32.totalorder %s33, 0
      %p165 = por %p163, %p164
      %s167 = sadd.s32 %s166, 1
      %p170 = scmp.eq.s32.totalorder %s27, 1
      %p171 = scmp.ne.s32.totalorder %s166, %s168
      %p172 = scmp.eq.s32.totalorder %s27, 0
      %p173 = por %p171, %p172
      %p174 = scmp.ne.s32.totalorder %s166, %s168
      %p175 = scmp.eq.s32.totalorder %s32, 1
      %p176 = por %p174, %p175
      %p177 = scmp.ne.s32.totalorder %s168, %s169
      %p178 = scmp.eq.s32.totalorder %s32, 0
      %p179 = por %p177, %p178
      %p180 = scmp.ne.s32.totalorder %s168, %s169
      %p181 = scmp.eq.s32.totalorder %s33, 1
      %p182 = por %p180, %p181
      %p184 = scmp.ne.s32.totalorder %s169, %s183
      %p185 = scmp.eq.s32.totalorder %s33, 0
      %p186 = por %p184, %p185
      %s188 = sadd.s32 %s187, 1
      %p191 = scmp.eq.s32.totalorder %s27, 1
      %p192 = scmp.ne.s32.totalorder %s187, %s189
      %p193 = scmp.eq.s32.totalorder %s27, 0
      %p194 = por %p192, %p193
      %p195 = scmp.ne.s32.totalorder %s187, %s189
      %p196 = scmp.eq.s32.totalorder %s32, 1
      %p197 = por %p195, %p196
      %p198 = scmp.ne.s32.totalorder %s189, %s190
      %p199 = scmp.eq.s32.totalorder %s32, 0
      %p200 = por %p198, %p199
      %p201 = scmp.ne.s32.totalorder %s189, %s190
      %p202 = scmp.eq.s32.totalorder %s33, 1
      %p203 = por %p201, %p202
      %p205 = scmp.ne.s32.totalorder %s190, %s204
      %p206 = scmp.eq.s32.totalorder %s33, 0
      %p207 = por %p205, %p206
      %s208 = ssub.s32 %s27, %s34
      %p209 = scmp.eq.s32.totalorder %s208, 0
      %s211 = sadd.s32 %s210, 1
      %s212 = scalar_select %p209, %s210, %s211
      %p215 = pneg %p209
      %p216 = scmp.eq.s32.totalorder %s27, 1
      %p217 = por %p215, %p216
      %p218 = scmp.ne.s32.totalorder %s210, %s213
      %p219 = scmp.eq.s32.totalorder %s27, 0
      %p220 = por %p218, %p219
      %p221 = scmp.ne.s32.totalorder %s210, %s213
      %p222 = scmp.eq.s32.totalorder %s32, 1
      %p223 = por %p221, %p222
      %p224 = scmp.ne.s32.totalorder %s213, %s214
      %p225 = scmp.eq.s32.totalorder %s32, 0
      %p226 = por %p224, %p225
      %p227 = scmp.ne.s32.totalorder %s213, %s214
      %p228 = scmp.eq.s32.totalorder %s33, 1
      %p229 = por %p227, %p228
      %p231 = scmp.ne.s32.totalorder %s214, %s230
      %p232 = scmp.eq.s32.totalorder %s33, 0
      %p233 = por %p231, %p232
      %s235 = sadd.s32 %s234, 1
      %p238 = scmp.eq.s32.totalorder %s27, 1
      %p239 = scmp.ne.s32.totalorder %s234, %s236
      %p240 = scmp.eq.s32.totalorder %s27, 0
      %p241 = por %p239, %p240
      %p242 = scmp.ne.s32.totalorder %s234, %s236
      %p243 = scmp.eq.s32.totalorder %s32, 1
      %p244 = por %p242, %p243
      %p245 = scmp.ne.s32.totalorder %s236, %s237
      %p246 = scmp.eq.s32.totalorder %s32, 0
      %p247 = por %p245, %p246
      %p248 = scmp.ne.s32.totalorder %s236, %s237
      %p249 = scmp.eq.s32.totalorder %s33, 1
      %p250 = por %p248, %p249
      %p252 = scmp.ne.s32.totalorder %s237, %s251
      %p253 = scmp.eq.s32.totalorder %s33, 0
      %p254 = por %p252, %p253
      %s256 = sadd.s32 %s255, 1
      %p259 = scmp.eq.s32.totalorder %s27, 1
      %p260 = scmp.ne.s32.totalorder %s255, %s257
      %p261 = scmp.eq.s32.totalorder %s27, 0
      %p262 = por %p260, %p261
      %p263 = scmp.ne.s32.totalorder %s255, %s257
      %p264 = scmp.eq.s32.totalorder %s32, 1
      %p265 = por %p263, %p264
      %p266 = scmp.ne.s32.totalorder %s257, %s258
      %p267 = scmp.eq.s32.totalorder %s32, 0
      %p268 = por %p266, %p267
      %p269 = scmp.ne.s32.totalorder %s257, %s258
      %p270 = scmp.eq.s32.totalorder %s33, 1
      %p271 = por %p269, %p270
      %p273 = scmp.ne.s32.totalorder %s258, %s272
      %p274 = scmp.eq.s32.totalorder %s33, 0
      %p275 = por %p273, %p274
      %p276 = scmp.le.s32.totalorder 1, %s27
      %p277 = scmp.lt.s32.totalorder %s27, 3
      %p278 = pnand %p276, %p277
      %p279 = pneg %p278
      // Predicated region
      $region9: #{tpu_custom_call.1} parent=5 // pred_check
        _
      $region10: #{tpu_custom_call.1} parent=5 // pred_check_branch
        %281 = sbr.rel (%p278) target = $region12
      $region11: #{tpu_custom_call.1} parent=5 // pred_region
        %s282 = ssub.s32 %s27, 1
        // Predicated region
        $region13: #{tpu_custom_call.1} parent=11 // pred_check
          %p283 = pneg %p48
        $region14: #{tpu_custom_call.1} parent=11 // pred_check_branch
          %285 = sbr.rel (%p283) target = $region16
        $region15: #{tpu_custom_call.1} parent=11 // pred_region
          _
        $region16: #{tpu_custom_call.1} parent=11 // pred_fallthru
          _
        // Predicated region
        $region17: #{tpu_custom_call.1} parent=11 // pred_check
          %p286 = pneg %p95
        $region18: #{tpu_custom_call.1} parent=11 // pred_check_branch
          %288 = sbr.rel (%p286) target = $region20
        $region19: #{tpu_custom_call.1} parent=11 // pred_region
          %s290 = ssub.s32 128, 128
          %291 = vsyncadd [#allocation10], %s290
          %s293 = sshll.u32 [#allocation9], 4
          %s294 = int_to_ptr.vmem [resolvable:$true] %s293
          %296 = dma.hbm_to_vmem [thread:$0]  %s3, 128, %s294, [#allocation10]
        $region20: #{tpu_custom_call.1} parent=11 // pred_fallthru
          _
        // Predicated region
        $region21: #{tpu_custom_call.1} parent=11 // pred_check
          %p297 = pneg %p116
        $region22: #{tpu_custom_call.1} parent=11 // pred_check_branch
          %299 = sbr.rel (%p297) target = $region24
        $region23: #{tpu_custom_call.1} parent=11 // pred_region
          %s301 = ssub.s32 128, 128
          %302 = vsyncadd [#allocation10], %s301
          %s304 = sshll.u32 [#allocation11], 4
          %s305 = int_to_ptr.vmem [resolvable:$true] %s304
          %307 = dma.hbm_to_vmem [thread:$0]  %s4, 128, %s305, [#allocation10]
        $region24: #{tpu_custom_call.1} parent=11 // pred_fallthru
          _
        // Predicated region
        $region25: #{tpu_custom_call.1} parent=11 // pred_check
          %p308 = pneg %p137
        $region26: #{tpu_custom_call.1} parent=11 // pred_check_branch
          %310 = sbr.rel (%p308) target = $region28
        $region27: #{tpu_custom_call.1} parent=11 // pred_region
          _
        $region28: #{tpu_custom_call.1} parent=11 // pred_fallthru
          _
        // Predicated region
        $region29: #{tpu_custom_call.1} parent=11 // pred_check
          %p311 = pneg %p158
        $region30: #{tpu_custom_call.1} parent=11 // pred_check_branch
          %313 = sbr.rel (%p311) target = $region32
        $region31: #{tpu_custom_call.1} parent=11 // pred_region
          _
        $region32: #{tpu_custom_call.1} parent=11 // pred_fallthru
          _
        // Predicated region
        $region33: #{tpu_custom_call.1} parent=11 // pred_check
          %p314 = pneg %p179
        $region34: #{tpu_custom_call.1} parent=11 // pred_check_branch
          %316 = sbr.rel (%p314) target = $region36
        $region35: #{tpu_custom_call.1} parent=11 // pred_region
          _
        $region36: #{tpu_custom_call.1} parent=11 // pred_fallthru
          _
        // Predicated region
        $region37: #{tpu_custom_call.1} parent=11 // pred_check
          %p317 = pneg %p200
        $region38: #{tpu_custom_call.1} parent=11 // pred_check_branch
          %319 = sbr.rel (%p317) target = $region40
        $region39: #{tpu_custom_call.1} parent=11 // pred_region
          _
        $region40: #{tpu_custom_call.1} parent=11 // pred_fallthru
          _
      $region12: #{tpu_custom_call.1} parent=5 // pred_fallthru
        _
      %p320 = scmp.lt.s32.totalorder %s27, 2
      // Predicated region
      $region41: #{tpu_custom_call.1} parent=5 // pred_check
        %p321 = pneg %p320
      $region42: #{tpu_custom_call.1} parent=5 // pred_check_branch
        %323 = sbr.rel (%p321) target = $region44
      $region43: #{tpu_custom_call.1} parent=5 // pred_region
        // Predicated region
        $region45: #{tpu_custom_call.1} parent=43 // pred_check
          %p324 = pneg %p68
        $region46: #{tpu_custom_call.1} parent=43 // pred_check_branch
          %326 = sbr.rel (%p324) target = $region48
        $region47: #{tpu_custom_call.1} parent=43 // pred_region
          %s327 = sand.u32 %s58, 1
          %s328 = scalar_lea.sflag [#allocation7], %s327
          %s329 = sand.u32 %s58, 1
          %s330 = smul.addr %s329, 64
          %s331 = scalar_lea.vmem [#allocation6], %s330
          %s332 = smul.u32 8, %s27
          %s334 = ssub.s32 1024, 1024
          %335 = vsyncadd %s328, %s334
          %s336 = smul.addr %s332, 128
          %s337 = scalar_lea.hbm %s2, %s336
          %s338 = sshll.u32 %s331, 4
          %s339 = int_to_ptr.vmem [resolvable:$true] %s338
          %344 = dma.hbm_to_vmem [thread:$0]  %s337, 1024, %s339, %s328, 128, 128, 8
        $region48: #{tpu_custom_call.1} parent=43 // pred_fallthru
          _
      $region44: #{tpu_custom_call.1} parent=5 // pred_fallthru
        _
      %p345 = scmp.le.s32.totalorder 1, %s27
      %p346 = scmp.lt.s32.totalorder %s27, 3
      %p347 = pnand %p345, %p346
      %p348 = pneg %p347
      // Predicated region
      $region49: #{tpu_custom_call.1} parent=5 // pred_check
        _
      $region50: #{tpu_custom_call.1} parent=5 // pred_check_branch
        %350 = sbr.rel (%p347) target = $region52
      $region51: #{tpu_custom_call.1} parent=5 // pred_region
        %s351 = ssub.s32 %s27, 1
        %s352 = sand.u32 %s61, 1
        %s353 = scalar_lea.sflag [#allocation7], %s352
        %s354 = sand.u32 %s61, 1
        %s355 = smul.addr %s354, 64
        %s356 = scalar_lea.vmem [#allocation6], %s355
        // Predicated region
        $region53: #{tpu_custom_call.1} parent=51 // pred_check
          %p357 = pneg %p74
        $region54: #{tpu_custom_call.1} parent=51 // pred_check_branch
          %359 = sbr.rel (%p357) target = $region56
        $region55: #{tpu_custom_call.1} parent=51 // pred_region
          %360 = dma.done %s353, 1024
        $region56: #{tpu_custom_call.1} parent=51 // pred_fallthru
          _
        // Predicated region
        $region57: #{tpu_custom_call.1} parent=51 // pred_check
          %p361 = pneg %p95
        $region58: #{tpu_custom_call.1} parent=51 // pred_check_branch
          %363 = sbr.rel (%p361) target = $region60
        $region59: #{tpu_custom_call.1} parent=51 // pred_region
          %364 = dma.done [#allocation10], 128
        $region60: #{tpu_custom_call.1} parent=51 // pred_fallthru
          _
        // Predicated region
        $region61: #{tpu_custom_call.1} parent=51 // pred_check
          %p365 = pneg %p116
        $region62: #{tpu_custom_call.1} parent=51 // pred_check_branch
          %367 = sbr.rel (%p365) target = $region64
        $region63: #{tpu_custom_call.1} parent=51 // pred_region
          %368 = dma.done [#allocation10], 128
        $region64: #{tpu_custom_call.1} parent=51 // pred_fallthru
          _
        %p369 = pneg %p48
        %p370 = pneg %p45
        %s371 = sand.u32 %s61, 1
        %s372 = scalar_lea.sflag [#allocation7], %s371
        %s373 = sand.u32 %s61, 1
        %s374 = smul.addr %s373, 64
        %s375 = scalar_lea.vmem [#allocation6], %s374
        %p376 = pneg %p74
        %p377 = pneg %p71
        %p378 = pneg %p95
        %p379 = pneg %p92
        %p380 = pneg %p116
        %p381 = pneg %p113
        %p382 = pneg %p137
        %p383 = pneg %p134
        %p384 = pneg %p158
        %p385 = pneg %p155
        %p386 = pneg %p179
        %p387 = pneg %p176
        %p388 = pneg %p200
        %p389 = pneg %p197
        %p390 = pneg %p226
        %p391 = pneg %p223
        %s392 = sand.u32 %s213, 1
        %s393 = scalar_lea.sflag [#allocation8], %s392
        %s394 = sand.u32 %s213, 1
        %s395 = smul.addr %s394, 64
        %s396 = scalar_lea.vmem [#allocation12], %s395
        %p397 = pneg %p247
        %p398 = pneg %p244
        %p399 = pneg %p268
        %p400 = pneg %p265
        %s401 = smul.u32 8, %s32
        %s402 = smul.u32 8, %s32
        %s403 = smul.u32 %s32, 8
        %p404 = scmp.eq.s32.totalorder %s32, 0
        // Predicated region
        $region65: #{tpu_custom_call.1} parent=51 // pred_check
          %p405 = pneg %p404
        $region66: #{tpu_custom_call.1} parent=51 // pred_check_branch
          %407 = sbr.rel (%p405) target = $region68
        $region67: #{tpu_custom_call.1} parent=51 // pred_region
          %v408 = vld [vmem:[#allocation9] sm:$0xff]
          %vm409 = vcmask 130048
          %410 = vst.msk [vmem:[#allocation2] sm:$0xff] %vm409, %v408
          %v411 = vld [vmem:[#allocation11] sm:$0xff]
          %vm412 = vcmask 261120
          %413 = vst.msk [vmem:[#allocation3] sm:$0xff] %vm412, %v411
        $region68: #{tpu_custom_call.1} parent=51 // pred_fallthru
          _
        %v414 = vld [vmem:[%s1] sm:$0xff]
        %s415 = sld [smem:[#allocation5]]
        %p416 = scmp.gt.s32.totalorder %s415, %s403
        // Predicated region
        $region69: #{tpu_custom_call.1} parent=51 // pred_check
          %p417 = pneg %p416
        $region70: #{tpu_custom_call.1} parent=51 // pred_check_branch
          %419 = sbr.rel (%p417) target = $region72
        $region71: #{tpu_custom_call.1} parent=51 // pred_region
          %v420 = vld [vmem:[%s356] sm:$0xff]
          %v421 = vld [vmem:[%s356 + $0x8] sm:$0xff]
          %v422 = vld [vmem:[%s356 + $0x10] sm:$0xff]
          %v423 = vld [vmem:[%s356 + $0x18] sm:$0xff]
          %v424 = vld [vmem:[%s356 + $0x20] sm:$0xff]
          %v425 = vld [vmem:[%s356 + $0x28] sm:$0xff]
          %v426 = vld [vmem:[%s356 + $0x30] sm:$0xff]
          %v427 = vld [vmem:[%s356 + $0x38] sm:$0xff]
          %v428 = vld [vmem:[%s5] sm:$0xff]
          %v429 = vld [vmem:[%s5 + $0x8] sm:$0xff]
          %v430 = vld [vmem:[%s5 + $0x10] sm:$0xff]
          %v431 = vld [vmem:[%s5 + $0x18] sm:$0xff]
          %v432 = vld [vmem:[%s7] sm:$0x1]
          %v434 = vlaneseq
          %v435 = vshrl.u32 %v434, 7
          %v436 = vsub.s32 0, %v435
          %v437 = vrot.slane %v432, %v436
          %vm439 = vcmask 261120
          %v441 = vsel %vm439, %v420, 0
          %v444 = vsel %vm439, %v421, 0
          %v447 = vsel %vm439, %v422, 0
          %v450 = vsel %vm439, %v423, 0
          %v453 = vsel %vm439, %v424, 0
          %v456 = vsel %vm439, %v425, 0
          %v459 = vsel %vm439, %v426, 0
          %v462 = vsel %vm439, %v427, 0
          %464 = vmatprep.subr.mxu0 0.0
          %465 = vmatpush1.msra.mxu0 0.0
          %466 = vmatprep.subr.mxu0 0.0
          %467 = vmatpush1.msra.mxu0 0.0
          %468 = vmatprep.subr.mxu0 0.0
          %469 = vmatpush1.msra.mxu0 0.0
          %470 = vmatprep.subr.mxu0 0.0
          %471 = vmatpush1.msra.mxu0 0.0
          %472 = vmatprep.subr.mxu0 0.0
          %473 = vmatpush1.msra.mxu0 0.0
          %474 = vmatprep.subr.mxu0 0.0
          %475 = vmatpush1.msra.mxu0 0.0
          %476 = vmatprep.subr.mxu0 0.0
          %477 = vmatpush1.msra.mxu0 0.0
          %478 = vmatprep.subr.mxu0 0.0
          %479 = vmatpush1.msra.mxu0 0.0
          %480 = vmatprep.subr.mxu0 0.0
          %481 = vmatpush1.msra.mxu0 0.0
          %482 = vmatprep.subr.mxu0 0.0
          %483 = vmatpush1.msra.mxu0 0.0
          %484 = vmatprep.subr.mxu0 0.0
          %485 = vmatpush1.msra.mxu0 0.0
          %486 = vmatprep.subr.mxu0 0.0
          %487 = vmatpush1.msra.mxu0 0.0
          %488 = vmatprep.subr.mxu0 0.0
          %489 = vmatpush1.msra.mxu0 %v431
          %490 = vmatprep.subr.mxu0 0.0
          %491 = vmatpush1.msra.mxu0 %v430
          %492 = vmatprep.subr.mxu0 0.0
          %493 = vmatpush1.msra.mxu0 %v429
          %494 = vmatprep.subr.mxu0 0.0
          %495 = vmatpush1.msra.mxu0 %v428
          %496 = vmatprep.subr.mxu0 0.0
          %497 = vmatpush2.msra.mxu0 0.0
          %498 = vmatprep.subr.mxu0 0.0
          %499 = vmatpush2.msra.mxu0 0.0
          %500 = vmatprep.subr.mxu0 0.0
          %501 = vmatpush2.msra.mxu0 0.0
          %502 = vmatprep.subr.mxu0 0.0
          %503 = vmatpush2.msra.mxu0 0.0
          %504 = vmatprep.subr.mxu0 0.0
          %505 = vmatpush2.msra.mxu0 0.0
          %506 = vmatprep.subr.mxu0 0.0
          %507 = vmatpush2.msra.mxu0 0.0
          %508 = vmatprep.subr.mxu0 0.0
          %509 = vmatpush2.msra.mxu0 0.0
          %510 = vmatprep.subr.mxu0 0.0
          %511 = vmatpush2.msra.mxu0 0.0
          %512 = vmatprep.subr.mxu0 0.0
          %513 = vmatpush2.msra.mxu0 0.0
          %514 = vmatprep.subr.mxu0 0.0
          %515 = vmatpush2.msra.mxu0 0.0
          %516 = vmatprep.subr.mxu0 0.0
          %517 = vmatpush2.msra.mxu0 0.0
          %518 = vmatprep.subr.mxu0 0.0
          %519 = vmatpush2.msra.mxu0 0.0
          %520 = vmatprep.subr.mxu0 0.0
          %521 = vmatpush2.msra.mxu0 0.0
          %522 = vmatprep.subr.mxu0 0.0
          %523 = vmatpush2.msra.mxu0 0.0
          %524 = vmatprep.subr.mxu0 0.0
          %525 = vmatpush2.msra.mxu0 0.0
          %526 = vmatprep.subr.mxu0 0.0
          %527 = vmatpush2.msra.mxu0 0.0
          %528 = vmatprep.mubr.f32.mxu0 0.0
          %529 = vmatmul.mubr.f32.gmra.mxu0 %v441
          %v530 = vpop.f32.mrf.mxu0
          %v531 = vadd.f32 %v437, %v530
          %v532 = vpop.f32.mrf.mxu0
          %533 = vmatprep.mubr.f32.mxu0 0.0
          %534 = vmatmul.mubr.f32.gmra.mxu0 %v444
          %v535 = vpop.f32.mrf.mxu0
          %v536 = vadd.f32 %v437, %v535
          %v537 = vpop.f32.mrf.mxu0
          %538 = vmatprep.mubr.f32.mxu0 0.0
          %539 = vmatmul.mubr.f32.gmra.mxu0 %v447
          %v540 = vpop.f32.mrf.mxu0
          %v541 = vadd.f32 %v437, %v540
          %v542 = vpop.f32.mrf.mxu0
          %543 = vmatprep.mubr.f32.mxu0 0.0
          %544 = vmatmul.mubr.f32.gmra.mxu0 %v450
          %v545 = vpop.f32.mrf.mxu0
          %v546 = vadd.f32 %v437, %v545
          %v547 = vpop.f32.mrf.mxu0
          %548 = vmatprep.mubr.f32.mxu0 0.0
          %549 = vmatmul.mubr.f32.gmra.mxu0 %v453
          %v550 = vpop.f32.mrf.mxu0
          %v551 = vadd.f32 %v437, %v550
          %v552 = vpop.f32.mrf.mxu0
          %553 = vmatprep.mubr.f32.mxu0 0.0
          %554 = vmatmul.mubr.f32.gmra.mxu0 %v456
          %v555 = vpop.f32.mrf.mxu0
          %v556 = vadd.f32 %v437, %v555
          %v557 = vpop.f32.mrf.mxu0
          %558 = vmatprep.mubr.f32.mxu0 0.0
          %559 = vmatmul.mubr.f32.gmra.mxu0 %v459
          %v560 = vpop.f32.mrf.mxu0
          %v561 = vadd.f32 %v437, %v560
          %v562 = vpop.f32.mrf.mxu0
          %563 = vmatprep.mubr.f32.mxu0 0.0
          %564 = vmatmul.mubr.f32.gmra.mxu0 %v462
          %v565 = vpop.f32.mrf.mxu0
          %v566 = vadd.f32 %v437, %v565
          %v567 = vpop.f32.mrf.mxu0
          %568 = vdwg.mxu0
          %v569 = vld [vmem:[#allocation2] sm:$0xff]
          %v570 = vld [vmem:[#allocation3] sm:$0xff]
          %v571 = vld [vmem:[%s6] sm:$0xff]
          %v572 = vld [vmem:[%s6 + $0x8] sm:$0xff]
          %vm573 = vcmask 130048
          %v575 = vsel %vm573, %v569, 0
          %577 = vmatprep.subr.mxu0 0.0
          %578 = vmatpush1.msra.mxu0 0.0
          %579 = vmatprep.subr.mxu0 0.0
          %580 = vmatpush1.msra.mxu0 0.0
          %581 = vmatprep.subr.mxu0 0.0
          %582 = vmatpush1.msra.mxu0 0.0
          %583 = vmatprep.subr.mxu0 0.0
          %584 = vmatpush1.msra.mxu0 0.0
          %585 = vmatprep.subr.mxu0 0.0
          %586 = vmatpush1.msra.mxu0 0.0
          %587 = vmatprep.subr.mxu0 0.0
          %588 = vmatpush1.msra.mxu0 0.0
          %589 = vmatprep.subr.mxu0 0.0
          %590 = vmatpush1.msra.mxu0 0.0
          %591 = vmatprep.subr.mxu0 0.0
          %592 = vmatpush1.msra.mxu0 0.0
          %593 = vmatprep.subr.mxu0 0.0
          %594 = vmatpush1.msra.mxu0 0.0
          %595 = vmatprep.subr.mxu0 0.0
          %596 = vmatpush1.msra.mxu0 0.0
          %597 = vmatprep.subr.mxu0 0.0
          %598 = vmatpush1.msra.mxu0 0.0
          %599 = vmatprep.subr.mxu0 0.0
          %600 = vmatpush1.msra.mxu0 0.0
          %601 = vmatprep.subr.mxu0 0.0
          %602 = vmatpush1.msra.mxu0 0.0
          %603 = vmatprep.subr.mxu0 0.0
          %604 = vmatpush1.msra.mxu0 0.0
          %605 = vmatprep.subr.mxu0 0.0
          %606 = vmatpush1.msra.mxu0 %v572
          %607 = vmatprep.subr.mxu0 0.0
          %608 = vmatpush1.msra.mxu0 %v571
          %609 = vmatprep.subr.mxu0 0.0
          %610 = vmatpush2.msra.mxu0 0.0
          %611 = vmatprep.subr.mxu0 0.0
          %612 = vmatpush2.msra.mxu0 0.0
          %613 = vmatprep.subr.mxu0 0.0
          %614 = vmatpush2.msra.mxu0 0.0
          %615 = vmatprep.subr.mxu0 0.0
          %616 = vmatpush2.msra.mxu0 0.0
          %617 = vmatprep.subr.mxu0 0.0
          %618 = vmatpush2.msra.mxu0 0.0
          %619 = vmatprep.subr.mxu0 0.0
          %620 = vmatpush2.msra.mxu0 0.0
          %621 = vmatprep.subr.mxu0 0.0
          %622 = vmatpush2.msra.mxu0 0.0
          %623 = vmatprep.subr.mxu0 0.0
          %624 = vmatpush2.msra.mxu0 0.0
          %625 = vmatprep.subr.mxu0 0.0
          %626 = vmatpush2.msra.mxu0 0.0
          %627 = vmatprep.subr.mxu0 0.0
          %628 = vmatpush2.msra.mxu0 0.0
          %629 = vmatprep.subr.mxu0 0.0
          %630 = vmatpush2.msra.mxu0 0.0
          %631 = vmatprep.subr.mxu0 0.0
          %632 = vmatpush2.msra.mxu0 0.0
          %633 = vmatprep.subr.mxu0 0.0
          %634 = vmatpush2.msra.mxu0 0.0
          %635 = vmatprep.subr.mxu0 0.0
          %636 = vmatpush2.msra.mxu0 0.0
          %637 = vmatprep.subr.mxu0 0.0
          %638 = vmatpush2.msra.mxu0 0.0
          %639 = vmatprep.subr.mxu0 0.0
          %640 = vmatpush2.msra.mxu0 0.0
          %641 = vmatprep.mubr.f32.mxu0 0.0
          %642 = vmatmul.mubr.f32.gmra.mxu0 %v575
          %v643 = vpop.f32.mrf.mxu0
          %v644 = vadd.f32 0.0, %v643
          %v645 = vpop.f32.mrf.mxu0
          %646 = vdwg.mxu0
          %v647 = vadd.f32 %v531, %v644
          %v648 = vxor.u32 %v647, 2147483648
          %v649 = vmul.f32 %v648, 1.442695
          %v650 = vpow.pop %v649
          %v651 = vadd.f32 %v650, 1.0
          %v652 = vrcp.pop %v651
          %v653 = vmul.f32 1.0, %v652
          %v654 = vtanh.pop %v647
          %656 = vrot.lane.b32.xlu0 %v654, 32
          %v657 = vpop.permute.xlu0 %656
          %v659 = vmul.f32 %v653, %v657
          %661 = vrot.lane.b32.xlu0 %v570, 32
          %v662 = vpop.permute.xlu0 %661
          %v664 = vmul.f32 %v653, %v662
          %666 = vrot.lane.b32.xlu0 %v664, 96
          %v667 = vpop.permute.xlu0 %666
          %v669 = vadd.f32 %v659, %v667
          %v670 = vmax.f32 %v669, -3.0
          %v671 = vmin.f32 %v670, 3.0
          %v672 = vtanh.pop %v671
          %674 = vrot.lane.b32.xlu0 %v672, 64
          %v675 = vpop.permute.xlu0 %674
          %v677 = vmul.f32 %v653, %v675
          %v678 = vld [vmem:[%s8] sm:$0xff]
          %v679 = vld [vmem:[%s8 + $0x8] sm:$0xff]
          %v680 = vld [vmem:[%s8 + $0x10] sm:$0xff]
          %v681 = vld [vmem:[%s8 + $0x18] sm:$0xff]
          %683 = vrot.lane.b32.xlu0 %v677, 64
          %v684 = vpop.permute.xlu0 %683
          %v685 = vsel %vm439, %v684, 0
          %687 = vmatprep.subr.mxu0 0.0
          %688 = vmatpush1.msra.mxu0 0.0
          %689 = vmatprep.subr.mxu0 0.0
          %690 = vmatpush1.msra.mxu0 0.0
          %691 = vmatprep.subr.mxu0 0.0
          %692 = vmatpush1.msra.mxu0 0.0
          %693 = vmatprep.subr.mxu0 0.0
          %694 = vmatpush1.msra.mxu0 0.0
          %695 = vmatprep.subr.mxu0 0.0
          %696 = vmatpush1.msra.mxu0 0.0
          %697 = vmatprep.subr.mxu0 0.0
          %698 = vmatpush1.msra.mxu0 0.0
          %699 = vmatprep.subr.mxu0 0.0
          %700 = vmatpush1.msra.mxu0 0.0
          %701 = vmatprep.subr.mxu0 0.0
          %702 = vmatpush1.msra.mxu0 0.0
          %703 = vmatprep.subr.mxu0 0.0
          %704 = vmatpush1.msra.mxu0 0.0
          %705 = vmatprep.subr.mxu0 0.0
          %706 = vmatpush1.msra.mxu0 0.0
          %707 = vmatprep.subr.mxu0 0.0
          %708 = vmatpush1.msra.mxu0 0.0
          %709 = vmatprep.subr.mxu0 0.0
          %710 = vmatpush1.msra.mxu0 0.0
          %711 = vmatprep.subr.mxu0 0.0
          %712 = vmatpush1.msra.mxu0 %v681
          %713 = vmatprep.subr.mxu0 0.0
          %714 = vmatpush1.msra.mxu0 %v680
          %715 = vmatprep.subr.mxu0 0.0
          %716 = vmatpush1.msra.mxu0 %v679
          %717 = vmatprep.subr.mxu0 0.0
          %718 = vmatpush1.msra.mxu0 %v678
          %719 = vmatprep.subr.mxu0 0.0
          %720 = vmatpush2.msra.mxu0 0.0
          %721 = vmatprep.subr.mxu0 0.0
          %722 = vmatpush2.msra.mxu0 0.0
          %723 = vmatprep.subr.mxu0 0.0
          %724 = vmatpush2.msra.mxu0 0.0
          %725 = vmatprep.subr.mxu0 0.0
          %726 = vmatpush2.msra.mxu0 0.0
          %727 = vmatprep.subr.mxu0 0.0
          %728 = vmatpush2.msra.mxu0 0.0
          %729 = vmatprep.subr.mxu0 0.0
          %730 = vmatpush2.msra.mxu0 0.0
          %731 = vmatprep.subr.mxu0 0.0
          %732 = vmatpush2.msra.mxu0 0.0
          %733 = vmatprep.subr.mxu0 0.0
          %734 = vmatpush2.msra.mxu0 0.0
          %735 = vmatprep.subr.mxu0 0.0
          %736 = vmatpush2.msra.mxu0 0.0
          %737 = vmatprep.subr.mxu0 0.0
          %738 = vmatpush2.msra.mxu0 0.0
          %739 = vmatprep.subr.mxu0 0.0
          %740 = vmatpush2.msra.mxu0 0.0
          %741 = vmatprep.subr.mxu0 0.0
          %742 = vmatpush2.msra.mxu0 0.0
          %743 = vmatprep.subr.mxu0 0.0
          %744 = vmatpush2.msra.mxu0 0.0
          %745 = vmatprep.subr.mxu0 0.0
          %746 = vmatpush2.msra.mxu0 0.0
          %747 = vmatprep.subr.mxu0 0.0
          %748 = vmatpush2.msra.mxu0 0.0
          %749 = vmatprep.subr.mxu0 0.0
          %750 = vmatpush2.msra.mxu0 0.0
          %751 = vmatprep.mubr.f32.mxu0 0.0
          %752 = vmatmul.mubr.f32.gmra.mxu0 %v685
          %v753 = vpop.f32.mrf.mxu0
          %v754 = vadd.f32 0.0, %v753
          %v755 = vpop.f32.mrf.mxu0
          %756 = vdwg.mxu0
          %v757 = vmax.f32 %v754, -3.0
          %v758 = vmin.f32 %v757, 3.0
          %v759 = vstv %s403
          %vm760 = vcmp.gt.s32.totalorder %v414, %v759
          %v761 = vsel %vm760, 1, 0
          %762 = vset.pattern.permute.xlu0 0
          %763 = vperm.xlu0 %762, %v761
          %v764 = vpop.permute.xlu0 %763
          %vm765 = vcmp.eq.s32.totalorder %v764, 1
          %v766 = vsel %vm765, %v671, %v570
          %v767 = vsel %vm765, %v758, %v569
          %v768 = vsel %vm765, %v758, 0.0
          %769 = vst.msk [vmem:[%s396] sm:$0xff] %vm573, %v768
          %s770 = sadd.s32 %s403, 1
          %v771 = vld [vmem:[%s6] sm:$0xff]
          %v772 = vld [vmem:[%s6 + $0x8] sm:$0xff]
          %v774 = vsel %vm573, %v767, 0
          %776 = vmatprep.subr.mxu0 0.0
          %777 = vmatpush1.msra.mxu0 0.0
          %778 = vmatprep.subr.mxu0 0.0
          %779 = vmatpush1.msra.mxu0 0.0
          %780 = vmatprep.subr.mxu0 0.0
          %781 = vmatpush1.msra.mxu0 0.0
          %782 = vmatprep.subr.mxu0 0.0
          %783 = vmatpush1.msra.mxu0 0.0
          %784 = vmatprep.subr.mxu0 0.0
          %785 = vmatpush1.msra.mxu0 0.0
          %786 = vmatprep.subr.mxu0 0.0
          %787 = vmatpush1.msra.mxu0 0.0
          %788 = vmatprep.subr.mxu0 0.0
          %789 = vmatpush1.msra.mxu0 0.0
          %790 = vmatprep.subr.mxu0 0.0
          %791 = vmatpush1.msra.mxu0 0.0
          %792 = vmatprep.subr.mxu0 0.0
          %793 = vmatpush1.msra.mxu0 0.0
          %794 = vmatprep.subr.mxu0 0.0
          %795 = vmatpush1.msra.mxu0 0.0
          %796 = vmatprep.subr.mxu0 0.0
          %797 = vmatpush1.msra.mxu0 0.0
          %798 = vmatprep.subr.mxu0 0.0
          %799 = vmatpush1.msra.mxu0 0.0
          %800 = vmatprep.subr.mxu0 0.0
          %801 = vmatpush1.msra.mxu0 0.0
          %802 = vmatprep.subr.mxu0 0.0
          %803 = vmatpush1.msra.mxu0 0.0
          %804 = vmatprep.subr.mxu0 0.0
          %805 = vmatpush1.msra.mxu0 %v772
          %806 = vmatprep.subr.mxu0 0.0
          %807 = vmatpush1.msra.mxu0 %v771
          %808 = vmatprep.subr.mxu0 0.0
          %809 = vmatpush2.msra.mxu0 0.0
          %810 = vmatprep.subr.mxu0 0.0
          %811 = vmatpush2.msra.mxu0 0.0
          %812 = vmatprep.subr.mxu0 0.0
          %813 = vmatpush2.msra.mxu0 0.0
          %814 = vmatprep.subr.mxu0 0.0
          %815 = vmatpush2.msra.mxu0 0.0
          %816 = vmatprep.subr.mxu0 0.0
          %817 = vmatpush2.msra.mxu0 0.0
          %818 = vmatprep.subr.mxu0 0.0
          %819 = vmatpush2.msra.mxu0 0.0
          %820 = vmatprep.subr.mxu0 0.0
          %821 = vmatpush2.msra.mxu0 0.0
          %822 = vmatprep.subr.mxu0 0.0
          %823 = vmatpush2.msra.mxu0 0.0
          %824 = vmatprep.subr.mxu0 0.0
          %825 = vmatpush2.msra.mxu0 0.0
          %826 = vmatprep.subr.mxu0 0.0
          %827 = vmatpush2.msra.mxu0 0.0
          %828 = vmatprep.subr.mxu0 0.0
          %829 = vmatpush2.msra.mxu0 0.0
          %830 = vmatprep.subr.mxu0 0.0
          %831 = vmatpush2.msra.mxu0 0.0
          %832 = vmatprep.subr.mxu0 0.0
          %833 = vmatpush2.msra.mxu0 0.0
          %834 = vmatprep.subr.mxu0 0.0
          %835 = vmatpush2.msra.mxu0 0.0
          %836 = vmatprep.subr.mxu0 0.0
          %837 = vmatpush2.msra.mxu0 0.0
          %838 = vmatprep.subr.mxu0 0.0
          %839 = vmatpush2.msra.mxu0 0.0
          %840 = vmatprep.mubr.f32.mxu0 0.0
          %841 = vmatmul.mubr.f32.gmra.mxu0 %v774
          %v842 = vpop.f32.mrf.mxu0
          %v843 = vadd.f32 0.0, %v842
          %v844 = vpop.f32.mrf.mxu0
          %845 = vdwg.mxu0
          %v846 = vadd.f32 %v536, %v843
          %v847 = vxor.u32 %v846, 2147483648
          %v848 = vmul.f32 %v847, 1.442695
          %v849 = vpow.pop %v848
          %v850 = vadd.f32 %v849, 1.0
          %v851 = vrcp.pop %v850
          %v852 = vmul.f32 1.0, %v851
          %v853 = vtanh.pop %v846
          %855 = vrot.lane.b32.xlu0 %v853, 32
          %v856 = vpop.permute.xlu0 %855
          %v858 = vmul.f32 %v852, %v856
          %860 = vrot.lane.b32.xlu0 %v766, 32
          %v861 = vpop.permute.xlu0 %860
          %v863 = vmul.f32 %v852, %v861
          %865 = vrot.lane.b32.xlu0 %v863, 96
          %v866 = vpop.permute.xlu0 %865
          %v868 = vadd.f32 %v858, %v866
          %v869 = vmax.f32 %v868, -3.0
          %v870 = vmin.f32 %v869, 3.0
          %v871 = vtanh.pop %v870
          %873 = vrot.lane.b32.xlu0 %v871, 64
          %v874 = vpop.permute.xlu0 %873
          %v876 = vmul.f32 %v852, %v874
          %v877 = vld [vmem:[%s8] sm:$0xff]
          %v878 = vld [vmem:[%s8 + $0x8] sm:$0xff]
          %v879 = vld [vmem:[%s8 + $0x10] sm:$0xff]
          %v880 = vld [vmem:[%s8 + $0x18] sm:$0xff]
          %882 = vrot.lane.b32.xlu0 %v876, 64
          %v883 = vpop.permute.xlu0 %882
          %v884 = vsel %vm439, %v883, 0
          %886 = vmatprep.subr.mxu0 0.0
          %887 = vmatpush1.msra.mxu0 0.0
          %888 = vmatprep.subr.mxu0 0.0
          %889 = vmatpush1.msra.mxu0 0.0
          %890 = vmatprep.subr.mxu0 0.0
          %891 = vmatpush1.msra.mxu0 0.0
          %892 = vmatprep.subr.mxu0 0.0
          %893 = vmatpush1.msra.mxu0 0.0
          %894 = vmatprep.subr.mxu0 0.0
          %895 = vmatpush1.msra.mxu0 0.0
          %896 = vmatprep.subr.mxu0 0.0
          %897 = vmatpush1.msra.mxu0 0.0
          %898 = vmatprep.subr.mxu0 0.0
          %899 = vmatpush1.msra.mxu0 0.0
          %900 = vmatprep.subr.mxu0 0.0
          %901 = vmatpush1.msra.mxu0 0.0
          %902 = vmatprep.subr.mxu0 0.0
          %903 = vmatpush1.msra.mxu0 0.0
          %904 = vmatprep.subr.mxu0 0.0
          %905 = vmatpush1.msra.mxu0 0.0
          %906 = vmatprep.subr.mxu0 0.0
          %907 = vmatpush1.msra.mxu0 0.0
          %908 = vmatprep.subr.mxu0 0.0
          %909 = vmatpush1.msra.mxu0 0.0
          %910 = vmatprep.subr.mxu0 0.0
          %911 = vmatpush1.msra.mxu0 %v880
          %912 = vmatprep.subr.mxu0 0.0
          %913 = vmatpush1.msra.mxu0 %v879
          %914 = vmatprep.subr.mxu0 0.0
          %915 = vmatpush1.msra.mxu0 %v878
          %916 = vmatprep.subr.mxu0 0.0
          %917 = vmatpush1.msra.mxu0 %v877
          %918 = vmatprep.subr.mxu0 0.0
          %919 = vmatpush2.msra.mxu0 0.0
          %920 = vmatprep.subr.mxu0 0.0
          %921 = vmatpush2.msra.mxu0 0.0
          %922 = vmatprep.subr.mxu0 0.0
          %923 = vmatpush2.msra.mxu0 0.0
          %924 = vmatprep.subr.mxu0 0.0
          %925 = vmatpush2.msra.mxu0 0.0
          %926 = vmatprep.subr.mxu0 0.0
          %927 = vmatpush2.msra.mxu0 0.0
          %928 = vmatprep.subr.mxu0 0.0
          %929 = vmatpush2.msra.mxu0 0.0
          %930 = vmatprep.subr.mxu0 0.0
          %931 = vmatpush2.msra.mxu0 0.0
          %932 = vmatprep.subr.mxu0 0.0
          %933 = vmatpush2.msra.mxu0 0.0
          %934 = vmatprep.subr.mxu0 0.0
          %935 = vmatpush2.msra.mxu0 0.0
          %936 = vmatprep.subr.mxu0 0.0
          %937 = vmatpush2.msra.mxu0 0.0
          %938 = vmatprep.subr.mxu0 0.0
          %939 = vmatpush2.msra.mxu0 0.0
          %940 = vmatprep.subr.mxu0 0.0
          %941 = vmatpush2.msra.mxu0 0.0
          %942 = vmatprep.subr.mxu0 0.0
          %943 = vmatpush2.msra.mxu0 0.0
          %944 = vmatprep.subr.mxu0 0.0
          %945 = vmatpush2.msra.mxu0 0.0
          %946 = vmatprep.subr.mxu0 0.0
          %947 = vmatpush2.msra.mxu0 0.0
          %948 = vmatprep.subr.mxu0 0.0
          %949 = vmatpush2.msra.mxu0 0.0
          %950 = vmatprep.mubr.f32.mxu0 0.0
          %951 = vmatmul.mubr.f32.gmra.mxu0 %v884
          %v952 = vpop.f32.mrf.mxu0
          %v953 = vadd.f32 0.0, %v952
          %v954 = vpop.f32.mrf.mxu0
          %955 = vdwg.mxu0
          %v956 = vmax.f32 %v953, -3.0
          %v957 = vmin.f32 %v956, 3.0
          %v958 = vstv %s770
          %vm959 = vcmp.gt.s32.totalorder %v414, %v958
          %v960 = vsel %vm959, 1, 0
          %961 = vset.pattern.permute.xlu0 0
          %962 = vperm.xlu0 %961, %v960
          %v963 = vpop.permute.xlu0 %962
          %vm964 = vcmp.eq.s32.totalorder %v963, 1
          %v965 = vsel %vm964, %v870, %v766
          %v966 = vsel %vm964, %v957, %v767
          %v967 = vsel %vm964, %v957, 0.0
          %s968 = scalar_lea.vmem %s396, 8 [#allocation12]
          %969 = vst.msk [vmem:[%s968] sm:$0xff] %vm573, %v967
          %s970 = sadd.s32 %s403, 2
          %v971 = vld [vmem:[%s6] sm:$0xff]
          %v972 = vld [vmem:[%s6 + $0x8] sm:$0xff]
          %v974 = vsel %vm573, %v966, 0
          %976 = vmatprep.subr.mxu0 0.0
          %977 = vmatpush1.msra.mxu0 0.0
          %978 = vmatprep.subr.mxu0 0.0
          %979 = vmatpush1.msra.mxu0 0.0
          %980 = vmatprep.subr.mxu0 0.0
          %981 = vmatpush1.msra.mxu0 0.0
          %982 = vmatprep.subr.mxu0 0.0
          %983 = vmatpush1.msra.mxu0 0.0
          %984 = vmatprep.subr.mxu0 0.0
          %985 = vmatpush1.msra.mxu0 0.0
          %986 = vmatprep.subr.mxu0 0.0
          %987 = vmatpush1.msra.mxu0 0.0
          %988 = vmatprep.subr.mxu0 0.0
          %989 = vmatpush1.msra.mxu0 0.0
          %990 = vmatprep.subr.mxu0 0.0
          %991 = vmatpush1.msra.mxu0 0.0
          %992 = vmatprep.subr.mxu0 0.0
          %993 = vmatpush1.msra.mxu0 0.0
          %994 = vmatprep.subr.mxu0 0.0
          %995 = vmatpush1.msra.mxu0 0.0
          %996 = vmatprep.subr.mxu0 0.0
          %997 = vmatpush1.msra.mxu0 0.0
          %998 = vmatprep.subr.mxu0 0.0
          %999 = vmatpush1.msra.mxu0 0.0
          %1000 = vmatprep.subr.mxu0 0.0
          %1001 = vmatpush1.msra.mxu0 0.0
          %1002 = vmatprep.subr.mxu0 0.0
          %1003 = vmatpush1.msra.mxu0 0.0
          %1004 = vmatprep.subr.mxu0 0.0
          %1005 = vmatpush1.msra.mxu0 %v972
          %1006 = vmatprep.subr.mxu0 0.0
          %1007 = vmatpush1.msra.mxu0 %v971
          %1008 = vmatprep.subr.mxu0 0.0
          %1009 = vmatpush2.msra.mxu0 0.0
          %1010 = vmatprep.subr.mxu0 0.0
          %1011 = vmatpush2.msra.mxu0 0.0
          %1012 = vmatprep.subr.mxu0 0.0
          %1013 = vmatpush2.msra.mxu0 0.0
          %1014 = vmatprep.subr.mxu0 0.0
          %1015 = vmatpush2.msra.mxu0 0.0
          %1016 = vmatprep.subr.mxu0 0.0
          %1017 = vmatpush2.msra.mxu0 0.0
          %1018 = vmatprep.subr.mxu0 0.0
          %1019 = vmatpush2.msra.mxu0 0.0
          %1020 = vmatprep.subr.mxu0 0.0
          %1021 = vmatpush2.msra.mxu0 0.0
          %1022 = vmatprep.subr.mxu0 0.0
          %1023 = vmatpush2.msra.mxu0 0.0
          %1024 = vmatprep.subr.mxu0 0.0
          %1025 = vmatpush2.msra.mxu0 0.0
          %1026 = vmatprep.subr.mxu0 0.0
          %1027 = vmatpush2.msra.mxu0 0.0
          %1028 = vmatprep.subr.mxu0 0.0
          %1029 = vmatpush2.msra.mxu0 0.0
          %1030 = vmatprep.subr.mxu0 0.0
          %1031 = vmatpush2.msra.mxu0 0.0
          %1032 = vmatprep.subr.mxu0 0.0
          %1033 = vmatpush2.msra.mxu0 0.0
          %1034 = vmatprep.subr.mxu0 0.0
          %1035 = vmatpush2.msra.mxu0 0.0
          %1036 = vmatprep.subr.mxu0 0.0
          %1037 = vmatpush2.msra.mxu0 0.0
          %1038 = vmatprep.subr.mxu0 0.0
          %1039 = vmatpush2.msra.mxu0 0.0
          %1040 = vmatprep.mubr.f32.mxu0 0.0
          %1041 = vmatmul.mubr.f32.gmra.mxu0 %v974
          %v1042 = vpop.f32.mrf.mxu0
          %v1043 = vadd.f32 0.0, %v1042
          %v1044 = vpop.f32.mrf.mxu0
          %1045 = vdwg.mxu0
          %v1046 = vadd.f32 %v541, %v1043
          %v1047 = vxor.u32 %v1046, 2147483648
          %v1048 = vmul.f32 %v1047, 1.442695
          %v1049 = vpow.pop %v1048
          %v1050 = vadd.f32 %v1049, 1.0
          %v1051 = vrcp.pop %v1050
          %v1052 = vmul.f32 1.0, %v1051
          %v1053 = vtanh.pop %v1046
          %1055 = vrot.lane.b32.xlu0 %v1053, 32
          %v1056 = vpop.permute.xlu0 %1055
          %v1058 = vmul.f32 %v1052, %v1056
          %1060 = vrot.lane.b32.xlu0 %v965, 32
          %v1061 = vpop.permute.xlu0 %1060
          %v1063 = vmul.f32 %v1052, %v1061
          %1065 = vrot.lane.b32.xlu0 %v1063, 96
          %v1066 = vpop.permute.xlu0 %1065
          %v1068 = vadd.f32 %v1058, %v1066
          %v1069 = vmax.f32 %v1068, -3.0
          %v1070 = vmin.f32 %v1069, 3.0
          %v1071 = vtanh.pop %v1070
          %1073 = vrot.lane.b32.xlu0 %v1071, 64
          %v1074 = vpop.permute.xlu0 %1073
          %v1076 = vmul.f32 %v1052, %v1074
          %v1077 = vld [vmem:[%s8] sm:$0xff]
          %v1078 = vld [vmem:[%s8 + $0x8] sm:$0xff]
          %v1079 = vld [vmem:[%s8 + $0x10] sm:$0xff]
          %v1080 = vld [vmem:[%s8 + $0x18] sm:$0xff]
          %1082 = vrot.lane.b32.xlu0 %v1076, 64
          %v1083 = vpop.permute.xlu0 %1082
          %v1084 = vsel %vm439, %v1083, 0
          %1086 = vmatprep.subr.mxu0 0.0
          %1087 = vmatpush1.msra.mxu0 0.0
          %1088 = vmatprep.subr.mxu0 0.0
          %1089 = vmatpush1.msra.mxu0 0.0
          %1090 = vmatprep.subr.mxu0 0.0
          %1091 = vmatpush1.msra.mxu0 0.0
          %1092 = vmatprep.subr.mxu0 0.0
          %1093 = vmatpush1.msra.mxu0 0.0
          %1094 = vmatprep.subr.mxu0 0.0
          %1095 = vmatpush1.msra.mxu0 0.0
          %1096 = vmatprep.subr.mxu0 0.0
          %1097 = vmatpush1.msra.mxu0 0.0
          %1098 = vmatprep.subr.mxu0 0.0
          %1099 = vmatpush1.msra.mxu0 0.0
          %1100 = vmatprep.subr.mxu0 0.0
          %1101 = vmatpush1.msra.mxu0 0.0
          %1102 = vmatprep.subr.mxu0 0.0
          %1103 = vmatpush1.msra.mxu0 0.0
          %1104 = vmatprep.subr.mxu0 0.0
          %1105 = vmatpush1.msra.mxu0 0.0
          %1106 = vmatprep.subr.mxu0 0.0
          %1107 = vmatpush1.msra.mxu0 0.0
          %1108 = vmatprep.subr.mxu0 0.0
          %1109 = vmatpush1.msra.mxu0 0.0
          %1110 = vmatprep.subr.mxu0 0.0
          %1111 = vmatpush1.msra.mxu0 %v1080
          %1112 = vmatprep.subr.mxu0 0.0
          %1113 = vmatpush1.msra.mxu0 %v1079
          %1114 = vmatprep.subr.mxu0 0.0
          %1115 = vmatpush1.msra.mxu0 %v1078
          %1116 = vmatprep.subr.mxu0 0.0
          %1117 = vmatpush1.msra.mxu0 %v1077
          %1118 = vmatprep.subr.mxu0 0.0
          %1119 = vmatpush2.msra.mxu0 0.0
          %1120 = vmatprep.subr.mxu0 0.0
          %1121 = vmatpush2.msra.mxu0 0.0
          %1122 = vmatprep.subr.mxu0 0.0
          %1123 = vmatpush2.msra.mxu0 0.0
          %1124 = vmatprep.subr.mxu0 0.0
          %1125 = vmatpush2.msra.mxu0 0.0
          %1126 = vmatprep.subr.mxu0 0.0
          %1127 = vmatpush2.msra.mxu0 0.0
          %1128 = vmatprep.subr.mxu0 0.0
          %1129 = vmatpush2.msra.mxu0 0.0
          %1130 = vmatprep.subr.mxu0 0.0
          %1131 = vmatpush2.msra.mxu0 0.0
          %1132 = vmatprep.subr.mxu0 0.0
          %1133 = vmatpush2.msra.mxu0 0.0
          %1134 = vmatprep.subr.mxu0 0.0
          %1135 = vmatpush2.msra.mxu0 0.0
          %1136 = vmatprep.subr.mxu0 0.0
          %1137 = vmatpush2.msra.mxu0 0.0
          %1138 = vmatprep.subr.mxu0 0.0
          %1139 = vmatpush2.msra.mxu0 0.0
          %1140 = vmatprep.subr.mxu0 0.0
          %1141 = vmatpush2.msra.mxu0 0.0
          %1142 = vmatprep.subr.mxu0 0.0
          %1143 = vmatpush2.msra.mxu0 0.0
          %1144 = vmatprep.subr.mxu0 0.0
          %1145 = vmatpush2.msra.mxu0 0.0
          %1146 = vmatprep.subr.mxu0 0.0
          %1147 = vmatpush2.msra.mxu0 0.0
          %1148 = vmatprep.subr.mxu0 0.0
          %1149 = vmatpush2.msra.mxu0 0.0
          %1150 = vmatprep.mubr.f32.mxu0 0.0
          %1151 = vmatmul.mubr.f32.gmra.mxu0 %v1084
          %v1152 = vpop.f32.mrf.mxu0
          %v1153 = vadd.f32 0.0, %v1152
          %v1154 = vpop.f32.mrf.mxu0
          %1155 = vdwg.mxu0
          %v1156 = vmax.f32 %v1153, -3.0
          %v1157 = vmin.f32 %v1156, 3.0
          %v1158 = vstv %s970
          %vm1159 = vcmp.gt.s32.totalorder %v414, %v1158
          %v1160 = vsel %vm1159, 1, 0
          %1161 = vset.pattern.permute.xlu0 0
          %1162 = vperm.xlu0 %1161, %v1160
          %v1163 = vpop.permute.xlu0 %1162
          %vm1164 = vcmp.eq.s32.totalorder %v1163, 1
          %v1165 = vsel %vm1164, %v1070, %v965
          %v1166 = vsel %vm1164, %v1157, %v966
          %v1167 = vsel %vm1164, %v1157, 0.0
          %s1168 = scalar_lea.vmem %s396, 16 [#allocation12]
          %1169 = vst.msk [vmem:[%s1168] sm:$0xff] %vm573, %v1167
          %s1170 = sadd.s32 %s403, 3
          %v1171 = vld [vmem:[%s6] sm:$0xff]
          %v1172 = vld [vmem:[%s6 + $0x8] sm:$0xff]
          %v1174 = vsel %vm573, %v1166, 0
          %1176 = vmatprep.subr.mxu0 0.0
          %1177 = vmatpush1.msra.mxu0 0.0
          %1178 = vmatprep.subr.mxu0 0.0
          %1179 = vmatpush1.msra.mxu0 0.0
          %1180 = vmatprep.subr.mxu0 0.0
          %1181 = vmatpush1.msra.mxu0 0.0
          %1182 = vmatprep.subr.mxu0 0.0
          %1183 = vmatpush1.msra.mxu0 0.0
          %1184 = vmatprep.subr.mxu0 0.0
          %1185 = vmatpush1.msra.mxu0 0.0
          %1186 = vmatprep.subr.mxu0 0.0
          %1187 = vmatpush1.msra.mxu0 0.0
          %1188 = vmatprep.subr.mxu0 0.0
          %1189 = vmatpush1.msra.mxu0 0.0
          %1190 = vmatprep.subr.mxu0 0.0
          %1191 = vmatpush1.msra.mxu0 0.0
          %1192 = vmatprep.subr.mxu0 0.0
          %1193 = vmatpush1.msra.mxu0 0.0
          %1194 = vmatprep.subr.mxu0 0.0
          %1195 = vmatpush1.msra.mxu0 0.0
          %1196 = vmatprep.subr.mxu0 0.0
          %1197 = vmatpush1.msra.mxu0 0.0
          %1198 = vmatprep.subr.mxu0 0.0
          %1199 = vmatpush1.msra.mxu0 0.0
          %1200 = vmatprep.subr.mxu0 0.0
          %1201 = vmatpush1.msra.mxu0 0.0
          %1202 = vmatprep.subr.mxu0 0.0
          %1203 = vmatpush1.msra.mxu0 0.0
          %1204 = vmatprep.subr.mxu0 0.0
          %1205 = vmatpush1.msra.mxu0 %v1172
          %1206 = vmatprep.subr.mxu0 0.0
          %1207 = vmatpush1.msra.mxu0 %v1171
          %1208 = vmatprep.subr.mxu0 0.0
          %1209 = vmatpush2.msra.mxu0 0.0
          %1210 = vmatprep.subr.mxu0 0.0
          %1211 = vmatpush2.msra.mxu0 0.0
          %1212 = vmatprep.subr.mxu0 0.0
          %1213 = vmatpush2.msra.mxu0 0.0
          %1214 = vmatprep.subr.mxu0 0.0
          %1215 = vmatpush2.msra.mxu0 0.0
          %1216 = vmatprep.subr.mxu0 0.0
          %1217 = vmatpush2.msra.mxu0 0.0
          %1218 = vmatprep.subr.mxu0 0.0
          %1219 = vmatpush2.msra.mxu0 0.0
          %1220 = vmatprep.subr.mxu0 0.0
          %1221 = vmatpush2.msra.mxu0 0.0
          %1222 = vmatprep.subr.mxu0 0.0
          %1223 = vmatpush2.msra.mxu0 0.0
          %1224 = vmatprep.subr.mxu0 0.0
          %1225 = vmatpush2.msra.mxu0 0.0
          %1226 = vmatprep.subr.mxu0 0.0
          %1227 = vmatpush2.msra.mxu0 0.0
          %1228 = vmatprep.subr.mxu0 0.0
          %1229 = vmatpush2.msra.mxu0 0.0
          %1230 = vmatprep.subr.mxu0 0.0
          %1231 = vmatpush2.msra.mxu0 0.0
          %1232 = vmatprep.subr.mxu0 0.0
          %1233 = vmatpush2.msra.mxu0 0.0
          %1234 = vmatprep.subr.mxu0 0.0
          %1235 = vmatpush2.msra.mxu0 0.0
          %1236 = vmatprep.subr.mxu0 0.0
          %1237 = vmatpush2.msra.mxu0 0.0
          %1238 = vmatprep.subr.mxu0 0.0
          %1239 = vmatpush2.msra.mxu0 0.0
          %1240 = vmatprep.mubr.f32.mxu0 0.0
          %1241 = vmatmul.mubr.f32.gmra.mxu0 %v1174
          %v1242 = vpop.f32.mrf.mxu0
          %v1243 = vadd.f32 0.0, %v1242
          %v1244 = vpop.f32.mrf.mxu0
          %1245 = vdwg.mxu0
          %v1246 = vadd.f32 %v546, %v1243
          %v1247 = vxor.u32 %v1246, 2147483648
          %v1248 = vmul.f32 %v1247, 1.442695
          %v1249 = vpow.pop %v1248
          %v1250 = vadd.f32 %v1249, 1.0
          %v1251 = vrcp.pop %v1250
          %v1252 = vmul.f32 1.0, %v1251
          %v1253 = vtanh.pop %v1246
          %1255 = vrot.lane.b32.xlu0 %v1253, 32
          %v1256 = vpop.permute.xlu0 %1255
          %v1258 = vmul.f32 %v1252, %v1256
          %1260 = vrot.lane.b32.xlu0 %v1165, 32
          %v1261 = vpop.permute.xlu0 %1260
          %v1263 = vmul.f32 %v1252, %v1261
          %1265 = vrot.lane.b32.xlu0 %v1263, 96
          %v1266 = vpop.permute.xlu0 %1265
          %v1268 = vadd.f32 %v1258, %v1266
          %v1269 = vmax.f32 %v1268, -3.0
          %v1270 = vmin.f32 %v1269, 3.0
          %v1271 = vtanh.pop %v1270
          %1273 = vrot.lane.b32.xlu0 %v1271, 64
          %v1274 = vpop.permute.xlu0 %1273
          %v1276 = vmul.f32 %v1252, %v1274
          %v1277 = vld [vmem:[%s8] sm:$0xff]
          %v1278 = vld [vmem:[%s8 + $0x8] sm:$0xff]
          %v1279 = vld [vmem:[%s8 + $0x10] sm:$0xff]
          %v1280 = vld [vmem:[%s8 + $0x18] sm:$0xff]
          %1282 = vrot.lane.b32.xlu0 %v1276, 64
          %v1283 = vpop.permute.xlu0 %1282
          %v1284 = vsel %vm439, %v1283, 0
          %1286 = vmatprep.subr.mxu0 0.0
          %1287 = vmatpush1.msra.mxu0 0.0
          %1288 = vmatprep.subr.mxu0 0.0
          %1289 = vmatpush1.msra.mxu0 0.0
          %1290 = vmatprep.subr.mxu0 0.0
          %1291 = vmatpush1.msra.mxu0 0.0
          %1292 = vmatprep.subr.mxu0 0.0
          %1293 = vmatpush1.msra.mxu0 0.0
          %1294 = vmatprep.subr.mxu0 0.0
          %1295 = vmatpush1.msra.mxu0 0.0
          %1296 = vmatprep.subr.mxu0 0.0
          %1297 = vmatpush1.msra.mxu0 0.0
          %1298 = vmatprep.subr.mxu0 0.0
          %1299 = vmatpush1.msra.mxu0 0.0
          %1300 = vmatprep.subr.mxu0 0.0
          %1301 = vmatpush1.msra.mxu0 0.0
          %1302 = vmatprep.subr.mxu0 0.0
          %1303 = vmatpush1.msra.mxu0 0.0
          %1304 = vmatprep.subr.mxu0 0.0
          %1305 = vmatpush1.msra.mxu0 0.0
          %1306 = vmatprep.subr.mxu0 0.0
          %1307 = vmatpush1.msra.mxu0 0.0
          %1308 = vmatprep.subr.mxu0 0.0
          %1309 = vmatpush1.msra.mxu0 0.0
          %1310 = vmatprep.subr.mxu0 0.0
          %1311 = vmatpush1.msra.mxu0 %v1280
          %1312 = vmatprep.subr.mxu0 0.0
          %1313 = vmatpush1.msra.mxu0 %v1279
          %1314 = vmatprep.subr.mxu0 0.0
          %1315 = vmatpush1.msra.mxu0 %v1278
          %1316 = vmatprep.subr.mxu0 0.0
          %1317 = vmatpush1.msra.mxu0 %v1277
          %1318 = vmatprep.subr.mxu0 0.0
          %1319 = vmatpush2.msra.mxu0 0.0
          %1320 = vmatprep.subr.mxu0 0.0
          %1321 = vmatpush2.msra.mxu0 0.0
          %1322 = vmatprep.subr.mxu0 0.0
          %1323 = vmatpush2.msra.mxu0 0.0
          %1324 = vmatprep.subr.mxu0 0.0
          %1325 = vmatpush2.msra.mxu0 0.0
          %1326 = vmatprep.subr.mxu0 0.0
          %1327 = vmatpush2.msra.mxu0 0.0
          %1328 = vmatprep.subr.mxu0 0.0
          %1329 = vmatpush2.msra.mxu0 0.0
          %1330 = vmatprep.subr.mxu0 0.0
          %1331 = vmatpush2.msra.mxu0 0.0
          %1332 = vmatprep.subr.mxu0 0.0
          %1333 = vmatpush2.msra.mxu0 0.0
          %1334 = vmatprep.subr.mxu0 0.0
          %1335 = vmatpush2.msra.mxu0 0.0
          %1336 = vmatprep.subr.mxu0 0.0
          %1337 = vmatpush2.msra.mxu0 0.0
          %1338 = vmatprep.subr.mxu0 0.0
          %1339 = vmatpush2.msra.mxu0 0.0
          %1340 = vmatprep.subr.mxu0 0.0
          %1341 = vmatpush2.msra.mxu0 0.0
          %1342 = vmatprep.subr.mxu0 0.0
          %1343 = vmatpush2.msra.mxu0 0.0
          %1344 = vmatprep.subr.mxu0 0.0
          %1345 = vmatpush2.msra.mxu0 0.0
          %1346 = vmatprep.subr.mxu0 0.0
          %1347 = vmatpush2.msra.mxu0 0.0
          %1348 = vmatprep.subr.mxu0 0.0
          %1349 = vmatpush2.msra.mxu0 0.0
          %1350 = vmatprep.mubr.f32.mxu0 0.0
          %1351 = vmatmul.mubr.f32.gmra.mxu0 %v1284
          %v1352 = vpop.f32.mrf.mxu0
          %v1353 = vadd.f32 0.0, %v1352
          %v1354 = vpop.f32.mrf.mxu0
          %1355 = vdwg.mxu0
          %v1356 = vmax.f32 %v1353, -3.0
          %v1357 = vmin.f32 %v1356, 3.0
          %v1358 = vstv %s1170
          %vm1359 = vcmp.gt.s32.totalorder %v414, %v1358
          %v1360 = vsel %vm1359, 1, 0
          %1361 = vset.pattern.permute.xlu0 0
          %1362 = vperm.xlu0 %1361, %v1360
          %v1363 = vpop.permute.xlu0 %1362
          %vm1364 = vcmp.eq.s32.totalorder %v1363, 1
          %v1365 = vsel %vm1364, %v1270, %v1165
          %v1366 = vsel %vm1364, %v1357, %v1166
          %v1367 = vsel %vm1364, %v1357, 0.0
          %s1368 = scalar_lea.vmem %s396, 24 [#allocation12]
          %1369 = vst.msk [vmem:[%s1368] sm:$0xff] %vm573, %v1367
          %s1370 = sadd.s32 %s403, 4
          %v1371 = vld [vmem:[%s6] sm:$0xff]
          %v1372 = vld [vmem:[%s6 + $0x8] sm:$0xff]
          %v1374 = vsel %vm573, %v1366, 0
          %1376 = vmatprep.subr.mxu0 0.0
          %1377 = vmatpush1.msra.mxu0 0.0
          %1378 = vmatprep.subr.mxu0 0.0
          %1379 = vmatpush1.msra.mxu0 0.0
          %1380 = vmatprep.subr.mxu0 0.0
          %1381 = vmatpush1.msra.mxu0 0.0
          %1382 = vmatprep.subr.mxu0 0.0
          %1383 = vmatpush1.msra.mxu0 0.0
          %1384 = vmatprep.subr.mxu0 0.0
          %1385 = vmatpush1.msra.mxu0 0.0
          %1386 = vmatprep.subr.mxu0 0.0
          %1387 = vmatpush1.msra.mxu0 0.0
          %1388 = vmatprep.subr.mxu0 0.0
          %1389 = vmatpush1.msra.mxu0 0.0
          %1390 = vmatprep.subr.mxu0 0.0
          %1391 = vmatpush1.msra.mxu0 0.0
          %1392 = vmatprep.subr.mxu0 0.0
          %1393 = vmatpush1.msra.mxu0 0.0
          %1394 = vmatprep.subr.mxu0 0.0
          %1395 = vmatpush1.msra.mxu0 0.0
          %1396 = vmatprep.subr.mxu0 0.0
          %1397 = vmatpush1.msra.mxu0 0.0
          %1398 = vmatprep.subr.mxu0 0.0
          %1399 = vmatpush1.msra.mxu0 0.0
          %1400 = vmatprep.subr.mxu0 0.0
          %1401 = vmatpush1.msra.mxu0 0.0
          %1402 = vmatprep.subr.mxu0 0.0
          %1403 = vmatpush1.msra.mxu0 0.0
          %1404 = vmatprep.subr.mxu0 0.0
          %1405 = vmatpush1.msra.mxu0 %v1372
          %1406 = vmatprep.subr.mxu0 0.0
          %1407 = vmatpush1.msra.mxu0 %v1371
          %1408 = vmatprep.subr.mxu0 0.0
          %1409 = vmatpush2.msra.mxu0 0.0
          %1410 = vmatprep.subr.mxu0 0.0
          %1411 = vmatpush2.msra.mxu0 0.0
          %1412 = vmatprep.subr.mxu0 0.0
          %1413 = vmatpush2.msra.mxu0 0.0
          %1414 = vmatprep.subr.mxu0 0.0
          %1415 = vmatpush2.msra.mxu0 0.0
          %1416 = vmatprep.subr.mxu0 0.0
          %1417 = vmatpush2.msra.mxu0 0.0
          %1418 = vmatprep.subr.mxu0 0.0
          %1419 = vmatpush2.msra.mxu0 0.0
          %1420 = vmatprep.subr.mxu0 0.0
          %1421 = vmatpush2.msra.mxu0 0.0
          %1422 = vmatprep.subr.mxu0 0.0
          %1423 = vmatpush2.msra.mxu0 0.0
          %1424 = vmatprep.subr.mxu0 0.0
          %1425 = vmatpush2.msra.mxu0 0.0
          %1426 = vmatprep.subr.mxu0 0.0
          %1427 = vmatpush2.msra.mxu0 0.0
          %1428 = vmatprep.subr.mxu0 0.0
          %1429 = vmatpush2.msra.mxu0 0.0
          %1430 = vmatprep.subr.mxu0 0.0
          %1431 = vmatpush2.msra.mxu0 0.0
          %1432 = vmatprep.subr.mxu0 0.0
          %1433 = vmatpush2.msra.mxu0 0.0
          %1434 = vmatprep.subr.mxu0 0.0
          %1435 = vmatpush2.msra.mxu0 0.0
          %1436 = vmatprep.subr.mxu0 0.0
          %1437 = vmatpush2.msra.mxu0 0.0
          %1438 = vmatprep.subr.mxu0 0.0
          %1439 = vmatpush2.msra.mxu0 0.0
          %1440 = vmatprep.mubr.f32.mxu0 0.0
          %1441 = vmatmul.mubr.f32.gmra.mxu0 %v1374
          %v1442 = vpop.f32.mrf.mxu0
          %v1443 = vadd.f32 0.0, %v1442
          %v1444 = vpop.f32.mrf.mxu0
          %1445 = vdwg.mxu0
          %v1446 = vadd.f32 %v551, %v1443
          %v1447 = vxor.u32 %v1446, 2147483648
          %v1448 = vmul.f32 %v1447, 1.442695
          %v1449 = vpow.pop %v1448
          %v1450 = vadd.f32 %v1449, 1.0
          %v1451 = vrcp.pop %v1450
          %v1452 = vmul.f32 1.0, %v1451
          %v1453 = vtanh.pop %v1446
          %1455 = vrot.lane.b32.xlu0 %v1453, 32
          %v1456 = vpop.permute.xlu0 %1455
          %v1458 = vmul.f32 %v1452, %v1456
          %1460 = vrot.lane.b32.xlu0 %v1365, 32
          %v1461 = vpop.permute.xlu0 %1460
          %v1463 = vmul.f32 %v1452, %v1461
          %1465 = vrot.lane.b32.xlu0 %v1463, 96
          %v1466 = vpop.permute.xlu0 %1465
          %v1468 = vadd.f32 %v1458, %v1466
          %v1469 = vmax.f32 %v1468, -3.0
          %v1470 = vmin.f32 %v1469, 3.0
          %v1471 = vtanh.pop %v1470
          %1473 = vrot.lane.b32.xlu0 %v1471, 64
          %v1474 = vpop.permute.xlu0 %1473
          %v1476 = vmul.f32 %v1452, %v1474
          %v1477 = vld [vmem:[%s8] sm:$0xff]
          %v1478 = vld [vmem:[%s8 + $0x8] sm:$0xff]
          %v1479 = vld [vmem:[%s8 + $0x10] sm:$0xff]
          %v1480 = vld [vmem:[%s8 + $0x18] sm:$0xff]
          %1482 = vrot.lane.b32.xlu0 %v1476, 64
          %v1483 = vpop.permute.xlu0 %1482
          %v1484 = vsel %vm439, %v1483, 0
          %1486 = vmatprep.subr.mxu0 0.0
          %1487 = vmatpush1.msra.mxu0 0.0
          %1488 = vmatprep.subr.mxu0 0.0
          %1489 = vmatpush1.msra.mxu0 0.0
          %1490 = vmatprep.subr.mxu0 0.0
          %1491 = vmatpush1.msra.mxu0 0.0
          %1492 = vmatprep.subr.mxu0 0.0
          %1493 = vmatpush1.msra.mxu0 0.0
          %1494 = vmatprep.subr.mxu0 0.0
          %1495 = vmatpush1.msra.mxu0 0.0
          %1496 = vmatprep.subr.mxu0 0.0
          %1497 = vmatpush1.msra.mxu0 0.0
          %1498 = vmatprep.subr.mxu0 0.0
          %1499 = vmatpush1.msra.mxu0 0.0
          %1500 = vmatprep.subr.mxu0 0.0
          %1501 = vmatpush1.msra.mxu0 0.0
          %1502 = vmatprep.subr.mxu0 0.0
          %1503 = vmatpush1.msra.mxu0 0.0
          %1504 = vmatprep.subr.mxu0 0.0
          %1505 = vmatpush1.msra.mxu0 0.0
          %1506 = vmatprep.subr.mxu0 0.0
          %1507 = vmatpush1.msra.mxu0 0.0
          %1508 = vmatprep.subr.mxu0 0.0
          %1509 = vmatpush1.msra.mxu0 0.0
          %1510 = vmatprep.subr.mxu0 0.0
          %1511 = vmatpush1.msra.mxu0 %v1480
          %1512 = vmatprep.subr.mxu0 0.0
          %1513 = vmatpush1.msra.mxu0 %v1479
          %1514 = vmatprep.subr.mxu0 0.0
          %1515 = vmatpush1.msra.mxu0 %v1478
          %1516 = vmatprep.subr.mxu0 0.0
          %1517 = vmatpush1.msra.mxu0 %v1477
          %1518 = vmatprep.subr.mxu0 0.0
          %1519 = vmatpush2.msra.mxu0 0.0
          %1520 = vmatprep.subr.mxu0 0.0
          %1521 = vmatpush2.msra.mxu0 0.0
          %1522 = vmatprep.subr.mxu0 0.0
          %1523 = vmatpush2.msra.mxu0 0.0
          %1524 = vmatprep.subr.mxu0 0.0
          %1525 = vmatpush2.msra.mxu0 0.0
          %1526 = vmatprep.subr.mxu0 0.0
          %1527 = vmatpush2.msra.mxu0 0.0
          %1528 = vmatprep.subr.mxu0 0.0
          %1529 = vmatpush2.msra.mxu0 0.0
          %1530 = vmatprep.subr.mxu0 0.0
          %1531 = vmatpush2.msra.mxu0 0.0
          %1532 = vmatprep.subr.mxu0 0.0
          %1533 = vmatpush2.msra.mxu0 0.0
          %1534 = vmatprep.subr.mxu0 0.0
          %1535 = vmatpush2.msra.mxu0 0.0
          %1536 = vmatprep.subr.mxu0 0.0
          %1537 = vmatpush2.msra.mxu0 0.0
          %1538 = vmatprep.subr.mxu0 0.0
          %1539 = vmatpush2.msra.mxu0 0.0
          %1540 = vmatprep.subr.mxu0 0.0
          %1541 = vmatpush2.msra.mxu0 0.0
          %1542 = vmatprep.subr.mxu0 0.0
          %1543 = vmatpush2.msra.mxu0 0.0
          %1544 = vmatprep.subr.mxu0 0.0
          %1545 = vmatpush2.msra.mxu0 0.0
          %1546 = vmatprep.subr.mxu0 0.0
          %1547 = vmatpush2.msra.mxu0 0.0
          %1548 = vmatprep.subr.mxu0 0.0
          %1549 = vmatpush2.msra.mxu0 0.0
          %1550 = vmatprep.mubr.f32.mxu0 0.0
          %1551 = vmatmul.mubr.f32.gmra.mxu0 %v1484
          %v1552 = vpop.f32.mrf.mxu0
          %v1553 = vadd.f32 0.0, %v1552
          %v1554 = vpop.f32.mrf.mxu0
          %1555 = vdwg.mxu0
          %v1556 = vmax.f32 %v1553, -3.0
          %v1557 = vmin.f32 %v1556, 3.0
          %v1558 = vstv %s1370
          %vm1559 = vcmp.gt.s32.totalorder %v414, %v1558
          %v1560 = vsel %vm1559, 1, 0
          %1561 = vset.pattern.permute.xlu0 0
          %1562 = vperm.xlu0 %1561, %v1560
          %v1563 = vpop.permute.xlu0 %1562
          %vm1564 = vcmp.eq.s32.totalorder %v1563, 1
          %v1565 = vsel %vm1564, %v1470, %v1365
          %v1566 = vsel %vm1564, %v1557, %v1366
          %v1567 = vsel %vm1564, %v1557, 0.0
          %s1568 = scalar_lea.vmem %s396, 32 [#allocation12]
          %1569 = vst.msk [vmem:[%s1568] sm:$0xff] %vm573, %v1567
          %s1570 = sadd.s32 %s403, 5
          %v1571 = vld [vmem:[%s6] sm:$0xff]
          %v1572 = vld [vmem:[%s6 + $0x8] sm:$0xff]
          %v1574 = vsel %vm573, %v1566, 0
          %1576 = vmatprep.subr.mxu0 0.0
          %1577 = vmatpush1.msra.mxu0 0.0
          %1578 = vmatprep.subr.mxu0 0.0
          %1579 = vmatpush1.msra.mxu0 0.0
          %1580 = vmatprep.subr.mxu0 0.0
          %1581 = vmatpush1.msra.mxu0 0.0
          %1582 = vmatprep.subr.mxu0 0.0
          %1583 = vmatpush1.msra.mxu0 0.0
          %1584 = vmatprep.subr.mxu0 0.0
          %1585 = vmatpush1.msra.mxu0 0.0
          %1586 = vmatprep.subr.mxu0 0.0
          %1587 = vmatpush1.msra.mxu0 0.0
          %1588 = vmatprep.subr.mxu0 0.0
          %1589 = vmatpush1.msra.mxu0 0.0
          %1590 = vmatprep.subr.mxu0 0.0
          %1591 = vmatpush1.msra.mxu0 0.0
          %1592 = vmatprep.subr.mxu0 0.0
          %1593 = vmatpush1.msra.mxu0 0.0
          %1594 = vmatprep.subr.mxu0 0.0
          %1595 = vmatpush1.msra.mxu0 0.0
          %1596 = vmatprep.subr.mxu0 0.0
          %1597 = vmatpush1.msra.mxu0 0.0
          %1598 = vmatprep.subr.mxu0 0.0
          %1599 = vmatpush1.msra.mxu0 0.0
          %1600 = vmatprep.subr.mxu0 0.0
          %1601 = vmatpush1.msra.mxu0 0.0
          %1602 = vmatprep.subr.mxu0 0.0
          %1603 = vmatpush1.msra.mxu0 0.0
          %1604 = vmatprep.subr.mxu0 0.0
          %1605 = vmatpush1.msra.mxu0 %v1572
          %1606 = vmatprep.subr.mxu0 0.0
          %1607 = vmatpush1.msra.mxu0 %v1571
          %1608 = vmatprep.subr.mxu0 0.0
          %1609 = vmatpush2.msra.mxu0 0.0
          %1610 = vmatprep.subr.mxu0 0.0
          %1611 = vmatpush2.msra.mxu0 0.0
          %1612 = vmatprep.subr.mxu0 0.0
          %1613 = vmatpush2.msra.mxu0 0.0
          %1614 = vmatprep.subr.mxu0 0.0
          %1615 = vmatpush2.msra.mxu0 0.0
          %1616 = vmatprep.subr.mxu0 0.0
          %1617 = vmatpush2.msra.mxu0 0.0
          %1618 = vmatprep.subr.mxu0 0.0
          %1619 = vmatpush2.msra.mxu0 0.0
          %1620 = vmatprep.subr.mxu0 0.0
          %1621 = vmatpush2.msra.mxu0 0.0
          %1622 = vmatprep.subr.mxu0 0.0
          %1623 = vmatpush2.msra.mxu0 0.0
          %1624 = vmatprep.subr.mxu0 0.0
          %1625 = vmatpush2.msra.mxu0 0.0
          %1626 = vmatprep.subr.mxu0 0.0
          %1627 = vmatpush2.msra.mxu0 0.0
          %1628 = vmatprep.subr.mxu0 0.0
          %1629 = vmatpush2.msra.mxu0 0.0
          %1630 = vmatprep.subr.mxu0 0.0
          %1631 = vmatpush2.msra.mxu0 0.0
          %1632 = vmatprep.subr.mxu0 0.0
          %1633 = vmatpush2.msra.mxu0 0.0
          %1634 = vmatprep.subr.mxu0 0.0
          %1635 = vmatpush2.msra.mxu0 0.0
          %1636 = vmatprep.subr.mxu0 0.0
          %1637 = vmatpush2.msra.mxu0 0.0
          %1638 = vmatprep.subr.mxu0 0.0
          %1639 = vmatpush2.msra.mxu0 0.0
          %1640 = vmatprep.mubr.f32.mxu0 0.0
          %1641 = vmatmul.mubr.f32.gmra.mxu0 %v1574
          %v1642 = vpop.f32.mrf.mxu0
          %v1643 = vadd.f32 0.0, %v1642
          %v1644 = vpop.f32.mrf.mxu0
          %1645 = vdwg.mxu0
          %v1646 = vadd.f32 %v556, %v1643
          %v1647 = vxor.u32 %v1646, 2147483648
          %v1648 = vmul.f32 %v1647, 1.442695
          %v1649 = vpow.pop %v1648
          %v1650 = vadd.f32 %v1649, 1.0
          %v1651 = vrcp.pop %v1650
          %v1652 = vmul.f32 1.0, %v1651
          %v1653 = vtanh.pop %v1646
          %1655 = vrot.lane.b32.xlu0 %v1653, 32
          %v1656 = vpop.permute.xlu0 %1655
          %v1658 = vmul.f32 %v1652, %v1656
          %1660 = vrot.lane.b32.xlu0 %v1565, 32
          %v1661 = vpop.permute.xlu0 %1660
          %v1663 = vmul.f32 %v1652, %v1661
          %1665 = vrot.lane.b32.xlu0 %v1663, 96
          %v1666 = vpop.permute.xlu0 %1665
          %v1668 = vadd.f32 %v1658, %v1666
          %v1669 = vmax.f32 %v1668, -3.0
          %v1670 = vmin.f32 %v1669, 3.0
          %v1671 = vtanh.pop %v1670
          %1673 = vrot.lane.b32.xlu0 %v1671, 64
          %v1674 = vpop.permute.xlu0 %1673
          %v1676 = vmul.f32 %v1652, %v1674
          %v1677 = vld [vmem:[%s8] sm:$0xff]
          %v1678 = vld [vmem:[%s8 + $0x8] sm:$0xff]
          %v1679 = vld [vmem:[%s8 + $0x10] sm:$0xff]
          %v1680 = vld [vmem:[%s8 + $0x18] sm:$0xff]
          %1682 = vrot.lane.b32.xlu0 %v1676, 64
          %v1683 = vpop.permute.xlu0 %1682
          %v1684 = vsel %vm439, %v1683, 0
          %1686 = vmatprep.subr.mxu0 0.0
          %1687 = vmatpush1.msra.mxu0 0.0
          %1688 = vmatprep.subr.mxu0 0.0
          %1689 = vmatpush1.msra.mxu0 0.0
          %1690 = vmatprep.subr.mxu0 0.0
          %1691 = vmatpush1.msra.mxu0 0.0
          %1692 = vmatprep.subr.mxu0 0.0
          %1693 = vmatpush1.msra.mxu0 0.0
          %1694 = vmatprep.subr.mxu0 0.0
          %1695 = vmatpush1.msra.mxu0 0.0
          %1696 = vmatprep.subr.mxu0 0.0
          %1697 = vmatpush1.msra.mxu0 0.0
          %1698 = vmatprep.subr.mxu0 0.0
          %1699 = vmatpush1.msra.mxu0 0.0
          %1700 = vmatprep.subr.mxu0 0.0
          %1701 = vmatpush1.msra.mxu0 0.0
          %1702 = vmatprep.subr.mxu0 0.0
          %1703 = vmatpush1.msra.mxu0 0.0
          %1704 = vmatprep.subr.mxu0 0.0
          %1705 = vmatpush1.msra.mxu0 0.0
          %1706 = vmatprep.subr.mxu0 0.0
          %1707 = vmatpush1.msra.mxu0 0.0
          %1708 = vmatprep.subr.mxu0 0.0
          %1709 = vmatpush1.msra.mxu0 0.0
          %1710 = vmatprep.subr.mxu0 0.0
          %1711 = vmatpush1.msra.mxu0 %v1680
          %1712 = vmatprep.subr.mxu0 0.0
          %1713 = vmatpush1.msra.mxu0 %v1679
          %1714 = vmatprep.subr.mxu0 0.0
          %1715 = vmatpush1.msra.mxu0 %v1678
          %1716 = vmatprep.subr.mxu0 0.0
          %1717 = vmatpush1.msra.mxu0 %v1677
          %1718 = vmatprep.subr.mxu0 0.0
          %1719 = vmatpush2.msra.mxu0 0.0
          %1720 = vmatprep.subr.mxu0 0.0
          %1721 = vmatpush2.msra.mxu0 0.0
          %1722 = vmatprep.subr.mxu0 0.0
          %1723 = vmatpush2.msra.mxu0 0.0
          %1724 = vmatprep.subr.mxu0 0.0
          %1725 = vmatpush2.msra.mxu0 0.0
          %1726 = vmatprep.subr.mxu0 0.0
          %1727 = vmatpush2.msra.mxu0 0.0
          %1728 = vmatprep.subr.mxu0 0.0
          %1729 = vmatpush2.msra.mxu0 0.0
          %1730 = vmatprep.subr.mxu0 0.0
          %1731 = vmatpush2.msra.mxu0 0.0
          %1732 = vmatprep.subr.mxu0 0.0
          %1733 = vmatpush2.msra.mxu0 0.0
          %1734 = vmatprep.subr.mxu0 0.0
          %1735 = vmatpush2.msra.mxu0 0.0
          %1736 = vmatprep.subr.mxu0 0.0
          %1737 = vmatpush2.msra.mxu0 0.0
          %1738 = vmatprep.subr.mxu0 0.0
          %1739 = vmatpush2.msra.mxu0 0.0
          %1740 = vmatprep.subr.mxu0 0.0
          %1741 = vmatpush2.msra.mxu0 0.0
          %1742 = vmatprep.subr.mxu0 0.0
          %1743 = vmatpush2.msra.mxu0 0.0
          %1744 = vmatprep.subr.mxu0 0.0
          %1745 = vmatpush2.msra.mxu0 0.0
          %1746 = vmatprep.subr.mxu0 0.0
          %1747 = vmatpush2.msra.mxu0 0.0
          %1748 = vmatprep.subr.mxu0 0.0
          %1749 = vmatpush2.msra.mxu0 0.0
          %1750 = vmatprep.mubr.f32.mxu0 0.0
          %1751 = vmatmul.mubr.f32.gmra.mxu0 %v1684
          %v1752 = vpop.f32.mrf.mxu0
          %v1753 = vadd.f32 0.0, %v1752
          %v1754 = vpop.f32.mrf.mxu0
          %1755 = vdwg.mxu0
          %v1756 = vmax.f32 %v1753, -3.0
          %v1757 = vmin.f32 %v1756, 3.0
          %v1758 = vstv %s1570
          %vm1759 = vcmp.gt.s32.totalorder %v414, %v1758
          %v1760 = vsel %vm1759, 1, 0
          %1761 = vset.pattern.permute.xlu0 0
          %1762 = vperm.xlu0 %1761, %v1760
          %v1763 = vpop.permute.xlu0 %1762
          %vm1764 = vcmp.eq.s32.totalorder %v1763, 1
          %v1765 = vsel %vm1764, %v1670, %v1565
          %v1766 = vsel %vm1764, %v1757, %v1566
          %v1767 = vsel %vm1764, %v1757, 0.0
          %s1768 = scalar_lea.vmem %s396, 40 [#allocation12]
          %1769 = vst.msk [vmem:[%s1768] sm:$0xff] %vm573, %v1767
          %s1770 = sadd.s32 %s403, 6
          %v1771 = vld [vmem:[%s6] sm:$0xff]
          %v1772 = vld [vmem:[%s6 + $0x8] sm:$0xff]
          %v1774 = vsel %vm573, %v1766, 0
          %1776 = vmatprep.subr.mxu0 0.0
          %1777 = vmatpush1.msra.mxu0 0.0
          %1778 = vmatprep.subr.mxu0 0.0
          %1779 = vmatpush1.msra.mxu0 0.0
          %1780 = vmatprep.subr.mxu0 0.0
          %1781 = vmatpush1.msra.mxu0 0.0
          %1782 = vmatprep.subr.mxu0 0.0
          %1783 = vmatpush1.msra.mxu0 0.0
          %1784 = vmatprep.subr.mxu0 0.0
          %1785 = vmatpush1.msra.mxu0 0.0
          %1786 = vmatprep.subr.mxu0 0.0
          %1787 = vmatpush1.msra.mxu0 0.0
          %1788 = vmatprep.subr.mxu0 0.0
          %1789 = vmatpush1.msra.mxu0 0.0
          %1790 = vmatprep.subr.mxu0 0.0
          %1791 = vmatpush1.msra.mxu0 0.0
          %1792 = vmatprep.subr.mxu0 0.0
          %1793 = vmatpush1.msra.mxu0 0.0
          %1794 = vmatprep.subr.mxu0 0.0
          %1795 = vmatpush1.msra.mxu0 0.0
          %1796 = vmatprep.subr.mxu0 0.0
          %1797 = vmatpush1.msra.mxu0 0.0
          %1798 = vmatprep.subr.mxu0 0.0
          %1799 = vmatpush1.msra.mxu0 0.0
          %1800 = vmatprep.subr.mxu0 0.0
          %1801 = vmatpush1.msra.mxu0 0.0
          %1802 = vmatprep.subr.mxu0 0.0
          %1803 = vmatpush1.msra.mxu0 0.0
          %1804 = vmatprep.subr.mxu0 0.0
          %1805 = vmatpush1.msra.mxu0 %v1772
          %1806 = vmatprep.subr.mxu0 0.0
          %1807 = vmatpush1.msra.mxu0 %v1771
          %1808 = vmatprep.subr.mxu0 0.0
          %1809 = vmatpush2.msra.mxu0 0.0
          %1810 = vmatprep.subr.mxu0 0.0
          %1811 = vmatpush2.msra.mxu0 0.0
          %1812 = vmatprep.subr.mxu0 0.0
          %1813 = vmatpush2.msra.mxu0 0.0
          %1814 = vmatprep.subr.mxu0 0.0
          %1815 = vmatpush2.msra.mxu0 0.0
          %1816 = vmatprep.subr.mxu0 0.0
          %1817 = vmatpush2.msra.mxu0 0.0
          %1818 = vmatprep.subr.mxu0 0.0
          %1819 = vmatpush2.msra.mxu0 0.0
          %1820 = vmatprep.subr.mxu0 0.0
          %1821 = vmatpush2.msra.mxu0 0.0
          %1822 = vmatprep.subr.mxu0 0.0
          %1823 = vmatpush2.msra.mxu0 0.0
          %1824 = vmatprep.subr.mxu0 0.0
          %1825 = vmatpush2.msra.mxu0 0.0
          %1826 = vmatprep.subr.mxu0 0.0
          %1827 = vmatpush2.msra.mxu0 0.0
          %1828 = vmatprep.subr.mxu0 0.0
          %1829 = vmatpush2.msra.mxu0 0.0
          %1830 = vmatprep.subr.mxu0 0.0
          %1831 = vmatpush2.msra.mxu0 0.0
          %1832 = vmatprep.subr.mxu0 0.0
          %1833 = vmatpush2.msra.mxu0 0.0
          %1834 = vmatprep.subr.mxu0 0.0
          %1835 = vmatpush2.msra.mxu0 0.0
          %1836 = vmatprep.subr.mxu0 0.0
          %1837 = vmatpush2.msra.mxu0 0.0
          %1838 = vmatprep.subr.mxu0 0.0
          %1839 = vmatpush2.msra.mxu0 0.0
          %1840 = vmatprep.mubr.f32.mxu0 0.0
          %1841 = vmatmul.mubr.f32.gmra.mxu0 %v1774
          %v1842 = vpop.f32.mrf.mxu0
          %v1843 = vadd.f32 0.0, %v1842
          %v1844 = vpop.f32.mrf.mxu0
          %1845 = vdwg.mxu0
          %v1846 = vadd.f32 %v561, %v1843
          %v1847 = vxor.u32 %v1846, 2147483648
          %v1848 = vmul.f32 %v1847, 1.442695
          %v1849 = vpow.pop %v1848
          %v1850 = vadd.f32 %v1849, 1.0
          %v1851 = vrcp.pop %v1850
          %v1852 = vmul.f32 1.0, %v1851
          %v1853 = vtanh.pop %v1846
          %1855 = vrot.lane.b32.xlu0 %v1853, 32
          %v1856 = vpop.permute.xlu0 %1855
          %v1858 = vmul.f32 %v1852, %v1856
          %1860 = vrot.lane.b32.xlu0 %v1765, 32
          %v1861 = vpop.permute.xlu0 %1860
          %v1863 = vmul.f32 %v1852, %v1861
          %1865 = vrot.lane.b32.xlu0 %v1863, 96
          %v1866 = vpop.permute.xlu0 %1865
          %v1868 = vadd.f32 %v1858, %v1866
          %v1869 = vmax.f32 %v1868, -3.0
          %v1870 = vmin.f32 %v1869, 3.0
          %v1871 = vtanh.pop %v1870
          %1873 = vrot.lane.b32.xlu0 %v1871, 64
          %v1874 = vpop.permute.xlu0 %1873
          %v1876 = vmul.f32 %v1852, %v1874
          %v1877 = vld [vmem:[%s8] sm:$0xff]
          %v1878 = vld [vmem:[%s8 + $0x8] sm:$0xff]
          %v1879 = vld [vmem:[%s8 + $0x10] sm:$0xff]
          %v1880 = vld [vmem:[%s8 + $0x18] sm:$0xff]
          %1882 = vrot.lane.b32.xlu0 %v1876, 64
          %v1883 = vpop.permute.xlu0 %1882
          %v1884 = vsel %vm439, %v1883, 0
          %1886 = vmatprep.subr.mxu0 0.0
          %1887 = vmatpush1.msra.mxu0 0.0
          %1888 = vmatprep.subr.mxu0 0.0
          %1889 = vmatpush1.msra.mxu0 0.0
          %1890 = vmatprep.subr.mxu0 0.0
          %1891 = vmatpush1.msra.mxu0 0.0
          %1892 = vmatprep.subr.mxu0 0.0
          %1893 = vmatpush1.msra.mxu0 0.0
          %1894 = vmatprep.subr.mxu0 0.0
          %1895 = vmatpush1.msra.mxu0 0.0
          %1896 = vmatprep.subr.mxu0 0.0
          %1897 = vmatpush1.msra.mxu0 0.0
          %1898 = vmatprep.subr.mxu0 0.0
          %1899 = vmatpush1.msra.mxu0 0.0
          %1900 = vmatprep.subr.mxu0 0.0
          %1901 = vmatpush1.msra.mxu0 0.0
          %1902 = vmatprep.subr.mxu0 0.0
          %1903 = vmatpush1.msra.mxu0 0.0
          %1904 = vmatprep.subr.mxu0 0.0
          %1905 = vmatpush1.msra.mxu0 0.0
          %1906 = vmatprep.subr.mxu0 0.0
          %1907 = vmatpush1.msra.mxu0 0.0
          %1908 = vmatprep.subr.mxu0 0.0
          %1909 = vmatpush1.msra.mxu0 0.0
          %1910 = vmatprep.subr.mxu0 0.0
          %1911 = vmatpush1.msra.mxu0 %v1880
          %1912 = vmatprep.subr.mxu0 0.0
          %1913 = vmatpush1.msra.mxu0 %v1879
          %1914 = vmatprep.subr.mxu0 0.0
          %1915 = vmatpush1.msra.mxu0 %v1878
          %1916 = vmatprep.subr.mxu0 0.0
          %1917 = vmatpush1.msra.mxu0 %v1877
          %1918 = vmatprep.subr.mxu0 0.0
          %1919 = vmatpush2.msra.mxu0 0.0
          %1920 = vmatprep.subr.mxu0 0.0
          %1921 = vmatpush2.msra.mxu0 0.0
          %1922 = vmatprep.subr.mxu0 0.0
          %1923 = vmatpush2.msra.mxu0 0.0
          %1924 = vmatprep.subr.mxu0 0.0
          %1925 = vmatpush2.msra.mxu0 0.0
          %1926 = vmatprep.subr.mxu0 0.0
          %1927 = vmatpush2.msra.mxu0 0.0
          %1928 = vmatprep.subr.mxu0 0.0
          %1929 = vmatpush2.msra.mxu0 0.0
          %1930 = vmatprep.subr.mxu0 0.0
          %1931 = vmatpush2.msra.mxu0 0.0
          %1932 = vmatprep.subr.mxu0 0.0
          %1933 = vmatpush2.msra.mxu0 0.0
          %1934 = vmatprep.subr.mxu0 0.0
          %1935 = vmatpush2.msra.mxu0 0.0
          %1936 = vmatprep.subr.mxu0 0.0
          %1937 = vmatpush2.msra.mxu0 0.0
          %1938 = vmatprep.subr.mxu0 0.0
          %1939 = vmatpush2.msra.mxu0 0.0
          %1940 = vmatprep.subr.mxu0 0.0
          %1941 = vmatpush2.msra.mxu0 0.0
          %1942 = vmatprep.subr.mxu0 0.0
          %1943 = vmatpush2.msra.mxu0 0.0
          %1944 = vmatprep.subr.mxu0 0.0
          %1945 = vmatpush2.msra.mxu0 0.0
          %1946 = vmatprep.subr.mxu0 0.0
          %1947 = vmatpush2.msra.mxu0 0.0
          %1948 = vmatprep.subr.mxu0 0.0
          %1949 = vmatpush2.msra.mxu0 0.0
          %1950 = vmatprep.mubr.f32.mxu0 0.0
          %1951 = vmatmul.mubr.f32.gmra.mxu0 %v1884
          %v1952 = vpop.f32.mrf.mxu0
          %v1953 = vadd.f32 0.0, %v1952
          %v1954 = vpop.f32.mrf.mxu0
          %1955 = vdwg.mxu0
          %v1956 = vmax.f32 %v1953, -3.0
          %v1957 = vmin.f32 %v1956, 3.0
          %v1958 = vstv %s1770
          %vm1959 = vcmp.gt.s32.totalorder %v414, %v1958
          %v1960 = vsel %vm1959, 1, 0
          %1961 = vset.pattern.permute.xlu0 0
          %1962 = vperm.xlu0 %1961, %v1960
          %v1963 = vpop.permute.xlu0 %1962
          %vm1964 = vcmp.eq.s32.totalorder %v1963, 1
          %v1965 = vsel %vm1964, %v1870, %v1765
          %v1966 = vsel %vm1964, %v1957, %v1766
          %v1967 = vsel %vm1964, %v1957, 0.0
          %s1968 = scalar_lea.vmem %s396, 48 [#allocation12]
          %1969 = vst.msk [vmem:[%s1968] sm:$0xff] %vm573, %v1967
          %s1970 = sadd.s32 %s403, 7
          %v1971 = vld [vmem:[%s6] sm:$0xff]
          %v1972 = vld [vmem:[%s6 + $0x8] sm:$0xff]
          %v1974 = vsel %vm573, %v1966, 0
          %1976 = vmatprep.subr.mxu0 0.0
          %1977 = vmatpush1.msra.mxu0 0.0
          %1978 = vmatprep.subr.mxu0 0.0
          %1979 = vmatpush1.msra.mxu0 0.0
          %1980 = vmatprep.subr.mxu0 0.0
          %1981 = vmatpush1.msra.mxu0 0.0
          %1982 = vmatprep.subr.mxu0 0.0
          %1983 = vmatpush1.msra.mxu0 0.0
          %1984 = vmatprep.subr.mxu0 0.0
          %1985 = vmatpush1.msra.mxu0 0.0
          %1986 = vmatprep.subr.mxu0 0.0
          %1987 = vmatpush1.msra.mxu0 0.0
          %1988 = vmatprep.subr.mxu0 0.0
          %1989 = vmatpush1.msra.mxu0 0.0
          %1990 = vmatprep.subr.mxu0 0.0
          %1991 = vmatpush1.msra.mxu0 0.0
          %1992 = vmatprep.subr.mxu0 0.0
          %1993 = vmatpush1.msra.mxu0 0.0
          %1994 = vmatprep.subr.mxu0 0.0
          %1995 = vmatpush1.msra.mxu0 0.0
          %1996 = vmatprep.subr.mxu0 0.0
          %1997 = vmatpush1.msra.mxu0 0.0
          %1998 = vmatprep.subr.mxu0 0.0
          %1999 = vmatpush1.msra.mxu0 0.0
          %2000 = vmatprep.subr.mxu0 0.0
          %2001 = vmatpush1.msra.mxu0 0.0
          %2002 = vmatprep.subr.mxu0 0.0
          %2003 = vmatpush1.msra.mxu0 0.0
          %2004 = vmatprep.subr.mxu0 0.0
          %2005 = vmatpush1.msra.mxu0 %v1972
          %2006 = vmatprep.subr.mxu0 0.0
          %2007 = vmatpush1.msra.mxu0 %v1971
          %2008 = vmatprep.subr.mxu0 0.0
          %2009 = vmatpush2.msra.mxu0 0.0
          %2010 = vmatprep.subr.mxu0 0.0
          %2011 = vmatpush2.msra.mxu0 0.0
          %2012 = vmatprep.subr.mxu0 0.0
          %2013 = vmatpush2.msra.mxu0 0.0
          %2014 = vmatprep.subr.mxu0 0.0
          %2015 = vmatpush2.msra.mxu0 0.0
          %2016 = vmatprep.subr.mxu0 0.0
          %2017 = vmatpush2.msra.mxu0 0.0
          %2018 = vmatprep.subr.mxu0 0.0
          %2019 = vmatpush2.msra.mxu0 0.0
          %2020 = vmatprep.subr.mxu0 0.0
          %2021 = vmatpush2.msra.mxu0 0.0
          %2022 = vmatprep.subr.mxu0 0.0
          %2023 = vmatpush2.msra.mxu0 0.0
          %2024 = vmatprep.subr.mxu0 0.0
          %2025 = vmatpush2.msra.mxu0 0.0
          %2026 = vmatprep.subr.mxu0 0.0
          %2027 = vmatpush2.msra.mxu0 0.0
          %2028 = vmatprep.subr.mxu0 0.0
          %2029 = vmatpush2.msra.mxu0 0.0
          %2030 = vmatprep.subr.mxu0 0.0
          %2031 = vmatpush2.msra.mxu0 0.0
          %2032 = vmatprep.subr.mxu0 0.0
          %2033 = vmatpush2.msra.mxu0 0.0
          %2034 = vmatprep.subr.mxu0 0.0
          %2035 = vmatpush2.msra.mxu0 0.0
          %2036 = vmatprep.subr.mxu0 0.0
          %2037 = vmatpush2.msra.mxu0 0.0
          %2038 = vmatprep.subr.mxu0 0.0
          %2039 = vmatpush2.msra.mxu0 0.0
          %2040 = vmatprep.mubr.f32.mxu0 0.0
          %2041 = vmatmul.mubr.f32.gmra.mxu0 %v1974
          %v2042 = vpop.f32.mrf.mxu0
          %v2043 = vadd.f32 0.0, %v2042
          %v2044 = vpop.f32.mrf.mxu0
          %2045 = vdwg.mxu0
          %v2046 = vadd.f32 %v566, %v2043
          %v2047 = vxor.u32 %v2046, 2147483648
          %v2048 = vmul.f32 %v2047, 1.442695
          %v2049 = vpow.pop %v2048
          %v2050 = vadd.f32 %v2049, 1.0
          %v2051 = vrcp.pop %v2050
          %v2052 = vmul.f32 1.0, %v2051
          %v2053 = vtanh.pop %v2046
          %2055 = vrot.lane.b32.xlu0 %v2053, 32
          %v2056 = vpop.permute.xlu0 %2055
          %v2058 = vmul.f32 %v2052, %v2056
          %2060 = vrot.lane.b32.xlu0 %v1965, 32
          %v2061 = vpop.permute.xlu0 %2060
          %v2063 = vmul.f32 %v2052, %v2061
          %2065 = vrot.lane.b32.xlu0 %v2063, 96
          %v2066 = vpop.permute.xlu0 %2065
          %v2068 = vadd.f32 %v2058, %v2066
          %v2069 = vmax.f32 %v2068, -3.0
          %v2070 = vmin.f32 %v2069, 3.0
          %v2071 = vtanh.pop %v2070
          %2073 = vrot.lane.b32.xlu0 %v2071, 64
          %v2074 = vpop.permute.xlu0 %2073
          %v2076 = vmul.f32 %v2052, %v2074
          %v2077 = vld [vmem:[%s8] sm:$0xff]
          %v2078 = vld [vmem:[%s8 + $0x8] sm:$0xff]
          %v2079 = vld [vmem:[%s8 + $0x10] sm:$0xff]
          %v2080 = vld [vmem:[%s8 + $0x18] sm:$0xff]
          %2082 = vrot.lane.b32.xlu0 %v2076, 64
          %v2083 = vpop.permute.xlu0 %2082
          %v2084 = vsel %vm439, %v2083, 0
          %2086 = vmatprep.subr.mxu0 0.0
          %2087 = vmatpush1.msra.mxu0 0.0
          %2088 = vmatprep.subr.mxu0 0.0
          %2089 = vmatpush1.msra.mxu0 0.0
          %2090 = vmatprep.subr.mxu0 0.0
          %2091 = vmatpush1.msra.mxu0 0.0
          %2092 = vmatprep.subr.mxu0 0.0
          %2093 = vmatpush1.msra.mxu0 0.0
          %2094 = vmatprep.subr.mxu0 0.0
          %2095 = vmatpush1.msra.mxu0 0.0
          %2096 = vmatprep.subr.mxu0 0.0
          %2097 = vmatpush1.msra.mxu0 0.0
          %2098 = vmatprep.subr.mxu0 0.0
          %2099 = vmatpush1.msra.mxu0 0.0
          %2100 = vmatprep.subr.mxu0 0.0
          %2101 = vmatpush1.msra.mxu0 0.0
          %2102 = vmatprep.subr.mxu0 0.0
          %2103 = vmatpush1.msra.mxu0 0.0
          %2104 = vmatprep.subr.mxu0 0.0
          %2105 = vmatpush1.msra.mxu0 0.0
          %2106 = vmatprep.subr.mxu0 0.0
          %2107 = vmatpush1.msra.mxu0 0.0
          %2108 = vmatprep.subr.mxu0 0.0
          %2109 = vmatpush1.msra.mxu0 0.0
          %2110 = vmatprep.subr.mxu0 0.0
          %2111 = vmatpush1.msra.mxu0 %v2080
          %2112 = vmatprep.subr.mxu0 0.0
          %2113 = vmatpush1.msra.mxu0 %v2079
          %2114 = vmatprep.subr.mxu0 0.0
          %2115 = vmatpush1.msra.mxu0 %v2078
          %2116 = vmatprep.subr.mxu0 0.0
          %2117 = vmatpush1.msra.mxu0 %v2077
          %2118 = vmatprep.subr.mxu0 0.0
          %2119 = vmatpush2.msra.mxu0 0.0
          %2120 = vmatprep.subr.mxu0 0.0
          %2121 = vmatpush2.msra.mxu0 0.0
          %2122 = vmatprep.subr.mxu0 0.0
          %2123 = vmatpush2.msra.mxu0 0.0
          %2124 = vmatprep.subr.mxu0 0.0
          %2125 = vmatpush2.msra.mxu0 0.0
          %2126 = vmatprep.subr.mxu0 0.0
          %2127 = vmatpush2.msra.mxu0 0.0
          %2128 = vmatprep.subr.mxu0 0.0
          %2129 = vmatpush2.msra.mxu0 0.0
          %2130 = vmatprep.subr.mxu0 0.0
          %2131 = vmatpush2.msra.mxu0 0.0
          %2132 = vmatprep.subr.mxu0 0.0
          %2133 = vmatpush2.msra.mxu0 0.0
          %2134 = vmatprep.subr.mxu0 0.0
          %2135 = vmatpush2.msra.mxu0 0.0
          %2136 = vmatprep.subr.mxu0 0.0
          %2137 = vmatpush2.msra.mxu0 0.0
          %2138 = vmatprep.subr.mxu0 0.0
          %2139 = vmatpush2.msra.mxu0 0.0
          %2140 = vmatprep.subr.mxu0 0.0
          %2141 = vmatpush2.msra.mxu0 0.0
          %2142 = vmatprep.subr.mxu0 0.0
          %2143 = vmatpush2.msra.mxu0 0.0
          %2144 = vmatprep.subr.mxu0 0.0
          %2145 = vmatpush2.msra.mxu0 0.0
          %2146 = vmatprep.subr.mxu0 0.0
          %2147 = vmatpush2.msra.mxu0 0.0
          %2148 = vmatprep.subr.mxu0 0.0
          %2149 = vmatpush2.msra.mxu0 0.0
          %2150 = vmatprep.mubr.f32.mxu0 0.0
          %2151 = vmatmul.mubr.f32.gmra.mxu0 %v2084
          %v2152 = vpop.f32.mrf.mxu0
          %v2153 = vadd.f32 0.0, %v2152
          %v2154 = vpop.f32.mrf.mxu0
          %2155 = vdwg.mxu0
          %v2156 = vmax.f32 %v2153, -3.0
          %v2157 = vmin.f32 %v2156, 3.0
          %v2158 = vstv %s1970
          %vm2159 = vcmp.gt.s32.totalorder %v414, %v2158
          %v2160 = vsel %vm2159, 1, 0
          %2161 = vset.pattern.permute.xlu0 0
          %2162 = vperm.xlu0 %2161, %v2160
          %v2163 = vpop.permute.xlu0 %2162
          %vm2164 = vcmp.eq.s32.totalorder %v2163, 1
          %v2165 = vsel %vm2164, %v2070, %v1965
          %v2166 = vsel %vm2164, %v2157, %v1966
          %v2167 = vsel %vm2164, %v2157, 0.0
          %s2168 = scalar_lea.vmem %s396, 56 [#allocation12]
          %2169 = vst.msk [vmem:[%s2168] sm:$0xff] %vm573, %v2167
          %2170 = vst.msk [vmem:[#allocation2] sm:$0xff] %vm573, %v2166
          %2171 = vst.msk [vmem:[#allocation3] sm:$0xff] %vm439, %v2165
        $region72: #{tpu_custom_call.1} parent=51 // pred_fallthru
          _
        %p2172 = scmp.le.s32.totalorder %s415, %s403
        // Predicated region
        $region73: #{tpu_custom_call.1} parent=51 // pred_check
          %p2173 = pneg %p2172
        $region74: #{tpu_custom_call.1} parent=51 // pred_check_branch
          %2175 = sbr.rel (%p2173) target = $region76
        $region75: #{tpu_custom_call.1} parent=51 // pred_region
          %vm2176 = vcmask 130048
          %2177 = vst.msk [vmem:[%s396] sm:$0xff] %vm2176, 0.0
          %2178 = vst.msk [vmem:[%s396 + $0x8] sm:$0xff] %vm2176, 0.0
          %2179 = vst.msk [vmem:[%s396 + $0x10] sm:$0xff] %vm2176, 0.0
          %2180 = vst.msk [vmem:[%s396 + $0x18] sm:$0xff] %vm2176, 0.0
          %2181 = vst.msk [vmem:[%s396 + $0x20] sm:$0xff] %vm2176, 0.0
          %2182 = vst.msk [vmem:[%s396 + $0x28] sm:$0xff] %vm2176, 0.0
          %2183 = vst.msk [vmem:[%s396 + $0x30] sm:$0xff] %vm2176, 0.0
          %2184 = vst.msk [vmem:[%s396 + $0x38] sm:$0xff] %vm2176, 0.0
        $region76: #{tpu_custom_call.1} parent=51 // pred_fallthru
          _
        %p2185 = scmp.eq.s32.totalorder %s32, 1
        // Predicated region
        $region77: #{tpu_custom_call.1} parent=51 // pred_check
          %p2186 = pneg %p2185
        $region78: #{tpu_custom_call.1} parent=51 // pred_check_branch
          %2188 = sbr.rel (%p2186) target = $region80
        $region79: #{tpu_custom_call.1} parent=51 // pred_region
          %v2189 = vld [vmem:[#allocation2] sm:$0xff]
          %vm2190 = vcmask 130048
          %2191 = vst.msk [vmem:[#allocation13] sm:$0xff] %vm2190, %v2189
          %v2192 = vld [vmem:[#allocation3] sm:$0xff]
          %vm2193 = vcmask 261120
          %2194 = vst.msk [vmem:[#allocation15] sm:$0xff] %vm2193, %v2192
        $region80: #{tpu_custom_call.1} parent=51 // pred_fallthru
          _
        %s2195 = sand.u32 %s213, 1
        %s2196 = scalar_lea.sflag [#allocation8], %s2195
        %s2197 = sand.u32 %s213, 1
        %s2198 = smul.addr %s2197, 64
        %s2199 = scalar_lea.vmem [#allocation12], %s2198
        // Predicated region
        $region81: #{tpu_custom_call.1} parent=51 // pred_check
          %p2200 = pneg %p223
        $region82: #{tpu_custom_call.1} parent=51 // pred_check_branch
          %2202 = sbr.rel (%p2200) target = $region84
        $region83: #{tpu_custom_call.1} parent=51 // pred_region
          %s2203 = smul.u32 8, %s32
          %s2205 = ssub.s32 1024, 1024
          %2206 = vsyncadd %s2196, %s2205
          %s2207 = smul.addr %s2203, 128
          %s2208 = scalar_lea.hbm %s9, %s2207
          %s2209 = sshll.u32 %s2199, 4
          %s2210 = int_to_ptr.vmem [resolvable:$true] %s2209
          %2215 = dma.vmem_to_hbm [thread:$0]  %s2210, 1024, %s2208, %s2196, 128, 128, 8
        $region84: #{tpu_custom_call.1} parent=51 // pred_fallthru
          _
        // Predicated region
        $region85: #{tpu_custom_call.1} parent=51 // pred_check
          %p2216 = pneg %p244
        $region86: #{tpu_custom_call.1} parent=51 // pred_check_branch
          %2218 = sbr.rel (%p2216) target = $region88
        $region87: #{tpu_custom_call.1} parent=51 // pred_region
          %s2220 = ssub.s32 128, 128
          %2221 = vsyncadd [#allocation14], %s2220
          %s2223 = sshll.u32 [#allocation13], 4
          %s2224 = int_to_ptr.vmem [resolvable:$true] %s2223
          %2226 = dma.vmem_to_hbm [thread:$0]  %s2224, 128, %s10, [#allocation14]
        $region88: #{tpu_custom_call.1} parent=51 // pred_fallthru
          _
        // Predicated region
        $region89: #{tpu_custom_call.1} parent=51 // pred_check
          %p2227 = pneg %p265
        $region90: #{tpu_custom_call.1} parent=51 // pred_check_branch
          %2229 = sbr.rel (%p2227) target = $region92
        $region91: #{tpu_custom_call.1} parent=51 // pred_region
          %s2231 = ssub.s32 128, 128
          %2232 = vsyncadd [#allocation14], %s2231
          %s2234 = sshll.u32 [#allocation15], 4
          %s2235 = int_to_ptr.vmem [resolvable:$true] %s2234
          %2237 = dma.vmem_to_hbm [thread:$0]  %s2235, 128, %s11, [#allocation14]
        $region92: #{tpu_custom_call.1} parent=51 // pred_fallthru
          _
        // Predicated region
        $region93: #{tpu_custom_call.1} parent=51 // pred_check
          %p2238 = pneg %p244
        $region94: #{tpu_custom_call.1} parent=51 // pred_check_branch
          %2240 = sbr.rel (%p2238) target = $region96
        $region95: #{tpu_custom_call.1} parent=51 // pred_region
          %2241 = dma.done [#allocation14], 128
        $region96: #{tpu_custom_call.1} parent=51 // pred_fallthru
          _
        // Predicated region
        $region97: #{tpu_custom_call.1} parent=51 // pred_check
          %p2242 = pneg %p265
        $region98: #{tpu_custom_call.1} parent=51 // pred_check_branch
          %2244 = sbr.rel (%p2242) target = $region100
        $region99: #{tpu_custom_call.1} parent=51 // pred_region
          %2245 = dma.done [#allocation14], 128
        $region100: #{tpu_custom_call.1} parent=51 // pred_fallthru
          _
      $region52: #{tpu_custom_call.1} parent=5 // pred_fallthru
        _
      %p2246 = scmp.le.s32.totalorder 2, %s27
      // Predicated region
      $region101: #{tpu_custom_call.1} parent=5 // pred_check
        %p2247 = pneg %p2246
      $region102: #{tpu_custom_call.1} parent=5 // pred_check_branch
        %2249 = sbr.rel (%p2247) target = $region104
      $region103: #{tpu_custom_call.1} parent=5 // pred_region
        %s2250 = ssub.s32 %s27, 2
        // Predicated region
        $region105: #{tpu_custom_call.1} parent=103 // pred_check
          %p2251 = pneg %p229
        $region106: #{tpu_custom_call.1} parent=103 // pred_check_branch
          %2253 = sbr.rel (%p2251) target = $region108
        $region107: #{tpu_custom_call.1} parent=103 // pred_region
          %s2254 = sand.u32 %s214, 1
          %s2255 = scalar_lea.sflag [#allocation8], %s2254
          %s2256 = sand.u32 %s214, 1
          %s2257 = smul.addr %s2256, 64
          %s2258 = scalar_lea.vmem [#allocation12], %s2257
          %2259 = dma.done %s2255, 1024
        $region108: #{tpu_custom_call.1} parent=103 // pred_fallthru
          _
      $region104: #{tpu_custom_call.1} parent=5 // pred_fallthru
        _
    $region6: #{tpu_custom_call.1} parent=1 // loop_footer
      %s31 = sadd.s32 1, %s27
    $region7: #{tpu_custom_call.1} parent=1 // loop_footer_branch
      %26 = sbr.rel target = $region3
    $region8: #{tpu_custom_call.1} parent=1 // loop_exit
      _
    %2260 = vsyncpa [#allocation7], 1
    %s2261 = scalar_lea.sflag [#allocation7], 1
    %2262 = vsyncpa %s2261, 1
    %2263 = vsyncpa [#allocation10], 1
    %2264 = vsyncpa [#allocation8], 1
    %s2265 = scalar_lea.sflag [#allocation8], 1
    %2266 = vsyncpa %s2265, 1
    %2267 = vsyncpa [#allocation14], 1

</llo_original>
